<compile_context>
chip_gen: v6e
topology: v6e:2x2x1
jax: 0.10.0
libtpu: 0.0.40
codegen_flags: <defaults>
</compile_context>

<pallas_src>
import functools

import jax
import jax.numpy as jnp
from jax.experimental import pallas as pl
from jax.experimental.pallas import tpu as pltpu

STATE_DIM = 4        # CartPole observation
ACTION_DIM = 2
H1 = 64              # fc1 width
H2 = 128             # LSTM hidden size
SUBLANE = 8          # f32 sublane count; batch padded to a multiple of this


def _ppolstm_kernel(x_ref, h0_ref, c0_ref,
                    fc1_w_ref, fc1_b_ref,
                    w_ih_ref, w_hh_ref, b_lstm_ref,
                    head_w_ref, head_b_ref,
                    out_ref, hN_ref, cN_ref,
                    gin_sc, hseq_sc,
                    *, seq_len, batch):
    # ---- time-parallel prologue: all T timesteps in one pass -------------
    a1 = jnp.dot(x_ref[...], fc1_w_ref[...],
                 preferred_element_type=jnp.float32)               # (T*Bp, H1)
    a1 = jnp.maximum(a1 + fc1_b_ref[...], 0.0)
    # input-side gate pre-activations for every step; LSTM bias folded in so
    # nothing gets re-broadcast inside the recurrence.  bf16 operands, f32 acc.
    gin_sc[...] = (jnp.dot(a1.astype(jnp.bfloat16), w_ih_ref[...],
                           preferred_element_type=jnp.float32)
                   + b_lstm_ref[...])                               # (T*Bp, 4H2)

    # ---- serial recurrence over T -----------------------------------------
    def step(row, carry):
        h, c = carry
        # w_hh_ref is read inside the dot (no whole-array hoist); bf16 weights.
        gates = (gin_sc[pl.ds(row, batch), :]
                 + jnp.dot(h.astype(jnp.bfloat16), w_hh_ref[...],
                           preferred_element_type=jnp.float32))
        # gate order (after wrapper-side reordering): i, f, o, g
        sig = jax.nn.sigmoid(gates[:, :3 * H2])                     # one EUP pass
        i_g = sig[:, 0 * H2:1 * H2]
        f_g = sig[:, 1 * H2:2 * H2]
        o_g = sig[:, 2 * H2:3 * H2]
        g_g = jnp.tanh(gates[:, 3 * H2:4 * H2])
        c = f_g * c + i_g * g_g
        h = o_g * jnp.tanh(c)
        hseq_sc[pl.ds(row, batch), :] = h
        return h, c

    carry = (h0_ref[...], c0_ref[...])                              # (Bp, H2)
    if seq_len <= 16:
        # short rollouts: static unroll (full LLO scheduler visibility)
        for t in range(seq_len):
            carry = step(t * batch, carry)                          # aligned row
    else:
        # long rollouts: bounded live ranges, moderate unroll
        def body(t, carry):
            return step(pl.multiple_of(t * batch, SUBLANE), carry)
        carry = jax.lax.fori_loop(0, seq_len, body, carry, unroll=4)
    h, c = carry

    # final recurrent state: written once, after the loop
    hN_ref[...] = h
    cN_ref[...] = c

    # ---- time-parallel epilogue: fused head + 2-class softmax -------------
    h_all = hseq_sc[...]                                            # (T*Bp, H2)
    head = (jnp.dot(h_all, head_w_ref[...],
                    preferred_element_type=jnp.float32)
            + head_b_ref[...])                                      # (T*Bp, 3)
    l0 = head[:, 0:1]
    l1 = head[:, 1:2]
    v = head[:, 2:3]
    d = l0 - l1
    # softmax over 2 classes == sigmoid of the logit difference: no cross-lane
    # (XLU) max/sum reductions over a nearly-empty vreg.
    out_ref[...] = jnp.concatenate(
        [jax.nn.sigmoid(d), jax.nn.sigmoid(-d), v], axis=-1)        # [p0, p1, v]


def _reorder_gates_ifog(w):
    """PyTorch LSTM gate-block order (i, f, g, o) -> (i, f, o, g), last axis."""
    i = w[..., 0 * H2:1 * H2]
    f = w[..., 1 * H2:2 * H2]
    g = w[..., 2 * H2:3 * H2]
    o = w[..., 3 * H2:4 * H2]
    return jnp.concatenate([i, f, o, g], axis=-1)


@jax.jit
def ppolstm_forward(x_btd, hidden, params):
    """x_btd: (B, T, state_dim) float32.  hidden: (h, c), each (1, B, H2)."""
    B, T, D = x_btd.shape
    h0, c0 = hidden

    # Pad batch to a multiple of 8 so all per-step scratch slices are
    # (8,128)-tile aligned and no f32 sublanes are wasted.  (For real PPO
    # throughput, stack independent environments so B >= 8 natively.)
    Bp = ((B + SUBLANE - 1) // SUBLANE) * SUBLANE
    pad = Bp - B
    x_p = jnp.pad(x_btd, ((0, pad), (0, 0), (0, 0)))
    h0_p = jnp.pad(h0[0], ((0, pad), (0, 0)))
    c0_p = jnp.pad(c0[0], ((0, pad), (0, 0)))

    # time-major, flattened rows: row index = t * Bp + b
    x_flat = jnp.transpose(x_p, (1, 0, 2)).reshape(T * Bp, D)

    # one-time parameter plumbing (cheap, runs under jit in XLA):
    w_ih = _reorder_gates_ifog(params["w_ih"]).astype(jnp.bfloat16)
    w_hh = _reorder_gates_ifog(params["w_hh"]).astype(jnp.bfloat16)
    b_lstm = _reorder_gates_ifog(params["b_lstm"])                      # f32
    head_w = jnp.concatenate([params["act_w"], params["val_w"]], axis=1)  # (H2, 3)
    head_b = jnp.concatenate([params["act_b"], params["val_b"]], axis=1)  # (1, 3)

    full = lambda shape: pl.BlockSpec(shape, lambda i: tuple(0 for _ in shape))

    grid_spec = pltpu.PrefetchScalarGridSpec(
        num_scalar_prefetch=0,
        grid=(1,),
        in_specs=[
            full((T * Bp, D)),                                  # x (all steps)
            full((Bp, H2)), full((Bp, H2)),                     # h0, c0
            full((D, H1)), full((1, H1)),                       # fc1
            full((H1, 4 * H2)), full((H2, 4 * H2)),             # lstm weights (bf16)
            full((1, 4 * H2)),                                  # lstm bias (ih+hh)
            full((H2, ACTION_DIM + 1)), full((1, ACTION_DIM + 1)),  # fused head
        ],
        out_specs=[
            full((T * Bp, ACTION_DIM + 1)),                     # [p0, p1, v] flat
            full((Bp, H2)),                                     # h_N
            full((Bp, H2)),                                     # c_N
        ],
        scratch_shapes=[
            # ~160 KiB total at T=8, Bp=8.  If T*B scales to rollout sizes,
            # tile the prologue/epilogue over T chunks (v7x has 64 MiB VMEM).
            pltpu.VMEM((T * Bp, 4 * H2), jnp.float32),          # input-side gates
            pltpu.VMEM((T * Bp, H2), jnp.float32),              # stacked hidden states
        ],
    )

    kernel = functools.partial(_ppolstm_kernel, seq_len=T, batch=Bp)

    out3, hN, cN = pl.pallas_call(
        kernel,
        grid_spec=grid_spec,
        out_shape=(
            jax.ShapeDtypeStruct((T * Bp, ACTION_DIM + 1), jnp.float32),
            jax.ShapeDtypeStruct((Bp, H2), jnp.float32),
            jax.ShapeDtypeStruct((Bp, H2), jnp.float32),
        ),
        compiler_params=pltpu.CompilerParams(
            dimension_semantics=("arbitrary",)),   # single sequential invocation
    )(
        x_flat, h0_p, c0_p,
        params["fc1_w"], params["fc1_b"],
        w_ih, w_hh, b_lstm,
        head_w, head_b,
    )

    out3 = jnp.transpose(out3.reshape(T, Bp, ACTION_DIM + 1), (1, 0, 2))[:B]
    prob = out3[..., :ACTION_DIM]                                   # (B, T, A)
    v = out3[..., ACTION_DIM:ACTION_DIM + 1]                        # (B, T, 1)
    return prob, v, (hN[:B][None], cN[:B][None])


def _orthogonal(key, shape):
    """Semi-orthogonal matrix (mirrors nn.init.orthogonal_)."""
    r, c = shape
    n = max(r, c)
    a = jax.random.normal(key, (n, n), jnp.float32)
    q, _ = jnp.linalg.qr(a)
    return q[:r, :c]


def init_params(key):
    ks = jax.random.split(key, 6)
    # kaiming-normal (fan_in, relu) for linear layers; biases zero.
    fc1_w = jax.random.normal(ks[0], (STATE_DIM, H1), jnp.float32) * jnp.sqrt(2.0 / STATE_DIM)
    act_w = jax.random.normal(ks[1], (H2, ACTION_DIM), jnp.float32) * jnp.sqrt(2.0 / H2)
    val_w = jax.random.normal(ks[2], (H2, 1), jnp.float32) * jnp.sqrt(2.0 / H2)
    # LSTM: orthogonal weights, biases = 1.0 each (bias_ih + bias_hh = 2.0).
    # PyTorch stores W_ih as (4H, in); we keep the transposed (in, 4H) layout.
    w_ih = _orthogonal(ks[3], (4 * H2, H1)).T
    w_hh = _orthogonal(ks[4], (4 * H2, H2)).T
    b_lstm = jnp.full((1, 4 * H2), 2.0, jnp.float32)
    return {
        "fc1_w": fc1_w, "fc1_b": jnp.zeros((1, H1), jnp.float32),
        "w_ih": w_ih.astype(jnp.float32), "w_hh": w_hh.astype(jnp.float32),
        "b_lstm": b_lstm,
        "act_w": act_w, "act_b": jnp.zeros((1, ACTION_DIM), jnp.float32),
        "val_w": val_w, "val_b": jnp.zeros((1, 1), jnp.float32),
    }


def _reference_forward(x_btd, hidden, p):
    """Pure-JAX f32 reference (lax.scan) mirroring the PyTorch module exactly."""
    h0, c0 = hidden
    a1 = jnp.maximum(jnp.einsum("btd,dh->bth", x_btd, p["fc1_w"]) + p["fc1_b"][0], 0.0)

    def step(carry, x_t):
        h, c = carry
        gates = x_t @ p["w_ih"] + h @ p["w_hh"] + p["b_lstm"][0]
        i = jax.nn.sigmoid(gates[:, 0 * H2:1 * H2])
        f = jax.nn.sigmoid(gates[:, 1 * H2:2 * H2])
        g = jnp.tanh(gates[:, 2 * H2:3 * H2])
        o = jax.nn.sigmoid(gates[:, 3 * H2:4 * H2])
        c = f * c + i * g
        h = o * jnp.tanh(c)
        return (h, c), h

    (hN, cN), hs = jax.lax.scan(step, (h0[0], c0[0]), jnp.transpose(a1, (1, 0, 2)))
    hs = jnp.transpose(hs, (1, 0, 2))                      # (B, T, H2)
    logits = hs @ p["act_w"] + p["act_b"][0]
    prob = jax.nn.softmax(logits, axis=2)
    v = hs @ p["val_w"] + p["val_b"][0]
    return prob, v, (hN[None], cN[None])


if __name__ == "__main__":
    B, T = 2, 8
    key = jax.random.PRNGKey(0)
    k_x, k_p = jax.random.split(key)

    params = init_params(k_p)
    x = jax.random.normal(k_x, (B, T, STATE_DIM), jnp.float32)
    h0 = jnp.zeros((1, B, H2), jnp.float32)
    c0 = jnp.zeros((1, B, H2), jnp.float32)

    prob, v, (hN, cN) = ppolstm_forward(x, (h0, c0), params)
    jax.block_until_ready((prob, v, hN, cN))

    # sanity check against a pure-JAX f32 reference.  Tolerances are loosened
    # relative to the all-f32 version because the LSTM gate matmuls now use
    # bf16 weights/operands (f32 accumulation & state), per the perf review.
    prob_r, v_r, (hN_r, cN_r) = _reference_forward(x, (h0, c0), params)
    assert jnp.allclose(prob, prob_r, atol=2e-2), "prob mismatch"
    assert jnp.allclose(v, v_r, atol=5e-2, rtol=2e-2), "value mismatch"
    assert jnp.allclose(hN, hN_r, atol=5e-2), "h_N mismatch"
    assert jnp.allclose(cN, cN_r, atol=1e-1, rtol=5e-2), "c_N mismatch"

    # TODO(synk): PPO training utilities (optimizer, put_data/make_batch replay
    # buffer, Categorical sampling) are host-side bookkeeping, not kernel work.

    print("KERNEL_OK")
</pallas_src>

<mosaic_0001>
module attributes {stable_mosaic.version = 11 : i64} {
  func.func @_ppolstm_kernel(%arg0: i32, %arg1: memref<64x4xf32, #tpu.memory_space<vmem>>, %arg2: memref<8x128xf32, #tpu.memory_space<vmem>>, %arg3: memref<8x128xf32, #tpu.memory_space<vmem>>, %arg4: memref<4x64xf32, #tpu.memory_space<vmem>>, %arg5: memref<1x64xf32, #tpu.memory_space<vmem>>, %arg6: memref<64x512xbf16, #tpu.memory_space<vmem>>, %arg7: memref<128x512xbf16, #tpu.memory_space<vmem>>, %arg8: memref<1x512xf32, #tpu.memory_space<vmem>>, %arg9: memref<128x3xf32, #tpu.memory_space<vmem>>, %arg10: memref<1x3xf32, #tpu.memory_space<vmem>>, %arg11: memref<64x3xf32, #tpu.memory_space<vmem>>, %arg12: memref<8x128xf32, #tpu.memory_space<vmem>>, %arg13: memref<8x128xf32, #tpu.memory_space<vmem>>, %arg14: memref<64x512xf32, #tpu.memory_space<vmem>>, %arg15: memref<64x128xf32, #tpu.memory_space<vmem>>) attributes {dimension_semantics = [#tpu.dimension_semantics<arbitrary>], iteration_bounds = array<i64: 1>, scalar_prefetch = 0 : i64, scratch_operands = 2 : i64, tpu.core_type = #tpu.core_type<tc>, window_params = [{pipeline_mode = #tpu.pipeline_mode<synchronous>, transform_indices = @transform_0, window_bounds = array<i64: 64, 4>}, {pipeline_mode = #tpu.pipeline_mode<synchronous>, transform_indices = @transform_1, window_bounds = array<i64: 8, 128>}, {pipeline_mode = #tpu.pipeline_mode<synchronous>, transform_indices = @transform_2, window_bounds = array<i64: 8, 128>}, {pipeline_mode = #tpu.pipeline_mode<synchronous>, transform_indices = @transform_3, window_bounds = array<i64: 4, 64>}, {pipeline_mode = #tpu.pipeline_mode<synchronous>, transform_indices = @transform_4, window_bounds = array<i64: 1, 64>}, {pipeline_mode = #tpu.pipeline_mode<synchronous>, transform_indices = @transform_5, window_bounds = array<i64: 64, 512>}, {pipeline_mode = #tpu.pipeline_mode<synchronous>, transform_indices = @transform_6, window_bounds = array<i64: 128, 512>}, {pipeline_mode = #tpu.pipeline_mode<synchronous>, transform_indices = @transform_7, window_bounds = array<i64: 1, 512>}, {pipeline_mode = #tpu.pipeline_mode<synchronous>, transform_indices = @transform_8, window_bounds = array<i64: 128, 3>}, {pipeline_mode = #tpu.pipeline_mode<synchronous>, transform_indices = @transform_9, window_bounds = array<i64: 1, 3>}, {pipeline_mode = #tpu.pipeline_mode<synchronous>, transform_indices = @transform_10, window_bounds = array<i64: 64, 3>}, {pipeline_mode = #tpu.pipeline_mode<synchronous>, transform_indices = @transform_11, window_bounds = array<i64: 8, 128>}, {pipeline_mode = #tpu.pipeline_mode<synchronous>, transform_indices = @transform_12, window_bounds = array<i64: 8, 128>}]} {
    %c0 = arith.constant 0 : index
    %c0_0 = arith.constant 0 : index
    %0 = vector.load %arg1[%c0, %c0_0] : memref<64x4xf32, #tpu.memory_space<vmem>>, vector<64x4xf32>
    %c0_1 = arith.constant 0 : index
    %c0_2 = arith.constant 0 : index
    %1 = vector.load %arg4[%c0_1, %c0_2] : memref<4x64xf32, #tpu.memory_space<vmem>>, vector<4x64xf32>
    %cst = arith.constant dense<0.000000e+00> : vector<64x64xf32>
    %2 = tpu.matmul %0, %1, %cst {dimension_numbers = #tpu.dot_dimension_numbers<[1], [0], [0], [1], [0, 0, 1, 1], [], []>} : vector<64x4xf32>, vector<4x64xf32>, vector<64x64xf32> -> vector<64x64xf32>
    %c0_3 = arith.constant 0 : index
    %c0_4 = arith.constant 0 : index
    %3 = vector.load %arg5[%c0_3, %c0_4] : memref<1x64xf32, #tpu.memory_space<vmem>>, vector<1x64xf32>
    %4 = vector.broadcast %3 : vector<1x64xf32> to vector<64x64xf32>
    %5 = arith.addf %2, %4 : vector<64x64xf32>
    %cst_5 = arith.constant 0.000000e+00 : f32
    %6 = vector.broadcast %cst_5 : f32 to vector<64x64xf32>
    %7 = arith.maximumf %5, %6 : vector<64x64xf32>
    %8 = arith.truncf %7 : vector<64x64xf32> to vector<64x64xbf16>
    %c0_6 = arith.constant 0 : index
    %c0_7 = arith.constant 0 : index
    %9 = vector.load %arg6[%c0_6, %c0_7] : memref<64x512xbf16, #tpu.memory_space<vmem>>, vector<64x512xbf16>
    %cst_8 = arith.constant dense<0.000000e+00> : vector<64x512xf32>
    %10 = tpu.matmul %8, %9, %cst_8 {dimension_numbers = #tpu.dot_dimension_numbers<[1], [0], [0], [1], [0, 0, 1, 1], [], []>} : vector<64x64xbf16>, vector<64x512xbf16>, vector<64x512xf32> -> vector<64x512xf32>
    %c0_9 = arith.constant 0 : index
    %c0_10 = arith.constant 0 : index
    %11 = vector.load %arg8[%c0_9, %c0_10] : memref<1x512xf32, #tpu.memory_space<vmem>>, vector<1x512xf32>
    %12 = vector.broadcast %11 : vector<1x512xf32> to vector<64x512xf32>
    %13 = arith.addf %10, %12 : vector<64x512xf32>
    %c0_11 = arith.constant 0 : index
    %c0_12 = arith.constant 0 : index
    %14 = vector.load %arg14[%c0_11, %c0_12] : memref<64x512xf32, #tpu.memory_space<vmem>>, vector<64x512xf32>
    tpu.vector_store %arg14[%c0_11, %c0_12], %13 {strides = array<i32>} : memref<64x512xf32, #tpu.memory_space<vmem>>, vector<64x512xf32>,
    %c0_13 = arith.constant 0 : index
    %c0_14 = arith.constant 0 : index
    %15 = vector.load %arg2[%c0_13, %c0_14] : memref<8x128xf32, #tpu.memory_space<vmem>>, vector<8x128xf32>
    %c0_15 = arith.constant 0 : index
    %c0_16 = arith.constant 0 : index
    %16 = vector.load %arg3[%c0_15, %c0_16] : memref<8x128xf32, #tpu.memory_space<vmem>>, vector<8x128xf32>
    %c0_17 = arith.constant 0 : index
    %c0_18 = arith.constant 0 : index
    %17 = vector.load %arg14[%c0_17, %c0_18] : memref<64x512xf32, #tpu.memory_space<vmem>>, vector<8x512xf32>
    %18 = arith.truncf %15 : vector<8x128xf32> to vector<8x128xbf16>
    %c0_19 = arith.constant 0 : index
    %c0_20 = arith.constant 0 : index
    %19 = vector.load %arg7[%c0_19, %c0_20] : memref<128x512xbf16, #tpu.memory_space<vmem>>, vector<128x512xbf16>
    %cst_21 = arith.constant dense<0.000000e+00> : vector<8x512xf32>
    %20 = tpu.matmul %18, %19, %cst_21 {dimension_numbers = #tpu.dot_dimension_numbers<[1], [0], [0], [1], [0, 0, 1, 1], [], []>} : vector<8x128xbf16>, vector<128x512xbf16>, vector<8x512xf32> -> vector<8x512xf32>
    %21 = arith.addf %17, %20 : vector<8x512xf32>
    %22 = vector.extract_strided_slice %21 {offsets = [0, 0], sizes = [8, 384], strides = [1, 1]} : vector<8x512xf32> to vector<8x384xf32>
    %23 = arith.negf %22 : vector<8x384xf32>
    %24 = math.exp %23 : vector<8x384xf32>
    %cst_22 = arith.constant 1.000000e+00 : f32
    %25 = vector.broadcast %cst_22 : f32 to vector<8x384xf32>
    %26 = arith.addf %25, %24 : vector<8x384xf32>
    %27 = arith.divf %25, %26 : vector<8x384xf32>
    %28 = vector.extract_strided_slice %27 {offsets = [0, 0], sizes = [8, 128], strides = [1, 1]} : vector<8x384xf32> to vector<8x128xf32>
    %29 = vector.extract_strided_slice %27 {offsets = [0, 128], sizes = [8, 128], strides = [1, 1]} : vector<8x384xf32> to vector<8x128xf32>
    %30 = vector.extract_strided_slice %27 {offsets = [0, 256], sizes = [8, 128], strides = [1, 1]} : vector<8x384xf32> to vector<8x128xf32>
    %31 = vector.extract_strided_slice %21 {offsets = [0, 384], sizes = [8, 128], strides = [1, 1]} : vector<8x512xf32> to vector<8x128xf32>
    %32 = math.tanh %31 : vector<8x128xf32>
    %33 = arith.mulf %29, %16 : vector<8x128xf32>
    %34 = arith.mulf %28, %32 : vector<8x128xf32>
    %35 = arith.addf %33, %34 : vector<8x128xf32>
    %36 = math.tanh %35 : vector<8x128xf32>
    %37 = arith.mulf %30, %36 : vector<8x128xf32>
    %c0_23 = arith.constant 0 : index
    %c0_24 = arith.constant 0 : index
    %38 = vector.load %arg15[%c0_23, %c0_24] : memref<64x128xf32, #tpu.memory_space<vmem>>, vector<8x128xf32>
    tpu.vector_store %arg15[%c0_23, %c0_24], %37 {strides = array<i32>} : memref<64x128xf32, #tpu.memory_space<vmem>>, vector<8x128xf32>,
    %c8 = arith.constant 8 : index
    %c0_25 = arith.constant 0 : index
    %39 = vector.load %arg14[%c8, %c0_25] : memref<64x512xf32, #tpu.memory_space<vmem>>, vector<8x512xf32>
    %40 = arith.truncf %37 : vector<8x128xf32> to vector<8x128xbf16>
    %c0_26 = arith.constant 0 : index
    %c0_27 = arith.constant 0 : index
    %41 = vector.load %arg7[%c0_26, %c0_27] : memref<128x512xbf16, #tpu.memory_space<vmem>>, vector<128x512xbf16>
    %cst_28 = arith.constant dense<0.000000e+00> : vector<8x512xf32>
    %42 = tpu.matmul %40, %41, %cst_28 {dimension_numbers = #tpu.dot_dimension_numbers<[1], [0], [0], [1], [0, 0, 1, 1], [], []>} : vector<8x128xbf16>, vector<128x512xbf16>, vector<8x512xf32> -> vector<8x512xf32>
    %43 = arith.addf %39, %42 : vector<8x512xf32>
    %44 = vector.extract_strided_slice %43 {offsets = [0, 0], sizes = [8, 384], strides = [1, 1]} : vector<8x512xf32> to vector<8x384xf32>
    %45 = arith.negf %44 : vector<8x384xf32>
    %46 = math.exp %45 : vector<8x384xf32>
    %cst_29 = arith.constant 1.000000e+00 : f32
    %47 = vector.broadcast %cst_29 : f32 to vector<8x384xf32>
    %48 = arith.addf %47, %46 : vector<8x384xf32>
    %49 = arith.divf %47, %48 : vector<8x384xf32>
    %50 = vector.extract_strided_slice %49 {offsets = [0, 0], sizes = [8, 128], strides = [1, 1]} : vector<8x384xf32> to vector<8x128xf32>
    %51 = vector.extract_strided_slice %49 {offsets = [0, 128], sizes = [8, 128], strides = [1, 1]} : vector<8x384xf32> to vector<8x128xf32>
    %52 = vector.extract_strided_slice %49 {offsets = [0, 256], sizes = [8, 128], strides = [1, 1]} : vector<8x384xf32> to vector<8x128xf32>
    %53 = vector.extract_strided_slice %43 {offsets = [0, 384], sizes = [8, 128], strides = [1, 1]} : vector<8x512xf32> to vector<8x128xf32>
    %54 = math.tanh %53 : vector<8x128xf32>
    %55 = arith.mulf %51, %35 : vector<8x128xf32>
    %56 = arith.mulf %50, %54 : vector<8x128xf32>
    %57 = arith.addf %55, %56 : vector<8x128xf32>
    %58 = math.tanh %57 : vector<8x128xf32>
    %59 = arith.mulf %52, %58 : vector<8x128xf32>
    %c8_30 = arith.constant 8 : index
    %c0_31 = arith.constant 0 : index
    %60 = vector.load %arg15[%c8_30, %c0_31] : memref<64x128xf32, #tpu.memory_space<vmem>>, vector<8x128xf32>
    tpu.vector_store %arg15[%c8_30, %c0_31], %59 {strides = array<i32>} : memref<64x128xf32, #tpu.memory_space<vmem>>, vector<8x128xf32>,
    %c16 = arith.constant 16 : index
    %c0_32 = arith.constant 0 : index
    %61 = vector.load %arg14[%c16, %c0_32] : memref<64x512xf32, #tpu.memory_space<vmem>>, vector<8x512xf32>
    %62 = arith.truncf %59 : vector<8x128xf32> to vector<8x128xbf16>
    %c0_33 = arith.constant 0 : index
    %c0_34 = arith.constant 0 : index
    %63 = vector.load %arg7[%c0_33, %c0_34] : memref<128x512xbf16, #tpu.memory_space<vmem>>, vector<128x512xbf16>
    %cst_35 = arith.constant dense<0.000000e+00> : vector<8x512xf32>
    %64 = tpu.matmul %62, %63, %cst_35 {dimension_numbers = #tpu.dot_dimension_numbers<[1], [0], [0], [1], [0, 0, 1, 1], [], []>} : vector<8x128xbf16>, vector<128x512xbf16>, vector<8x512xf32> -> vector<8x512xf32>
    %65 = arith.addf %61, %64 : vector<8x512xf32>
    %66 = vector.extract_strided_slice %65 {offsets = [0, 0], sizes = [8, 384], strides = [1, 1]} : vector<8x512xf32> to vector<8x384xf32>
    %67 = arith.negf %66 : vector<8x384xf32>
    %68 = math.exp %67 : vector<8x384xf32>
    %cst_36 = arith.constant 1.000000e+00 : f32
    %69 = vector.broadcast %cst_36 : f32 to vector<8x384xf32>
    %70 = arith.addf %69, %68 : vector<8x384xf32>
    %71 = arith.divf %69, %70 : vector<8x384xf32>
    %72 = vector.extract_strided_slice %71 {offsets = [0, 0], sizes = [8, 128], strides = [1, 1]} : vector<8x384xf32> to vector<8x128xf32>
    %73 = vector.extract_strided_slice %71 {offsets = [0, 128], sizes = [8, 128], strides = [1, 1]} : vector<8x384xf32> to vector<8x128xf32>
    %74 = vector.extract_strided_slice %71 {offsets = [0, 256], sizes = [8, 128], strides = [1, 1]} : vector<8x384xf32> to vector<8x128xf32>
    %75 = vector.extract_strided_slice %65 {offsets = [0, 384], sizes = [8, 128], strides = [1, 1]} : vector<8x512xf32> to vector<8x128xf32>
    %76 = math.tanh %75 : vector<8x128xf32>
    %77 = arith.mulf %73, %57 : vector<8x128xf32>
    %78 = arith.mulf %72, %76 : vector<8x128xf32>
    %79 = arith.addf %77, %78 : vector<8x128xf32>
    %80 = math.tanh %79 : vector<8x128xf32>
    %81 = arith.mulf %74, %80 : vector<8x128xf32>
    %c16_37 = arith.constant 16 : index
    %c0_38 = arith.constant 0 : index
    %82 = vector.load %arg15[%c16_37, %c0_38] : memref<64x128xf32, #tpu.memory_space<vmem>>, vector<8x128xf32>
    tpu.vector_store %arg15[%c16_37, %c0_38], %81 {strides = array<i32>} : memref<64x128xf32, #tpu.memory_space<vmem>>, vector<8x128xf32>,
    %c24 = arith.constant 24 : index
    %c0_39 = arith.constant 0 : index
    %83 = vector.load %arg14[%c24, %c0_39] : memref<64x512xf32, #tpu.memory_space<vmem>>, vector<8x512xf32>
    %84 = arith.truncf %81 : vector<8x128xf32> to vector<8x128xbf16>
    %c0_40 = arith.constant 0 : index
    %c0_41 = arith.constant 0 : index
    %85 = vector.load %arg7[%c0_40, %c0_41] : memref<128x512xbf16, #tpu.memory_space<vmem>>, vector<128x512xbf16>
    %cst_42 = arith.constant dense<0.000000e+00> : vector<8x512xf32>
    %86 = tpu.matmul %84, %85, %cst_42 {dimension_numbers = #tpu.dot_dimension_numbers<[1], [0], [0], [1], [0, 0, 1, 1], [], []>} : vector<8x128xbf16>, vector<128x512xbf16>, vector<8x512xf32> -> vector<8x512xf32>
    %87 = arith.addf %83, %86 : vector<8x512xf32>
    %88 = vector.extract_strided_slice %87 {offsets = [0, 0], sizes = [8, 384], strides = [1, 1]} : vector<8x512xf32> to vector<8x384xf32>
    %89 = arith.negf %88 : vector<8x384xf32>
    %90 = math.exp %89 : vector<8x384xf32>
    %cst_43 = arith.constant 1.000000e+00 : f32
    %91 = vector.broadcast %cst_43 : f32 to vector<8x384xf32>
    %92 = arith.addf %91, %90 : vector<8x384xf32>
    %93 = arith.divf %91, %92 : vector<8x384xf32>
    %94 = vector.extract_strided_slice %93 {offsets = [0, 0], sizes = [8, 128], strides = [1, 1]} : vector<8x384xf32> to vector<8x128xf32>
    %95 = vector.extract_strided_slice %93 {offsets = [0, 128], sizes = [8, 128], strides = [1, 1]} : vector<8x384xf32> to vector<8x128xf32>
    %96 = vector.extract_strided_slice %93 {offsets = [0, 256], sizes = [8, 128], strides = [1, 1]} : vector<8x384xf32> to vector<8x128xf32>
    %97 = vector.extract_strided_slice %87 {offsets = [0, 384], sizes = [8, 128], strides = [1, 1]} : vector<8x512xf32> to vector<8x128xf32>
    %98 = math.tanh %97 : vector<8x128xf32>
    %99 = arith.mulf %95, %79 : vector<8x128xf32>
    %100 = arith.mulf %94, %98 : vector<8x128xf32>
    %101 = arith.addf %99, %100 : vector<8x128xf32>
    %102 = math.tanh %101 : vector<8x128xf32>
    %103 = arith.mulf %96, %102 : vector<8x128xf32>
    %c24_44 = arith.constant 24 : index
    %c0_45 = arith.constant 0 : index
    %104 = vector.load %arg15[%c24_44, %c0_45] : memref<64x128xf32, #tpu.memory_space<vmem>>, vector<8x128xf32>
    tpu.vector_store %arg15[%c24_44, %c0_45], %103 {strides = array<i32>} : memref<64x128xf32, #tpu.memory_space<vmem>>, vector<8x128xf32>,
    %c32 = arith.constant 32 : index
    %c0_46 = arith.constant 0 : index
    %105 = vector.load %arg14[%c32, %c0_46] : memref<64x512xf32, #tpu.memory_space<vmem>>, vector<8x512xf32>
    %106 = arith.truncf %103 : vector<8x128xf32> to vector<8x128xbf16>
    %c0_47 = arith.constant 0 : index
    %c0_48 = arith.constant 0 : index
    %107 = vector.load %arg7[%c0_47, %c0_48] : memref<128x512xbf16, #tpu.memory_space<vmem>>, vector<128x512xbf16>
    %cst_49 = arith.constant dense<0.000000e+00> : vector<8x512xf32>
    %108 = tpu.matmul %106, %107, %cst_49 {dimension_numbers = #tpu.dot_dimension_numbers<[1], [0], [0], [1], [0, 0, 1, 1], [], []>} : vector<8x128xbf16>, vector<128x512xbf16>, vector<8x512xf32> -> vector<8x512xf32>
    %109 = arith.addf %105, %108 : vector<8x512xf32>
    %110 = vector.extract_strided_slice %109 {offsets = [0, 0], sizes = [8, 384], strides = [1, 1]} : vector<8x512xf32> to vector<8x384xf32>
    %111 = arith.negf %110 : vector<8x384xf32>
    %112 = math.exp %111 : vector<8x384xf32>
    %cst_50 = arith.constant 1.000000e+00 : f32
    %113 = vector.broadcast %cst_50 : f32 to vector<8x384xf32>
    %114 = arith.addf %113, %112 : vector<8x384xf32>
    %115 = arith.divf %113, %114 : vector<8x384xf32>
    %116 = vector.extract_strided_slice %115 {offsets = [0, 0], sizes = [8, 128], strides = [1, 1]} : vector<8x384xf32> to vector<8x128xf32>
    %117 = vector.extract_strided_slice %115 {offsets = [0, 128], sizes = [8, 128], strides = [1, 1]} : vector<8x384xf32> to vector<8x128xf32>
    %118 = vector.extract_strided_slice %115 {offsets = [0, 256], sizes = [8, 128], strides = [1, 1]} : vector<8x384xf32> to vector<8x128xf32>
    %119 = vector.extract_strided_slice %109 {offsets = [0, 384], sizes = [8, 128], strides = [1, 1]} : vector<8x512xf32> to vector<8x128xf32>
    %120 = math.tanh %119 : vector<8x128xf32>
    %121 = arith.mulf %117, %101 : vector<8x128xf32>
    %122 = arith.mulf %116, %120 : vector<8x128xf32>
    %123 = arith.addf %121, %122 : vector<8x128xf32>
    %124 = math.tanh %123 : vector<8x128xf32>
    %125 = arith.mulf %118, %124 : vector<8x128xf32>
    %c32_51 = arith.constant 32 : index
    %c0_52 = arith.constant 0 : index
    %126 = vector.load %arg15[%c32_51, %c0_52] : memref<64x128xf32, #tpu.memory_space<vmem>>, vector<8x128xf32>
    tpu.vector_store %arg15[%c32_51, %c0_52], %125 {strides = array<i32>} : memref<64x128xf32, #tpu.memory_space<vmem>>, vector<8x128xf32>,
    %c40 = arith.constant 40 : index
    %c0_53 = arith.constant 0 : index
    %127 = vector.load %arg14[%c40, %c0_53] : memref<64x512xf32, #tpu.memory_space<vmem>>, vector<8x512xf32>
    %128 = arith.truncf %125 : vector<8x128xf32> to vector<8x128xbf16>
    %c0_54 = arith.constant 0 : index
    %c0_55 = arith.constant 0 : index
    %129 = vector.load %arg7[%c0_54, %c0_55] : memref<128x512xbf16, #tpu.memory_space<vmem>>, vector<128x512xbf16>
    %cst_56 = arith.constant dense<0.000000e+00> : vector<8x512xf32>
    %130 = tpu.matmul %128, %129, %cst_56 {dimension_numbers = #tpu.dot_dimension_numbers<[1], [0], [0], [1], [0, 0, 1, 1], [], []>} : vector<8x128xbf16>, vector<128x512xbf16>, vector<8x512xf32> -> vector<8x512xf32>
    %131 = arith.addf %127, %130 : vector<8x512xf32>
    %132 = vector.extract_strided_slice %131 {offsets = [0, 0], sizes = [8, 384], strides = [1, 1]} : vector<8x512xf32> to vector<8x384xf32>
    %133 = arith.negf %132 : vector<8x384xf32>
    %134 = math.exp %133 : vector<8x384xf32>
    %cst_57 = arith.constant 1.000000e+00 : f32
    %135 = vector.broadcast %cst_57 : f32 to vector<8x384xf32>
    %136 = arith.addf %135, %134 : vector<8x384xf32>
    %137 = arith.divf %135, %136 : vector<8x384xf32>
    %138 = vector.extract_strided_slice %137 {offsets = [0, 0], sizes = [8, 128], strides = [1, 1]} : vector<8x384xf32> to vector<8x128xf32>
    %139 = vector.extract_strided_slice %137 {offsets = [0, 128], sizes = [8, 128], strides = [1, 1]} : vector<8x384xf32> to vector<8x128xf32>
    %140 = vector.extract_strided_slice %137 {offsets = [0, 256], sizes = [8, 128], strides = [1, 1]} : vector<8x384xf32> to vector<8x128xf32>
    %141 = vector.extract_strided_slice %131 {offsets = [0, 384], sizes = [8, 128], strides = [1, 1]} : vector<8x512xf32> to vector<8x128xf32>
    %142 = math.tanh %141 : vector<8x128xf32>
    %143 = arith.mulf %139, %123 : vector<8x128xf32>
    %144 = arith.mulf %138, %142 : vector<8x128xf32>
    %145 = arith.addf %143, %144 : vector<8x128xf32>
    %146 = math.tanh %145 : vector<8x128xf32>
    %147 = arith.mulf %140, %146 : vector<8x128xf32>
    %c40_58 = arith.constant 40 : index
    %c0_59 = arith.constant 0 : index
    %148 = vector.load %arg15[%c40_58, %c0_59] : memref<64x128xf32, #tpu.memory_space<vmem>>, vector<8x128xf32>
    tpu.vector_store %arg15[%c40_58, %c0_59], %147 {strides = array<i32>} : memref<64x128xf32, #tpu.memory_space<vmem>>, vector<8x128xf32>,
    %c48 = arith.constant 48 : index
    %c0_60 = arith.constant 0 : index
    %149 = vector.load %arg14[%c48, %c0_60] : memref<64x512xf32, #tpu.memory_space<vmem>>, vector<8x512xf32>
    %150 = arith.truncf %147 : vector<8x128xf32> to vector<8x128xbf16>
    %c0_61 = arith.constant 0 : index
    %c0_62 = arith.constant 0 : index
    %151 = vector.load %arg7[%c0_61, %c0_62] : memref<128x512xbf16, #tpu.memory_space<vmem>>, vector<128x512xbf16>
    %cst_63 = arith.constant dense<0.000000e+00> : vector<8x512xf32>
    %152 = tpu.matmul %150, %151, %cst_63 {dimension_numbers = #tpu.dot_dimension_numbers<[1], [0], [0], [1], [0, 0, 1, 1], [], []>} : vector<8x128xbf16>, vector<128x512xbf16>, vector<8x512xf32> -> vector<8x512xf32>
    %153 = arith.addf %149, %152 : vector<8x512xf32>
    %154 = vector.extract_strided_slice %153 {offsets = [0, 0], sizes = [8, 384], strides = [1, 1]} : vector<8x512xf32> to vector<8x384xf32>
    %155 = arith.negf %154 : vector<8x384xf32>
    %156 = math.exp %155 : vector<8x384xf32>
    %cst_64 = arith.constant 1.000000e+00 : f32
    %157 = vector.broadcast %cst_64 : f32 to vector<8x384xf32>
    %158 = arith.addf %157, %156 : vector<8x384xf32>
    %159 = arith.divf %157, %158 : vector<8x384xf32>
    %160 = vector.extract_strided_slice %159 {offsets = [0, 0], sizes = [8, 128], strides = [1, 1]} : vector<8x384xf32> to vector<8x128xf32>
    %161 = vector.extract_strided_slice %159 {offsets = [0, 128], sizes = [8, 128], strides = [1, 1]} : vector<8x384xf32> to vector<8x128xf32>
    %162 = vector.extract_strided_slice %159 {offsets = [0, 256], sizes = [8, 128], strides = [1, 1]} : vector<8x384xf32> to vector<8x128xf32>
    %163 = vector.extract_strided_slice %153 {offsets = [0, 384], sizes = [8, 128], strides = [1, 1]} : vector<8x512xf32> to vector<8x128xf32>
    %164 = math.tanh %163 : vector<8x128xf32>
    %165 = arith.mulf %161, %145 : vector<8x128xf32>
    %166 = arith.mulf %160, %164 : vector<8x128xf32>
    %167 = arith.addf %165, %166 : vector<8x128xf32>
    %168 = math.tanh %167 : vector<8x128xf32>
    %169 = arith.mulf %162, %168 : vector<8x128xf32>
    %c48_65 = arith.constant 48 : index
    %c0_66 = arith.constant 0 : index
    %170 = vector.load %arg15[%c48_65, %c0_66] : memref<64x128xf32, #tpu.memory_space<vmem>>, vector<8x128xf32>
    tpu.vector_store %arg15[%c48_65, %c0_66], %169 {strides = array<i32>} : memref<64x128xf32, #tpu.memory_space<vmem>>, vector<8x128xf32>,
    %c56 = arith.constant 56 : index
    %c0_67 = arith.constant 0 : index
    %171 = vector.load %arg14[%c56, %c0_67] : memref<64x512xf32, #tpu.memory_space<vmem>>, vector<8x512xf32>
    %172 = arith.truncf %169 : vector<8x128xf32> to vector<8x128xbf16>
    %c0_68 = arith.constant 0 : index
    %c0_69 = arith.constant 0 : index
    %173 = vector.load %arg7[%c0_68, %c0_69] : memref<128x512xbf16, #tpu.memory_space<vmem>>, vector<128x512xbf16>
    %cst_70 = arith.constant dense<0.000000e+00> : vector<8x512xf32>
    %174 = tpu.matmul %172, %173, %cst_70 {dimension_numbers = #tpu.dot_dimension_numbers<[1], [0], [0], [1], [0, 0, 1, 1], [], []>} : vector<8x128xbf16>, vector<128x512xbf16>, vector<8x512xf32> -> vector<8x512xf32>
    %175 = arith.addf %171, %174 : vector<8x512xf32>
    %176 = vector.extract_strided_slice %175 {offsets = [0, 0], sizes = [8, 384], strides = [1, 1]} : vector<8x512xf32> to vector<8x384xf32>
    %177 = arith.negf %176 : vector<8x384xf32>
    %178 = math.exp %177 : vector<8x384xf32>
    %cst_71 = arith.constant 1.000000e+00 : f32
    %179 = vector.broadcast %cst_71 : f32 to vector<8x384xf32>
    %180 = arith.addf %179, %178 : vector<8x384xf32>
    %181 = arith.divf %179, %180 : vector<8x384xf32>
    %182 = vector.extract_strided_slice %181 {offsets = [0, 0], sizes = [8, 128], strides = [1, 1]} : vector<8x384xf32> to vector<8x128xf32>
    %183 = vector.extract_strided_slice %181 {offsets = [0, 128], sizes = [8, 128], strides = [1, 1]} : vector<8x384xf32> to vector<8x128xf32>
    %184 = vector.extract_strided_slice %181 {offsets = [0, 256], sizes = [8, 128], strides = [1, 1]} : vector<8x384xf32> to vector<8x128xf32>
    %185 = vector.extract_strided_slice %175 {offsets = [0, 384], sizes = [8, 128], strides = [1, 1]} : vector<8x512xf32> to vector<8x128xf32>
    %186 = math.tanh %185 : vector<8x128xf32>
    %187 = arith.mulf %183, %167 : vector<8x128xf32>
    %188 = arith.mulf %182, %186 : vector<8x128xf32>
    %189 = arith.addf %187, %188 : vector<8x128xf32>
    %190 = math.tanh %189 : vector<8x128xf32>
    %191 = arith.mulf %184, %190 : vector<8x128xf32>
    %c56_72 = arith.constant 56 : index
    %c0_73 = arith.constant 0 : index
    %192 = vector.load %arg15[%c56_72, %c0_73] : memref<64x128xf32, #tpu.memory_space<vmem>>, vector<8x128xf32>
    tpu.vector_store %arg15[%c56_72, %c0_73], %191 {strides = array<i32>} : memref<64x128xf32, #tpu.memory_space<vmem>>, vector<8x128xf32>,
    %c0_74 = arith.constant 0 : index
    %c0_75 = arith.constant 0 : index
    %193 = vector.load %arg12[%c0_74, %c0_75] : memref<8x128xf32, #tpu.memory_space<vmem>>, vector<8x128xf32>
    tpu.vector_store %arg12[%c0_74, %c0_75], %191 {strides = array<i32>} : memref<8x128xf32, #tpu.memory_space<vmem>>, vector<8x128xf32>,
    %c0_76 = arith.constant 0 : index
    %c0_77 = arith.constant 0 : index
    %194 = vector.load %arg13[%c0_76, %c0_77] : memref<8x128xf32, #tpu.memory_space<vmem>>, vector<8x128xf32>
    tpu.vector_store %arg13[%c0_76, %c0_77], %189 {strides = array<i32>} : memref<8x128xf32, #tpu.memory_space<vmem>>, vector<8x128xf32>,
    %c0_78 = arith.constant 0 : index
    %c0_79 = arith.constant 0 : index
    %195 = vector.load %arg15[%c0_78, %c0_79] : memref<64x128xf32, #tpu.memory_space<vmem>>, vector<64x128xf32>
    %c0_80 = arith.constant 0 : index
    %c0_81 = arith.constant 0 : index
    %196 = vector.load %arg9[%c0_80, %c0_81] : memref<128x3xf32, #tpu.memory_space<vmem>>, vector<128x3xf32>
    %cst_82 = arith.constant dense<0.000000e+00> : vector<64x3xf32>
    %197 = tpu.matmul %195, %196, %cst_82 {dimension_numbers = #tpu.dot_dimension_numbers<[1], [0], [0], [1], [0, 0, 1, 1], [], []>} : vector<64x128xf32>, vector<128x3xf32>, vector<64x3xf32> -> vector<64x3xf32>
    %c0_83 = arith.constant 0 : index
    %c0_84 = arith.constant 0 : index
    %198 = vector.load %arg10[%c0_83, %c0_84] : memref<1x3xf32, #tpu.memory_space<vmem>>, vector<1x3xf32>
    %199 = vector.broadcast %198 : vector<1x3xf32> to vector<64x3xf32>
    %200 = arith.addf %197, %199 : vector<64x3xf32>
    %201 = vector.extract_strided_slice %200 {offsets = [0, 0], sizes = [64, 1], strides = [1, 1]} : vector<64x3xf32> to vector<64x1xf32>
    %202 = vector.extract_strided_slice %200 {offsets = [0, 1], sizes = [64, 1], strides = [1, 1]} : vector<64x3xf32> to vector<64x1xf32>
    %203 = vector.extract_strided_slice %200 {offsets = [0, 2], sizes = [64, 1], strides = [1, 1]} : vector<64x3xf32> to vector<64x1xf32>
    %204 = arith.subf %201, %202 : vector<64x1xf32>
    %205 = arith.negf %204 : vector<64x1xf32>
    %206 = math.exp %205 : vector<64x1xf32>
    %cst_85 = arith.constant 1.000000e+00 : f32
    %207 = vector.broadcast %cst_85 : f32 to vector<64x1xf32>
    %208 = arith.addf %207, %206 : vector<64x1xf32>
    %209 = arith.divf %207, %208 : vector<64x1xf32>
    %cst_86 = arith.constant 0.000000e+00 : f32
    %210 = vector.broadcast %cst_86 : f32 to vector<64x1xf32>
    %211 = arith.subf %210, %204 : vector<64x1xf32>
    %212 = arith.negf %211 : vector<64x1xf32>
    %213 = math.exp %212 : vector<64x1xf32>
    %cst_87 = arith.constant 1.000000e+00 : f32
    %214 = vector.broadcast %cst_87 : f32 to vector<64x1xf32>
    %215 = arith.addf %214, %213 : vector<64x1xf32>
    %216 = arith.divf %214, %215 : vector<64x1xf32>
    %217 = tpu.concatenate %209, %216, %203 in 1 : vector<64x1xf32>, vector<64x1xf32>, vector<64x1xf32> -> vector<64x3xf32>
    %c0_88 = arith.constant 0 : index
    %c0_89 = arith.constant 0 : index
    %218 = vector.load %arg11[%c0_88, %c0_89] : memref<64x3xf32, #tpu.memory_space<vmem>>, vector<64x3xf32>
    tpu.vector_store %arg11[%c0_88, %c0_89], %217 {strides = array<i32>} : memref<64x3xf32, #tpu.memory_space<vmem>>, vector<64x3xf32>,
    return
  }
  func.func @transform_0(%arg0: i32) -> (i32, i32) {
    %c0_i32 = arith.constant 0 : i32
    %c0_i32_0 = arith.constant 0 : i32
    %c0_i32_1 = arith.constant 0 : i32
    return %c0_i32, %c0_i32_0 : i32, i32
  }
  func.func @transform_1(%arg0: i32) -> (i32, i32) {
    %c0_i32 = arith.constant 0 : i32
    %c0_i32_0 = arith.constant 0 : i32
    %c0_i32_1 = arith.constant 0 : i32
    return %c0_i32, %c0_i32_0 : i32, i32
  }
  func.func @transform_2(%arg0: i32) -> (i32, i32) {
    %c0_i32 = arith.constant 0 : i32
    %c0_i32_0 = arith.constant 0 : i32
    %c0_i32_1 = arith.constant 0 : i32
    return %c0_i32, %c0_i32_0 : i32, i32
  }
  func.func @transform_3(%arg0: i32) -> (i32, i32) {
    %c0_i32 = arith.constant 0 : i32
    %c0_i32_0 = arith.constant 0 : i32
    %c0_i32_1 = arith.constant 0 : i32
    return %c0_i32, %c0_i32_0 : i32, i32
  }
  func.func @transform_4(%arg0: i32) -> (i32, i32) {
    %c0_i32 = arith.constant 0 : i32
    %c0_i32_0 = arith.constant 0 : i32
    %c0_i32_1 = arith.constant 0 : i32
    return %c0_i32, %c0_i32_0 : i32, i32
  }
  func.func @transform_5(%arg0: i32) -> (i32, i32) {
    %c0_i32 = arith.constant 0 : i32
    %c0_i32_0 = arith.constant 0 : i32
    %c0_i32_1 = arith.constant 0 : i32
    return %c0_i32, %c0_i32_0 : i32, i32
  }
  func.func @transform_6(%arg0: i32) -> (i32, i32) {
    %c0_i32 = arith.constant 0 : i32
    %c0_i32_0 = arith.constant 0 : i32
    %c0_i32_1 = arith.constant 0 : i32
    return %c0_i32, %c0_i32_0 : i32, i32
  }
  func.func @transform_7(%arg0: i32) -> (i32, i32) {
    %c0_i32 = arith.constant 0 : i32
    %c0_i32_0 = arith.constant 0 : i32
    %c0_i32_1 = arith.constant 0 : i32
    return %c0_i32, %c0_i32_0 : i32, i32
  }
  func.func @transform_8(%arg0: i32) -> (i32, i32) {
    %c0_i32 = arith.constant 0 : i32
    %c0_i32_0 = arith.constant 0 : i32
    %c0_i32_1 = arith.constant 0 : i32
    return %c0_i32, %c0_i32_0 : i32, i32
  }
  func.func @transform_9(%arg0: i32) -> (i32, i32) {
    %c0_i32 = arith.constant 0 : i32
    %c0_i32_0 = arith.constant 0 : i32
    %c0_i32_1 = arith.constant 0 : i32
    return %c0_i32, %c0_i32_0 : i32, i32
  }
  func.func @transform_10(%arg0: i32) -> (i32, i32) {
    %c0_i32 = arith.constant 0 : i32
    %c0_i32_0 = arith.constant 0 : i32
    %c0_i32_1 = arith.constant 0 : i32
    return %c0_i32, %c0_i32_0 : i32, i32
  }
  func.func @transform_11(%arg0: i32) -> (i32, i32) {
    %c0_i32 = arith.constant 0 : i32
    %c0_i32_0 = arith.constant 0 : i32
    %c0_i32_1 = arith.constant 0 : i32
    return %c0_i32, %c0_i32_0 : i32, i32
  }
  func.func @transform_12(%arg0: i32) -> (i32, i32) {
    %c0_i32 = arith.constant 0 : i32
    %c0_i32_0 = arith.constant 0 : i32
    %c0_i32_1 = arith.constant 0 : i32
    return %c0_i32, %c0_i32_0 : i32, i32
  }
}

</mosaic_0001>

<llo_original>
// kernel: ppolstm_forward.1
$region0: #{ppolstm_forward.1}
  #allocation0 [shape = 'u32[]', space=smem, size = 0x4, offset = 0x4, fixed_abs, tag = 'smem constant byte address 0x4 - core index']
  #allocation1 [shape = 'u32[144,128]{1,0:T(1,128)}', space=vmem, size = 0x12000, scoped, tag = 'internal scratch']
  #allocation2 [shape = 'f32[64,512]{1,0:T(8,128)}', space=vmem, size = 0x20000, scoped, tag = 'scratch operand']
  #allocation3 [shape = 'f32[64,128]{1,0:T(8,128)}', space=vmem, size = 0x8000, scoped, tag = 'scratch operand']
  %s0 = inlined_call_operand.vmem [shape: f32[64,4], index: 0, kind: input, shape index: {}]
  %s1 = inlined_call_operand.vmem [shape: f32[8,128], index: 1, kind: input, shape index: {}]
  %s2 = inlined_call_operand.vmem [shape: f32[8,128], index: 2, kind: input, shape index: {}]
  %s3 = inlined_call_operand.vmem [shape: f32[4,64], index: 3, kind: input, shape index: {}]
  %s4 = inlined_call_operand.vmem [shape: f32[1,64], index: 4, kind: input, shape index: {}]
  %s5 = inlined_call_operand.vmem [shape: bf16[64,512], index: 5, kind: input, shape index: {}]
  %s6 = inlined_call_operand.vmem [shape: bf16[128,512], index: 6, kind: input, shape index: {}]
  %s7 = inlined_call_operand.vmem [shape: f32[1,512], index: 7, kind: input, shape index: {}]
  %s8 = inlined_call_operand.vmem [shape: f32[128,3], index: 8, kind: input, shape index: {}]
  %s9 = inlined_call_operand.vmem [shape: f32[1,3], index: 9, kind: input, shape index: {}]
  %s10 = inlined_call_operand.vmem [shape: f32[64,3], index: 10, kind: output, shape index: {0}]
  %s11 = inlined_call_operand.vmem [shape: f32[8,128], index: 11, kind: output, shape index: {1}]
  %s12 = inlined_call_operand.vmem [shape: f32[8,128], index: 12, kind: output, shape index: {2}]
  %13 = xla_tuple %s10, %s11, %s12
  %s14 = sld [smem:[#allocation0]]
  $region66: #{ppolstm_forward.1} parent=0
    _
  %s16 = ssub.s32 1, %s14
  %s17 = scalar_select 0, %s16, %s14
  // Predicated region
  $region2: #{ppolstm_forward.1} parent=0 // pred_check
    _
  $region3: #{ppolstm_forward.1} parent=0 // pred_check_branch
    %19 = sbr.rel (0) target = $region5
  $region4: #{ppolstm_forward.1} parent=0 // pred_region
    _
  $region5: #{ppolstm_forward.1} parent=0 // pred_fallthru
    _
  // Predicated region
  $region6: #{ppolstm_forward.1} parent=0 // pred_check
    _
  $region7: #{ppolstm_forward.1} parent=0 // pred_check_branch
    %21 = sbr.rel (0) target = $region9
  $region8: #{ppolstm_forward.1} parent=0 // pred_region
    _
  $region9: #{ppolstm_forward.1} parent=0 // pred_fallthru
    _
  // Predicated region
  $region10: #{ppolstm_forward.1} parent=0 // pred_check
    _
  $region11: #{ppolstm_forward.1} parent=0 // pred_check_branch
    %23 = sbr.rel (0) target = $region13
  $region12: #{ppolstm_forward.1} parent=0 // pred_region
    _
  $region13: #{ppolstm_forward.1} parent=0 // pred_fallthru
    _
  // Predicated region
  $region14: #{ppolstm_forward.1} parent=0 // pred_check
    _
  $region15: #{ppolstm_forward.1} parent=0 // pred_check_branch
    %25 = sbr.rel (0) target = $region17
  $region16: #{ppolstm_forward.1} parent=0 // pred_region
    _
  $region17: #{ppolstm_forward.1} parent=0 // pred_fallthru
    _
  // Predicated region
  $region18: #{ppolstm_forward.1} parent=0 // pred_check
    _
  $region19: #{ppolstm_forward.1} parent=0 // pred_check_branch
    %27 = sbr.rel (0) target = $region21
  $region20: #{ppolstm_forward.1} parent=0 // pred_region
    _
  $region21: #{ppolstm_forward.1} parent=0 // pred_fallthru
    _
  // Predicated region
  $region22: #{ppolstm_forward.1} parent=0 // pred_check
    _
  $region23: #{ppolstm_forward.1} parent=0 // pred_check_branch
    %29 = sbr.rel (0) target = $region25
  $region24: #{ppolstm_forward.1} parent=0 // pred_region
    _
  $region25: #{ppolstm_forward.1} parent=0 // pred_fallthru
    _
  // Predicated region
  $region26: #{ppolstm_forward.1} parent=0 // pred_check
    _
  $region27: #{ppolstm_forward.1} parent=0 // pred_check_branch
    %31 = sbr.rel (0) target = $region29
  $region28: #{ppolstm_forward.1} parent=0 // pred_region
    _
  $region29: #{ppolstm_forward.1} parent=0 // pred_fallthru
    _
  // Predicated region
  $region30: #{ppolstm_forward.1} parent=0 // pred_check
    _
  $region31: #{ppolstm_forward.1} parent=0 // pred_check_branch
    %33 = sbr.rel (0) target = $region33
  $region32: #{ppolstm_forward.1} parent=0 // pred_region
    _
  $region33: #{ppolstm_forward.1} parent=0 // pred_fallthru
    _
  // Predicated region
  $region34: #{ppolstm_forward.1} parent=0 // pred_check
    _
  $region35: #{ppolstm_forward.1} parent=0 // pred_check_branch
    %35 = sbr.rel (0) target = $region37
  $region36: #{ppolstm_forward.1} parent=0 // pred_region
    _
  $region37: #{ppolstm_forward.1} parent=0 // pred_fallthru
    _
  // Predicated region
  $region38: #{ppolstm_forward.1} parent=0 // pred_check
    _
  $region39: #{ppolstm_forward.1} parent=0 // pred_check_branch
    %37 = sbr.rel (0) target = $region41
  $region40: #{ppolstm_forward.1} parent=0 // pred_region
    _
  $region41: #{ppolstm_forward.1} parent=0 // pred_fallthru
    _
  %v39 = vld [vmem:[%s0] sm:$0xff]
  %v40 = vld [vmem:[%s0 + $0x8] sm:$0xff]
  %v41 = vld [vmem:[%s0 + $0x10] sm:$0xff]
  %v42 = vld [vmem:[%s0 + $0x18] sm:$0xff]
  %v43 = vld [vmem:[%s0 + $0x20] sm:$0xff]
  %v44 = vld [vmem:[%s0 + $0x28] sm:$0xff]
  %v45 = vld [vmem:[%s0 + $0x30] sm:$0xff]
  %v46 = vld [vmem:[%s0 + $0x38] sm:$0xff]
  %v47 = vld [vmem:[%s3] sm:$0xf]
  %v48 = vld [vmem:[%s4] sm:$0x1]
  %v50 = vlaneseq
  %v51 = vshrl.u32 %v50, 7
  %v52 = vsub.s32 0, %v51
  %v53 = vrot.slane %v48, %v52
  %vm55 = vcmask 31744
  %v57 = vsel %vm55, %v39, 0
  %v60 = vsel %vm55, %v40, 0
  %v63 = vsel %vm55, %v41, 0
  %v66 = vsel %vm55, %v42, 0
  %v69 = vsel %vm55, %v43, 0
  %v72 = vsel %vm55, %v44, 0
  %v75 = vsel %vm55, %v45, 0
  %v78 = vsel %vm55, %v46, 0
  %vm80 = vcmask 1043456
  %v82 = vsel %vm80, %v47, 0
  %84 = vmatprep.subr.mxu0 0.0
  %85 = vmatpush1.msra.mxu0 0.0
  %86 = vmatprep.subr.mxu0 0.0
  %87 = vmatpush1.msra.mxu0 0.0
  %88 = vmatprep.subr.mxu0 0.0
  %89 = vmatpush1.msra.mxu0 0.0
  %90 = vmatprep.subr.mxu0 0.0
  %91 = vmatpush1.msra.mxu0 0.0
  %92 = vmatprep.subr.mxu0 0.0
  %93 = vmatpush1.msra.mxu0 0.0
  %94 = vmatprep.subr.mxu0 0.0
  %95 = vmatpush1.msra.mxu0 0.0
  %96 = vmatprep.subr.mxu0 0.0
  %97 = vmatpush1.msra.mxu0 0.0
  %98 = vmatprep.subr.mxu0 0.0
  %99 = vmatpush1.msra.mxu0 0.0
  %100 = vmatprep.subr.mxu0 0.0
  %101 = vmatpush1.msra.mxu0 0.0
  %102 = vmatprep.subr.mxu0 0.0
  %103 = vmatpush1.msra.mxu0 0.0
  %104 = vmatprep.subr.mxu0 0.0
  %105 = vmatpush1.msra.mxu0 0.0
  %106 = vmatprep.subr.mxu0 0.0
  %107 = vmatpush1.msra.mxu0 0.0
  %108 = vmatprep.subr.mxu0 0.0
  %109 = vmatpush1.msra.mxu0 0.0
  %110 = vmatprep.subr.mxu0 0.0
  %111 = vmatpush1.msra.mxu0 0.0
  %112 = vmatprep.subr.mxu0 0.0
  %113 = vmatpush1.msra.mxu0 0.0
  %114 = vmatprep.subr.mxu0 0.0
  %115 = vmatpush1.msra.mxu0 %v82
  %116 = vmatprep.subr.mxu0 0.0
  %117 = vmatpush2.msra.mxu0 0.0
  %118 = vmatprep.subr.mxu0 0.0
  %119 = vmatpush2.msra.mxu0 0.0
  %120 = vmatprep.subr.mxu0 0.0
  %121 = vmatpush2.msra.mxu0 0.0
  %122 = vmatprep.subr.mxu0 0.0
  %123 = vmatpush2.msra.mxu0 0.0
  %124 = vmatprep.subr.mxu0 0.0
  %125 = vmatpush2.msra.mxu0 0.0
  %126 = vmatprep.subr.mxu0 0.0
  %127 = vmatpush2.msra.mxu0 0.0
  %128 = vmatprep.subr.mxu0 0.0
  %129 = vmatpush2.msra.mxu0 0.0
  %130 = vmatprep.subr.mxu0 0.0
  %131 = vmatpush2.msra.mxu0 0.0
  %132 = vmatprep.subr.mxu0 0.0
  %133 = vmatpush2.msra.mxu0 0.0
  %134 = vmatprep.subr.mxu0 0.0
  %135 = vmatpush2.msra.mxu0 0.0
  %136 = vmatprep.subr.mxu0 0.0
  %137 = vmatpush2.msra.mxu0 0.0
  %138 = vmatprep.subr.mxu0 0.0
  %139 = vmatpush2.msra.mxu0 0.0
  %140 = vmatprep.subr.mxu0 0.0
  %141 = vmatpush2.msra.mxu0 0.0
  %142 = vmatprep.subr.mxu0 0.0
  %143 = vmatpush2.msra.mxu0 0.0
  %144 = vmatprep.subr.mxu0 0.0
  %145 = vmatpush2.msra.mxu0 0.0
  %146 = vmatprep.subr.mxu0 0.0
  %147 = vmatpush2.msra.mxu0 0.0
  %148 = vmatprep.mubr.f32.mxu0 0.0
  %149 = vmatmul.mubr.f32.gmra.mxu0 %v57
  %v150 = vpop.f32.mrf.mxu0
  %v151 = vadd.f32 %v53, %v150
  %v152 = vpop.f32.mrf.mxu0
  %153 = vmatprep.mubr.f32.mxu0 0.0
  %154 = vmatmul.mubr.f32.gmra.mxu0 %v60
  %v155 = vpop.f32.mrf.mxu0
  %v156 = vadd.f32 %v53, %v155
  %v157 = vpop.f32.mrf.mxu0
  %158 = vmatprep.mubr.f32.mxu0 0.0
  %159 = vmatmul.mubr.f32.gmra.mxu0 %v63
  %v160 = vpop.f32.mrf.mxu0
  %v161 = vadd.f32 %v53, %v160
  %v162 = vpop.f32.mrf.mxu0
  %163 = vmatprep.mubr.f32.mxu0 0.0
  %164 = vmatmul.mubr.f32.gmra.mxu0 %v66
  %v165 = vpop.f32.mrf.mxu0
  %v166 = vadd.f32 %v53, %v165
  %v167 = vpop.f32.mrf.mxu0
  %168 = vmatprep.mubr.f32.mxu0 0.0
  %169 = vmatmul.mubr.f32.gmra.mxu0 %v69
  %v170 = vpop.f32.mrf.mxu0
  %v171 = vadd.f32 %v53, %v170
  %v172 = vpop.f32.mrf.mxu0
  %173 = vmatprep.mubr.f32.mxu0 0.0
  %174 = vmatmul.mubr.f32.gmra.mxu0 %v72
  %v175 = vpop.f32.mrf.mxu0
  %v176 = vadd.f32 %v53, %v175
  %v177 = vpop.f32.mrf.mxu0
  %178 = vmatprep.mubr.f32.mxu0 0.0
  %179 = vmatmul.mubr.f32.gmra.mxu0 %v75
  %v180 = vpop.f32.mrf.mxu0
  %v181 = vadd.f32 %v53, %v180
  %v182 = vpop.f32.mrf.mxu0
  %183 = vmatprep.mubr.f32.mxu0 0.0
  %184 = vmatmul.mubr.f32.gmra.mxu0 %v78
  %v185 = vpop.f32.mrf.mxu0
  %v186 = vadd.f32 %v53, %v185
  %v187 = vpop.f32.mrf.mxu0
  %188 = vdwg.mxu0
  %v189 = vmax.f32 %v151, 0.0
  %v190 = vmax.f32 %v156, 0.0
  %v191 = vmax.f32 %v161, 0.0
  %v192 = vmax.f32 %v166, 0.0
  %v193 = vmax.f32 %v171, 0.0
  %v194 = vmax.f32 %v176, 0.0
  %v195 = vmax.f32 %v181, 0.0
  %v196 = vmax.f32 %v186, 0.0
  %v197 = vpack.c.bf16 %v190, %v189
  %v198 = vpack.c.bf16 %v192, %v191
  %v199 = vpack.c.bf16 %v194, %v193
  %v200 = vpack.c.bf16 %v196, %v195
  %v201 = vld [vmem:[%s5] sm:$0xff]
  %v202 = vld [vmem:[%s5 + $0x8] sm:$0xff]
  %v203 = vld [vmem:[%s5 + $0x10] sm:$0xff]
  %v204 = vld [vmem:[%s5 + $0x18] sm:$0xff]
  %v205 = vld [vmem:[%s5 + $0x20] sm:$0xff]
  %v206 = vld [vmem:[%s5 + $0x28] sm:$0xff]
  %v207 = vld [vmem:[%s5 + $0x30] sm:$0xff]
  %v208 = vld [vmem:[%s5 + $0x38] sm:$0xff]
  %v209 = vld [vmem:[%s5 + $0x40] sm:$0xff]
  %v210 = vld [vmem:[%s5 + $0x48] sm:$0xff]
  %v211 = vld [vmem:[%s5 + $0x50] sm:$0xff]
  %v212 = vld [vmem:[%s5 + $0x58] sm:$0xff]
  %v213 = vld [vmem:[%s5 + $0x60] sm:$0xff]
  %v214 = vld [vmem:[%s5 + $0x68] sm:$0xff]
  %v215 = vld [vmem:[%s5 + $0x70] sm:$0xff]
  %v216 = vld [vmem:[%s5 + $0x78] sm:$0xff]
  %v217 = vld [vmem:[%s7] sm:$0xf]
  %v219 = vlaneseq
  %v220 = vshrl.u32 %v219, 7
  %v221 = vsub.s32 0, %v220
  %v222 = vrot.slane %v217, %v221
  %v223 = vlaneseq
  %v224 = vshrl.u32 %v223, 7
  %v225 = vsub.s32 1, %v224
  %v226 = vrot.slane %v217, %v225
  %v227 = vlaneseq
  %v228 = vshrl.u32 %v227, 7
  %v229 = vsub.s32 2, %v228
  %v230 = vrot.slane %v217, %v229
  %v231 = vlaneseq
  %v232 = vshrl.u32 %v231, 7
  %v233 = vsub.s32 3, %v232
  %v234 = vrot.slane %v217, %v233
  %v255 = vunpack.c.l.b16 %v201
  %v256 = vunpack.c.h.b16 %v201
  %v257 = vunpack.c.l.b16 %v202
  %v258 = vunpack.c.h.b16 %v202
  %v259 = vunpack.c.l.b16 %v203
  %v260 = vunpack.c.h.b16 %v203
  %v261 = vunpack.c.l.b16 %v204
  %v262 = vunpack.c.h.b16 %v204
  %v263 = vunpack.c.l.b16 %v205
  %v264 = vunpack.c.h.b16 %v205
  %v265 = vunpack.c.l.b16 %v206
  %v266 = vunpack.c.h.b16 %v206
  %v267 = vunpack.c.l.b16 %v207
  %v268 = vunpack.c.h.b16 %v207
  %v269 = vunpack.c.l.b16 %v208
  %v270 = vunpack.c.h.b16 %v208
  %v271 = vunpack.c.l.b16 %v209
  %v272 = vunpack.c.h.b16 %v209
  %v273 = vunpack.c.l.b16 %v210
  %v274 = vunpack.c.h.b16 %v210
  %v275 = vunpack.c.l.b16 %v211
  %v276 = vunpack.c.h.b16 %v211
  %v277 = vunpack.c.l.b16 %v212
  %v278 = vunpack.c.h.b16 %v212
  %v279 = vunpack.c.l.b16 %v213
  %v280 = vunpack.c.h.b16 %v213
  %v281 = vunpack.c.l.b16 %v214
  %v282 = vunpack.c.h.b16 %v214
  %v283 = vunpack.c.l.b16 %v215
  %v284 = vunpack.c.h.b16 %v215
  %v285 = vunpack.c.l.b16 %v216
  %v286 = vunpack.c.h.b16 %v216
  %v287 = vpack.c.b16 %v259, %v255
  %v288 = vpack.c.b16 %v260, %v256
  %v289 = vpack.c.b16 %v261, %v257
  %v290 = vpack.c.b16 %v262, %v258
  %v291 = vpack.c.b16 %v267, %v263
  %v292 = vpack.c.b16 %v268, %v264
  %v293 = vpack.c.b16 %v269, %v265
  %v294 = vpack.c.b16 %v270, %v266
  %v295 = vpack.c.b16 %v275, %v271
  %v296 = vpack.c.b16 %v276, %v272
  %v297 = vpack.c.b16 %v277, %v273
  %v298 = vpack.c.b16 %v278, %v274
  %v299 = vpack.c.b16 %v283, %v279
  %v300 = vpack.c.b16 %v284, %v280
  %v301 = vpack.c.b16 %v285, %v281
  %v302 = vpack.c.b16 %v286, %v282
  %vm319 = vcmask 523264
  %v321 = vsel %vm319, %v197, 0
  %v324 = vsel %vm319, %v198, 0
  %v327 = vsel %vm319, %v199, 0
  %v330 = vsel %vm319, %v200, 0
  %332 = vmatprep.subr.bf16.mxu0 0
  %333 = vmatpush1.bf16.msra.mxu0 0
  %334 = vmatprep.subr.bf16.mxu0 0
  %335 = vmatpush1.bf16.msra.mxu0 0
  %336 = vmatprep.subr.bf16.mxu0 0
  %337 = vmatpush1.bf16.msra.mxu0 0
  %338 = vmatprep.subr.bf16.mxu0 0
  %339 = vmatpush1.bf16.msra.mxu0 0
  %340 = vmatprep.subr.bf16.mxu0 %v300
  %341 = vmatpush1.bf16.msra.mxu0 %v299
  %342 = vmatprep.subr.bf16.mxu0 %v296
  %343 = vmatpush1.bf16.msra.mxu0 %v295
  %344 = vmatprep.subr.bf16.mxu0 %v292
  %345 = vmatpush1.bf16.msra.mxu0 %v291
  %346 = vmatprep.subr.bf16.mxu0 %v288
  %347 = vmatpush1.bf16.msra.mxu0 %v287
  %348 = vmatprep.subr.bf16.mxu0 0
  %349 = vmatpush2.bf16.msra.mxu0 0
  %350 = vmatprep.subr.bf16.mxu0 0
  %351 = vmatpush2.bf16.msra.mxu0 0
  %352 = vmatprep.subr.bf16.mxu0 0
  %353 = vmatpush2.bf16.msra.mxu0 0
  %354 = vmatprep.subr.bf16.mxu0 0
  %355 = vmatpush2.bf16.msra.mxu0 0
  %356 = vmatprep.subr.bf16.mxu0 0
  %357 = vmatpush2.bf16.msra.mxu0 0
  %358 = vmatprep.subr.bf16.mxu0 0
  %359 = vmatpush2.bf16.msra.mxu0 0
  %360 = vmatprep.subr.bf16.mxu0 0
  %361 = vmatpush2.bf16.msra.mxu0 0
  %362 = vmatprep.subr.bf16.mxu0 0
  %363 = vmatpush2.bf16.msra.mxu0 0
  %364 = vmatprep.mubr.bf16.mxu0 0
  %365 = vmatmul.mubr.bf16.gmra.mxu0 %v321
  %v366 = vpop.f32.mrf.mxu0
  %v367 = vadd.f32 %v222, %v366
  %v368 = vpop.f32.mrf.mxu0
  %v369 = vadd.f32 %v226, %v368
  %v370 = vpop.f32.mrf.mxu0
  %v371 = vadd.f32 %v222, %v370
  %v372 = vpop.f32.mrf.mxu0
  %v373 = vadd.f32 %v226, %v372
  %374 = vmatprep.mubr.bf16.mxu0 0
  %375 = vmatmul.mubr.bf16.gmra.mxu0 %v324
  %v376 = vpop.f32.mrf.mxu0
  %v377 = vadd.f32 %v222, %v376
  %v378 = vpop.f32.mrf.mxu0
  %v379 = vadd.f32 %v226, %v378
  %v380 = vpop.f32.mrf.mxu0
  %v381 = vadd.f32 %v222, %v380
  %v382 = vpop.f32.mrf.mxu0
  %v383 = vadd.f32 %v226, %v382
  %384 = vmatprep.mubr.bf16.mxu0 0
  %385 = vmatmul.mubr.bf16.gmra.mxu0 %v327
  %v386 = vpop.f32.mrf.mxu0
  %v387 = vadd.f32 %v222, %v386
  %v388 = vpop.f32.mrf.mxu0
  %v389 = vadd.f32 %v226, %v388
  %v390 = vpop.f32.mrf.mxu0
  %v391 = vadd.f32 %v222, %v390
  %v392 = vpop.f32.mrf.mxu0
  %v393 = vadd.f32 %v226, %v392
  %394 = vmatprep.mubr.bf16.mxu0 0
  %395 = vmatmul.mubr.bf16.gmra.mxu0 %v330
  %v396 = vpop.f32.mrf.mxu0
  %v397 = vadd.f32 %v222, %v396
  %v398 = vpop.f32.mrf.mxu0
  %v399 = vadd.f32 %v226, %v398
  %v400 = vpop.f32.mrf.mxu0
  %v401 = vadd.f32 %v222, %v400
  %v402 = vpop.f32.mrf.mxu0
  %v403 = vadd.f32 %v226, %v402
  %404 = vdwg.mxu0
  %405 = vmatprep.subr.bf16.mxu0 0
  %406 = vmatpush1.bf16.msra.mxu0 0
  %407 = vmatprep.subr.bf16.mxu0 0
  %408 = vmatpush1.bf16.msra.mxu0 0
  %409 = vmatprep.subr.bf16.mxu0 0
  %410 = vmatpush1.bf16.msra.mxu0 0
  %411 = vmatprep.subr.bf16.mxu0 0
  %412 = vmatpush1.bf16.msra.mxu0 0
  %413 = vmatprep.subr.bf16.mxu0 %v302
  %414 = vmatpush1.bf16.msra.mxu0 %v301
  %415 = vmatprep.subr.bf16.mxu0 %v298
  %416 = vmatpush1.bf16.msra.mxu0 %v297
  %417 = vmatprep.subr.bf16.mxu0 %v294
  %418 = vmatpush1.bf16.msra.mxu0 %v293
  %419 = vmatprep.subr.bf16.mxu0 %v290
  %420 = vmatpush1.bf16.msra.mxu0 %v289
  %421 = vmatprep.subr.bf16.mxu0 0
  %422 = vmatpush2.bf16.msra.mxu0 0
  %423 = vmatprep.subr.bf16.mxu0 0
  %424 = vmatpush2.bf16.msra.mxu0 0
  %425 = vmatprep.subr.bf16.mxu0 0
  %426 = vmatpush2.bf16.msra.mxu0 0
  %427 = vmatprep.subr.bf16.mxu0 0
  %428 = vmatpush2.bf16.msra.mxu0 0
  %429 = vmatprep.subr.bf16.mxu0 0
  %430 = vmatpush2.bf16.msra.mxu0 0
  %431 = vmatprep.subr.bf16.mxu0 0
  %432 = vmatpush2.bf16.msra.mxu0 0
  %433 = vmatprep.subr.bf16.mxu0 0
  %434 = vmatpush2.bf16.msra.mxu0 0
  %435 = vmatprep.subr.bf16.mxu0 0
  %436 = vmatpush2.bf16.msra.mxu0 0
  %437 = vmatprep.mubr.bf16.mxu0 0
  %438 = vmatmul.mubr.bf16.gmra.mxu0 %v321
  %v439 = vpop.f32.mrf.mxu0
  %v440 = vadd.f32 %v230, %v439
  %v441 = vpop.f32.mrf.mxu0
  %v442 = vadd.f32 %v234, %v441
  %v443 = vpop.f32.mrf.mxu0
  %v444 = vadd.f32 %v230, %v443
  %v445 = vpop.f32.mrf.mxu0
  %v446 = vadd.f32 %v234, %v445
  %447 = vmatprep.mubr.bf16.mxu0 0
  %448 = vmatmul.mubr.bf16.gmra.mxu0 %v324
  %v449 = vpop.f32.mrf.mxu0
  %v450 = vadd.f32 %v230, %v449
  %v451 = vpop.f32.mrf.mxu0
  %v452 = vadd.f32 %v234, %v451
  %v453 = vpop.f32.mrf.mxu0
  %v454 = vadd.f32 %v230, %v453
  %v455 = vpop.f32.mrf.mxu0
  %v456 = vadd.f32 %v234, %v455
  %457 = vmatprep.mubr.bf16.mxu0 0
  %458 = vmatmul.mubr.bf16.gmra.mxu0 %v327
  %v459 = vpop.f32.mrf.mxu0
  %v460 = vadd.f32 %v230, %v459
  %v461 = vpop.f32.mrf.mxu0
  %v462 = vadd.f32 %v234, %v461
  %v463 = vpop.f32.mrf.mxu0
  %v464 = vadd.f32 %v230, %v463
  %v465 = vpop.f32.mrf.mxu0
  %v466 = vadd.f32 %v234, %v465
  %467 = vmatprep.mubr.bf16.mxu0 0
  %468 = vmatmul.mubr.bf16.gmra.mxu0 %v330
  %v469 = vpop.f32.mrf.mxu0
  %v470 = vadd.f32 %v230, %v469
  %v471 = vpop.f32.mrf.mxu0
  %v472 = vadd.f32 %v234, %v471
  %v473 = vpop.f32.mrf.mxu0
  %v474 = vadd.f32 %v230, %v473
  %v475 = vpop.f32.mrf.mxu0
  %v476 = vadd.f32 %v234, %v475
  %477 = vdwg.mxu0
  %478 = vst [vmem:[#allocation2] sm:$0xff] %v367
  %479 = vst [vmem:[#allocation2 + $0x8] sm:$0xff] %v369
  %480 = vst [vmem:[#allocation2 + $0x10] sm:$0xff] %v440
  %481 = vst [vmem:[#allocation2 + $0x18] sm:$0xff] %v442
  %482 = vst [vmem:[#allocation2 + $0x20] sm:$0xff] %v371
  %483 = vst [vmem:[#allocation2 + $0x28] sm:$0xff] %v373
  %484 = vst [vmem:[#allocation2 + $0x30] sm:$0xff] %v444
  %485 = vst [vmem:[#allocation2 + $0x38] sm:$0xff] %v446
  %486 = vst [vmem:[#allocation2 + $0x40] sm:$0xff] %v377
  %487 = vst [vmem:[#allocation2 + $0x48] sm:$0xff] %v379
  %488 = vst [vmem:[#allocation2 + $0x50] sm:$0xff] %v450
  %489 = vst [vmem:[#allocation2 + $0x58] sm:$0xff] %v452
  %490 = vst [vmem:[#allocation2 + $0x60] sm:$0xff] %v381
  %491 = vst [vmem:[#allocation2 + $0x68] sm:$0xff] %v383
  %492 = vst [vmem:[#allocation2 + $0x70] sm:$0xff] %v454
  %493 = vst [vmem:[#allocation2 + $0x78] sm:$0xff] %v456
  %494 = vst [vmem:[#allocation2 + $0x80] sm:$0xff] %v387
  %495 = vst [vmem:[#allocation2 + $0x88] sm:$0xff] %v389
  %496 = vst [vmem:[#allocation2 + $0x90] sm:$0xff] %v460
  %497 = vst [vmem:[#allocation2 + $0x98] sm:$0xff] %v462
  %498 = vst [vmem:[#allocation2 + $0xa0] sm:$0xff] %v391
  %499 = vst [vmem:[#allocation2 + $0xa8] sm:$0xff] %v393
  %500 = vst [vmem:[#allocation2 + $0xb0] sm:$0xff] %v464
  %501 = vst [vmem:[#allocation2 + $0xb8] sm:$0xff] %v466
  %502 = vst [vmem:[#allocation2 + $0xc0] sm:$0xff] %v397
  %503 = vst [vmem:[#allocation2 + $0xc8] sm:$0xff] %v399
  %504 = vst [vmem:[#allocation2 + $0xd0] sm:$0xff] %v470
  %505 = vst [vmem:[#allocation2 + $0xd8] sm:$0xff] %v472
  %506 = vst [vmem:[#allocation2 + $0xe0] sm:$0xff] %v401
  %507 = vst [vmem:[#allocation2 + $0xe8] sm:$0xff] %v403
  %508 = vst [vmem:[#allocation2 + $0xf0] sm:$0xff] %v474
  %509 = vst [vmem:[#allocation2 + $0xf8] sm:$0xff] %v476
  %v510 = vld [vmem:[%s1] sm:$0xff]
  %v511 = vld [vmem:[%s2] sm:$0xff]
  %v512 = vld [vmem:[#allocation2] sm:$0xff]
  %v513 = vld [vmem:[#allocation2 + $0x8] sm:$0xff]
  %v514 = vld [vmem:[#allocation2 + $0x10] sm:$0xff]
  %v515 = vld [vmem:[#allocation2 + $0x18] sm:$0xff]
  %v516 = vpack.c.bf16 %v510, %v510
  %v517 = vld [vmem:[%s6] sm:$0xff]
  %v518 = vld [vmem:[%s6 + $0x8] sm:$0xff]
  %v519 = vld [vmem:[%s6 + $0x10] sm:$0xff]
  %v520 = vld [vmem:[%s6 + $0x18] sm:$0xff]
  %v521 = vld [vmem:[%s6 + $0x20] sm:$0xff]
  %v522 = vld [vmem:[%s6 + $0x28] sm:$0xff]
  %v523 = vld [vmem:[%s6 + $0x30] sm:$0xff]
  %v524 = vld [vmem:[%s6 + $0x38] sm:$0xff]
  %v525 = vld [vmem:[%s6 + $0x40] sm:$0xff]
  %v526 = vld [vmem:[%s6 + $0x48] sm:$0xff]
  %v527 = vld [vmem:[%s6 + $0x50] sm:$0xff]
  %v528 = vld [vmem:[%s6 + $0x58] sm:$0xff]
  %v529 = vld [vmem:[%s6 + $0x60] sm:$0xff]
  %v530 = vld [vmem:[%s6 + $0x68] sm:$0xff]
  %v531 = vld [vmem:[%s6 + $0x70] sm:$0xff]
  %v532 = vld [vmem:[%s6 + $0x78] sm:$0xff]
  %v533 = vld [vmem:[%s6 + $0x80] sm:$0xff]
  %v534 = vld [vmem:[%s6 + $0x88] sm:$0xff]
  %v535 = vld [vmem:[%s6 + $0x90] sm:$0xff]
  %v536 = vld [vmem:[%s6 + $0x98] sm:$0xff]
  %v537 = vld [vmem:[%s6 + $0xa0] sm:$0xff]
  %v538 = vld [vmem:[%s6 + $0xa8] sm:$0xff]
  %v539 = vld [vmem:[%s6 + $0xb0] sm:$0xff]
  %v540 = vld [vmem:[%s6 + $0xb8] sm:$0xff]
  %v541 = vld [vmem:[%s6 + $0xc0] sm:$0xff]
  %v542 = vld [vmem:[%s6 + $0xc8] sm:$0xff]
  %v543 = vld [vmem:[%s6 + $0xd0] sm:$0xff]
  %v544 = vld [vmem:[%s6 + $0xd8] sm:$0xff]
  %v545 = vld [vmem:[%s6 + $0xe0] sm:$0xff]
  %v546 = vld [vmem:[%s6 + $0xe8] sm:$0xff]
  %v547 = vld [vmem:[%s6 + $0xf0] sm:$0xff]
  %v548 = vld [vmem:[%s6 + $0xf8] sm:$0xff]
  %v581 = vunpack.c.l.b16 %v517
  %v582 = vunpack.c.h.b16 %v517
  %v583 = vunpack.c.l.b16 %v518
  %v584 = vunpack.c.h.b16 %v518
  %v585 = vunpack.c.l.b16 %v519
  %v586 = vunpack.c.h.b16 %v519
  %v587 = vunpack.c.l.b16 %v520
  %v588 = vunpack.c.h.b16 %v520
  %v589 = vunpack.c.l.b16 %v521
  %v590 = vunpack.c.h.b16 %v521
  %v591 = vunpack.c.l.b16 %v522
  %v592 = vunpack.c.h.b16 %v522
  %v593 = vunpack.c.l.b16 %v523
  %v594 = vunpack.c.h.b16 %v523
  %v595 = vunpack.c.l.b16 %v524
  %v596 = vunpack.c.h.b16 %v524
  %v597 = vunpack.c.l.b16 %v525
  %v598 = vunpack.c.h.b16 %v525
  %v599 = vunpack.c.l.b16 %v526
  %v600 = vunpack.c.h.b16 %v526
  %v601 = vunpack.c.l.b16 %v527
  %v602 = vunpack.c.h.b16 %v527
  %v603 = vunpack.c.l.b16 %v528
  %v604 = vunpack.c.h.b16 %v528
  %v605 = vunpack.c.l.b16 %v529
  %v606 = vunpack.c.h.b16 %v529
  %v607 = vunpack.c.l.b16 %v530
  %v608 = vunpack.c.h.b16 %v530
  %v609 = vunpack.c.l.b16 %v531
  %v610 = vunpack.c.h.b16 %v531
  %v611 = vunpack.c.l.b16 %v532
  %v612 = vunpack.c.h.b16 %v532
  %v613 = vunpack.c.l.b16 %v533
  %v614 = vunpack.c.h.b16 %v533
  %v615 = vunpack.c.l.b16 %v534
  %v616 = vunpack.c.h.b16 %v534
  %v617 = vunpack.c.l.b16 %v535
  %v618 = vunpack.c.h.b16 %v535
  %v619 = vunpack.c.l.b16 %v536
  %v620 = vunpack.c.h.b16 %v536
  %v621 = vunpack.c.l.b16 %v537
  %v622 = vunpack.c.h.b16 %v537
  %v623 = vunpack.c.l.b16 %v538
  %v624 = vunpack.c.h.b16 %v538
  %v625 = vunpack.c.l.b16 %v539
  %v626 = vunpack.c.h.b16 %v539
  %v627 = vunpack.c.l.b16 %v540
  %v628 = vunpack.c.h.b16 %v540
  %v629 = vunpack.c.l.b16 %v541
  %v630 = vunpack.c.h.b16 %v541
  %v631 = vunpack.c.l.b16 %v542
  %v632 = vunpack.c.h.b16 %v542
  %v633 = vunpack.c.l.b16 %v543
  %v634 = vunpack.c.h.b16 %v543
  %v635 = vunpack.c.l.b16 %v544
  %v636 = vunpack.c.h.b16 %v544
  %v637 = vunpack.c.l.b16 %v545
  %v638 = vunpack.c.h.b16 %v545
  %v639 = vunpack.c.l.b16 %v546
  %v640 = vunpack.c.h.b16 %v546
  %v641 = vunpack.c.l.b16 %v547
  %v642 = vunpack.c.h.b16 %v547
  %v643 = vunpack.c.l.b16 %v548
  %v644 = vunpack.c.h.b16 %v548
  %v645 = vpack.c.b16 %v585, %v581
  %v646 = vpack.c.b16 %v586, %v582
  %v647 = vpack.c.b16 %v587, %v583
  %v648 = vpack.c.b16 %v588, %v584
  %v649 = vpack.c.b16 %v593, %v589
  %v650 = vpack.c.b16 %v594, %v590
  %v651 = vpack.c.b16 %v595, %v591
  %v652 = vpack.c.b16 %v596, %v592
  %v653 = vpack.c.b16 %v601, %v597
  %v654 = vpack.c.b16 %v602, %v598
  %v655 = vpack.c.b16 %v603, %v599
  %v656 = vpack.c.b16 %v604, %v600
  %v657 = vpack.c.b16 %v609, %v605
  %v658 = vpack.c.b16 %v610, %v606
  %v659 = vpack.c.b16 %v611, %v607
  %v660 = vpack.c.b16 %v612, %v608
  %v661 = vpack.c.b16 %v617, %v613
  %v662 = vpack.c.b16 %v618, %v614
  %v663 = vpack.c.b16 %v619, %v615
  %v664 = vpack.c.b16 %v620, %v616
  %v665 = vpack.c.b16 %v625, %v621
  %v666 = vpack.c.b16 %v626, %v622
  %v667 = vpack.c.b16 %v627, %v623
  %v668 = vpack.c.b16 %v628, %v624
  %v669 = vpack.c.b16 %v633, %v629
  %v670 = vpack.c.b16 %v634, %v630
  %v671 = vpack.c.b16 %v635, %v631
  %v672 = vpack.c.b16 %v636, %v632
  %v673 = vpack.c.b16 %v641, %v637
  %v674 = vpack.c.b16 %v642, %v638
  %v675 = vpack.c.b16 %v643, %v639
  %v676 = vpack.c.b16 %v644, %v640
  %709 = vmatprep.subr.bf16.mxu0 %v674
  %710 = vmatpush1.bf16.msra.mxu0 %v673
  %711 = vmatprep.subr.bf16.mxu0 %v670
  %712 = vmatpush1.bf16.msra.mxu0 %v669
  %713 = vmatprep.subr.bf16.mxu0 %v666
  %714 = vmatpush1.bf16.msra.mxu0 %v665
  %715 = vmatprep.subr.bf16.mxu0 %v662
  %716 = vmatpush1.bf16.msra.mxu0 %v661
  %717 = vmatprep.subr.bf16.mxu0 %v658
  %718 = vmatpush1.bf16.msra.mxu0 %v657
  %719 = vmatprep.subr.bf16.mxu0 %v654
  %720 = vmatpush1.bf16.msra.mxu0 %v653
  %721 = vmatprep.subr.bf16.mxu0 %v650
  %722 = vmatpush1.bf16.msra.mxu0 %v649
  %723 = vmatprep.subr.bf16.mxu0 %v646
  %724 = vmatpush1.bf16.msra.mxu0 %v645
  %725 = vmatprep.subr.bf16.mxu0 0
  %726 = vmatpush2.bf16.msra.mxu0 0
  %727 = vmatprep.subr.bf16.mxu0 0
  %728 = vmatpush2.bf16.msra.mxu0 0
  %729 = vmatprep.subr.bf16.mxu0 0
  %730 = vmatpush2.bf16.msra.mxu0 0
  %731 = vmatprep.subr.bf16.mxu0 0
  %732 = vmatpush2.bf16.msra.mxu0 0
  %733 = vmatprep.subr.bf16.mxu0 0
  %734 = vmatpush2.bf16.msra.mxu0 0
  %735 = vmatprep.subr.bf16.mxu0 0
  %736 = vmatpush2.bf16.msra.mxu0 0
  %737 = vmatprep.subr.bf16.mxu0 0
  %738 = vmatpush2.bf16.msra.mxu0 0
  %739 = vmatprep.subr.bf16.mxu0 0
  %740 = vmatpush2.bf16.msra.mxu0 0
  %741 = vmatprep.mubr.bf16.mxu0 0
  %742 = vmatmul.mubr.bf16.gmra.mxu0 %v516
  %v743 = vpop.f32.mrf.mxu0
  %v744 = vadd.f32 0.0, %v743
  %v745 = vpop.f32.mrf.mxu0
  %v746 = vadd.f32 0.0, %v745
  %v747 = vpop.f32.mrf.mxu0
  %v748 = vpop.f32.mrf.mxu0
  %749 = vdwg.mxu0
  %750 = vmatprep.subr.bf16.mxu0 %v676
  %751 = vmatpush1.bf16.msra.mxu0 %v675
  %752 = vmatprep.subr.bf16.mxu0 %v672
  %753 = vmatpush1.bf16.msra.mxu0 %v671
  %754 = vmatprep.subr.bf16.mxu0 %v668
  %755 = vmatpush1.bf16.msra.mxu0 %v667
  %756 = vmatprep.subr.bf16.mxu0 %v664
  %757 = vmatpush1.bf16.msra.mxu0 %v663
  %758 = vmatprep.subr.bf16.mxu0 %v660
  %759 = vmatpush1.bf16.msra.mxu0 %v659
  %760 = vmatprep.subr.bf16.mxu0 %v656
  %761 = vmatpush1.bf16.msra.mxu0 %v655
  %762 = vmatprep.subr.bf16.mxu0 %v652
  %763 = vmatpush1.bf16.msra.mxu0 %v651
  %764 = vmatprep.subr.bf16.mxu0 %v648
  %765 = vmatpush1.bf16.msra.mxu0 %v647
  %766 = vmatprep.subr.bf16.mxu0 0
  %767 = vmatpush2.bf16.msra.mxu0 0
  %768 = vmatprep.subr.bf16.mxu0 0
  %769 = vmatpush2.bf16.msra.mxu0 0
  %770 = vmatprep.subr.bf16.mxu0 0
  %771 = vmatpush2.bf16.msra.mxu0 0
  %772 = vmatprep.subr.bf16.mxu0 0
  %773 = vmatpush2.bf16.msra.mxu0 0
  %774 = vmatprep.subr.bf16.mxu0 0
  %775 = vmatpush2.bf16.msra.mxu0 0
  %776 = vmatprep.subr.bf16.mxu0 0
  %777 = vmatpush2.bf16.msra.mxu0 0
  %778 = vmatprep.subr.bf16.mxu0 0
  %779 = vmatpush2.bf16.msra.mxu0 0
  %780 = vmatprep.subr.bf16.mxu0 0
  %781 = vmatpush2.bf16.msra.mxu0 0
  %782 = vmatprep.mubr.bf16.mxu0 0
  %783 = vmatmul.mubr.bf16.gmra.mxu0 %v516
  %v784 = vpop.f32.mrf.mxu0
  %v785 = vadd.f32 0.0, %v784
  %v786 = vpop.f32.mrf.mxu0
  %v787 = vadd.f32 0.0, %v786
  %v788 = vpop.f32.mrf.mxu0
  %v789 = vpop.f32.mrf.mxu0
  %790 = vdwg.mxu0
  %v791 = vadd.f32 %v512, %v744
  %v792 = vadd.f32 %v513, %v746
  %v793 = vadd.f32 %v514, %v785
  %v794 = vadd.f32 %v515, %v787
  %v795 = vxor.u32 %v791, 2147483648
  %v796 = vxor.u32 %v792, 2147483648
  %v797 = vxor.u32 %v793, 2147483648
  %v798 = vmul.f32 %v795, 1.442695
  %v799 = vpow.pop %v798
  %v800 = vmul.f32 %v796, 1.442695
  %v801 = vpow.pop %v800
  %v802 = vmul.f32 %v797, 1.442695
  %v803 = vpow.pop %v802
  %v804 = vadd.f32 %v799, 1.0
  %v805 = vadd.f32 %v801, 1.0
  %v806 = vadd.f32 %v803, 1.0
  %v807 = vrcp.pop %v804
  %v808 = vmul.f32 1.0, %v807
  %v809 = vrcp.pop %v805
  %v810 = vmul.f32 1.0, %v809
  %v811 = vrcp.pop %v806
  %v812 = vmul.f32 1.0, %v811
  %v813 = vtanh.pop %v794
  %v814 = vmul.f32 %v810, %v511
  %v815 = vmul.f32 %v808, %v813
  %v816 = vadd.f32 %v814, %v815
  %v817 = vtanh.pop %v816
  %v818 = vmul.f32 %v812, %v817
  %819 = vst [vmem:[#allocation3] sm:$0xff] %v818
  %v820 = vld [vmem:[#allocation2 + $0x20] sm:$0xff]
  %v821 = vld [vmem:[#allocation2 + $0x28] sm:$0xff]
  %v822 = vld [vmem:[#allocation2 + $0x30] sm:$0xff]
  %v823 = vld [vmem:[#allocation2 + $0x38] sm:$0xff]
  %v824 = vpack.c.bf16 %v818, %v818
  %v825 = vld [vmem:[%s6] sm:$0xff]
  %v826 = vld [vmem:[%s6 + $0x8] sm:$0xff]
  %v827 = vld [vmem:[%s6 + $0x10] sm:$0xff]
  %v828 = vld [vmem:[%s6 + $0x18] sm:$0xff]
  %v829 = vld [vmem:[%s6 + $0x20] sm:$0xff]
  %v830 = vld [vmem:[%s6 + $0x28] sm:$0xff]
  %v831 = vld [vmem:[%s6 + $0x30] sm:$0xff]
  %v832 = vld [vmem:[%s6 + $0x38] sm:$0xff]
  %v833 = vld [vmem:[%s6 + $0x40] sm:$0xff]
  %v834 = vld [vmem:[%s6 + $0x48] sm:$0xff]
  %v835 = vld [vmem:[%s6 + $0x50] sm:$0xff]
  %v836 = vld [vmem:[%s6 + $0x58] sm:$0xff]
  %v837 = vld [vmem:[%s6 + $0x60] sm:$0xff]
  %v838 = vld [vmem:[%s6 + $0x68] sm:$0xff]
  %v839 = vld [vmem:[%s6 + $0x70] sm:$0xff]
  %v840 = vld [vmem:[%s6 + $0x78] sm:$0xff]
  %v841 = vld [vmem:[%s6 + $0x80] sm:$0xff]
  %v842 = vld [vmem:[%s6 + $0x88] sm:$0xff]
  %v843 = vld [vmem:[%s6 + $0x90] sm:$0xff]
  %v844 = vld [vmem:[%s6 + $0x98] sm:$0xff]
  %v845 = vld [vmem:[%s6 + $0xa0] sm:$0xff]
  %v846 = vld [vmem:[%s6 + $0xa8] sm:$0xff]
  %v847 = vld [vmem:[%s6 + $0xb0] sm:$0xff]
  %v848 = vld [vmem:[%s6 + $0xb8] sm:$0xff]
  %v849 = vld [vmem:[%s6 + $0xc0] sm:$0xff]
  %v850 = vld [vmem:[%s6 + $0xc8] sm:$0xff]
  %v851 = vld [vmem:[%s6 + $0xd0] sm:$0xff]
  %v852 = vld [vmem:[%s6 + $0xd8] sm:$0xff]
  %v853 = vld [vmem:[%s6 + $0xe0] sm:$0xff]
  %v854 = vld [vmem:[%s6 + $0xe8] sm:$0xff]
  %v855 = vld [vmem:[%s6 + $0xf0] sm:$0xff]
  %v856 = vld [vmem:[%s6 + $0xf8] sm:$0xff]
  %v889 = vunpack.c.l.b16 %v825
  %v890 = vunpack.c.h.b16 %v825
  %v891 = vunpack.c.l.b16 %v826
  %v892 = vunpack.c.h.b16 %v826
  %v893 = vunpack.c.l.b16 %v827
  %v894 = vunpack.c.h.b16 %v827
  %v895 = vunpack.c.l.b16 %v828
  %v896 = vunpack.c.h.b16 %v828
  %v897 = vunpack.c.l.b16 %v829
  %v898 = vunpack.c.h.b16 %v829
  %v899 = vunpack.c.l.b16 %v830
  %v900 = vunpack.c.h.b16 %v830
  %v901 = vunpack.c.l.b16 %v831
  %v902 = vunpack.c.h.b16 %v831
  %v903 = vunpack.c.l.b16 %v832
  %v904 = vunpack.c.h.b16 %v832
  %v905 = vunpack.c.l.b16 %v833
  %v906 = vunpack.c.h.b16 %v833
  %v907 = vunpack.c.l.b16 %v834
  %v908 = vunpack.c.h.b16 %v834
  %v909 = vunpack.c.l.b16 %v835
  %v910 = vunpack.c.h.b16 %v835
  %v911 = vunpack.c.l.b16 %v836
  %v912 = vunpack.c.h.b16 %v836
  %v913 = vunpack.c.l.b16 %v837
  %v914 = vunpack.c.h.b16 %v837
  %v915 = vunpack.c.l.b16 %v838
  %v916 = vunpack.c.h.b16 %v838
  %v917 = vunpack.c.l.b16 %v839
  %v918 = vunpack.c.h.b16 %v839
  %v919 = vunpack.c.l.b16 %v840
  %v920 = vunpack.c.h.b16 %v840
  %v921 = vunpack.c.l.b16 %v841
  %v922 = vunpack.c.h.b16 %v841
  %v923 = vunpack.c.l.b16 %v842
  %v924 = vunpack.c.h.b16 %v842
  %v925 = vunpack.c.l.b16 %v843
  %v926 = vunpack.c.h.b16 %v843
  %v927 = vunpack.c.l.b16 %v844
  %v928 = vunpack.c.h.b16 %v844
  %v929 = vunpack.c.l.b16 %v845
  %v930 = vunpack.c.h.b16 %v845
  %v931 = vunpack.c.l.b16 %v846
  %v932 = vunpack.c.h.b16 %v846
  %v933 = vunpack.c.l.b16 %v847
  %v934 = vunpack.c.h.b16 %v847
  %v935 = vunpack.c.l.b16 %v848
  %v936 = vunpack.c.h.b16 %v848
  %v937 = vunpack.c.l.b16 %v849
  %v938 = vunpack.c.h.b16 %v849
  %v939 = vunpack.c.l.b16 %v850
  %v940 = vunpack.c.h.b16 %v850
  %v941 = vunpack.c.l.b16 %v851
  %v942 = vunpack.c.h.b16 %v851
  %v943 = vunpack.c.l.b16 %v852
  %v944 = vunpack.c.h.b16 %v852
  %v945 = vunpack.c.l.b16 %v853
  %v946 = vunpack.c.h.b16 %v853
  %v947 = vunpack.c.l.b16 %v854
  %v948 = vunpack.c.h.b16 %v854
  %v949 = vunpack.c.l.b16 %v855
  %v950 = vunpack.c.h.b16 %v855
  %v951 = vunpack.c.l.b16 %v856
  %v952 = vunpack.c.h.b16 %v856
  %v953 = vpack.c.b16 %v893, %v889
  %v954 = vpack.c.b16 %v894, %v890
  %v955 = vpack.c.b16 %v895, %v891
  %v956 = vpack.c.b16 %v896, %v892
  %v957 = vpack.c.b16 %v901, %v897
  %v958 = vpack.c.b16 %v902, %v898
  %v959 = vpack.c.b16 %v903, %v899
  %v960 = vpack.c.b16 %v904, %v900
  %v961 = vpack.c.b16 %v909, %v905
  %v962 = vpack.c.b16 %v910, %v906
  %v963 = vpack.c.b16 %v911, %v907
  %v964 = vpack.c.b16 %v912, %v908
  %v965 = vpack.c.b16 %v917, %v913
  %v966 = vpack.c.b16 %v918, %v914
  %v967 = vpack.c.b16 %v919, %v915
  %v968 = vpack.c.b16 %v920, %v916
  %v969 = vpack.c.b16 %v925, %v921
  %v970 = vpack.c.b16 %v926, %v922
  %v971 = vpack.c.b16 %v927, %v923
  %v972 = vpack.c.b16 %v928, %v924
  %v973 = vpack.c.b16 %v933, %v929
  %v974 = vpack.c.b16 %v934, %v930
  %v975 = vpack.c.b16 %v935, %v931
  %v976 = vpack.c.b16 %v936, %v932
  %v977 = vpack.c.b16 %v941, %v937
  %v978 = vpack.c.b16 %v942, %v938
  %v979 = vpack.c.b16 %v943, %v939
  %v980 = vpack.c.b16 %v944, %v940
  %v981 = vpack.c.b16 %v949, %v945
  %v982 = vpack.c.b16 %v950, %v946
  %v983 = vpack.c.b16 %v951, %v947
  %v984 = vpack.c.b16 %v952, %v948
  %1017 = vmatprep.subr.bf16.mxu0 %v982
  %1018 = vmatpush1.bf16.msra.mxu0 %v981
  %1019 = vmatprep.subr.bf16.mxu0 %v978
  %1020 = vmatpush1.bf16.msra.mxu0 %v977
  %1021 = vmatprep.subr.bf16.mxu0 %v974
  %1022 = vmatpush1.bf16.msra.mxu0 %v973
  %1023 = vmatprep.subr.bf16.mxu0 %v970
  %1024 = vmatpush1.bf16.msra.mxu0 %v969
  %1025 = vmatprep.subr.bf16.mxu0 %v966
  %1026 = vmatpush1.bf16.msra.mxu0 %v965
  %1027 = vmatprep.subr.bf16.mxu0 %v962
  %1028 = vmatpush1.bf16.msra.mxu0 %v961
  %1029 = vmatprep.subr.bf16.mxu0 %v958
  %1030 = vmatpush1.bf16.msra.mxu0 %v957
  %1031 = vmatprep.subr.bf16.mxu0 %v954
  %1032 = vmatpush1.bf16.msra.mxu0 %v953
  %1033 = vmatprep.subr.bf16.mxu0 0
  %1034 = vmatpush2.bf16.msra.mxu0 0
  %1035 = vmatprep.subr.bf16.mxu0 0
  %1036 = vmatpush2.bf16.msra.mxu0 0
  %1037 = vmatprep.subr.bf16.mxu0 0
  %1038 = vmatpush2.bf16.msra.mxu0 0
  %1039 = vmatprep.subr.bf16.mxu0 0
  %1040 = vmatpush2.bf16.msra.mxu0 0
  %1041 = vmatprep.subr.bf16.mxu0 0
  %1042 = vmatpush2.bf16.msra.mxu0 0
  %1043 = vmatprep.subr.bf16.mxu0 0
  %1044 = vmatpush2.bf16.msra.mxu0 0
  %1045 = vmatprep.subr.bf16.mxu0 0
  %1046 = vmatpush2.bf16.msra.mxu0 0
  %1047 = vmatprep.subr.bf16.mxu0 0
  %1048 = vmatpush2.bf16.msra.mxu0 0
  %1049 = vmatprep.mubr.bf16.mxu0 0
  %1050 = vmatmul.mubr.bf16.gmra.mxu0 %v824
  %v1051 = vpop.f32.mrf.mxu0
  %v1052 = vadd.f32 0.0, %v1051
  %v1053 = vpop.f32.mrf.mxu0
  %v1054 = vadd.f32 0.0, %v1053
  %v1055 = vpop.f32.mrf.mxu0
  %v1056 = vpop.f32.mrf.mxu0
  %1057 = vdwg.mxu0
  %1058 = vmatprep.subr.bf16.mxu0 %v984
  %1059 = vmatpush1.bf16.msra.mxu0 %v983
  %1060 = vmatprep.subr.bf16.mxu0 %v980
  %1061 = vmatpush1.bf16.msra.mxu0 %v979
  %1062 = vmatprep.subr.bf16.mxu0 %v976
  %1063 = vmatpush1.bf16.msra.mxu0 %v975
  %1064 = vmatprep.subr.bf16.mxu0 %v972
  %1065 = vmatpush1.bf16.msra.mxu0 %v971
  %1066 = vmatprep.subr.bf16.mxu0 %v968
  %1067 = vmatpush1.bf16.msra.mxu0 %v967
  %1068 = vmatprep.subr.bf16.mxu0 %v964
  %1069 = vmatpush1.bf16.msra.mxu0 %v963
  %1070 = vmatprep.subr.bf16.mxu0 %v960
  %1071 = vmatpush1.bf16.msra.mxu0 %v959
  %1072 = vmatprep.subr.bf16.mxu0 %v956
  %1073 = vmatpush1.bf16.msra.mxu0 %v955
  %1074 = vmatprep.subr.bf16.mxu0 0
  %1075 = vmatpush2.bf16.msra.mxu0 0
  %1076 = vmatprep.subr.bf16.mxu0 0
  %1077 = vmatpush2.bf16.msra.mxu0 0
  %1078 = vmatprep.subr.bf16.mxu0 0
  %1079 = vmatpush2.bf16.msra.mxu0 0
  %1080 = vmatprep.subr.bf16.mxu0 0
  %1081 = vmatpush2.bf16.msra.mxu0 0
  %1082 = vmatprep.subr.bf16.mxu0 0
  %1083 = vmatpush2.bf16.msra.mxu0 0
  %1084 = vmatprep.subr.bf16.mxu0 0
  %1085 = vmatpush2.bf16.msra.mxu0 0
  %1086 = vmatprep.subr.bf16.mxu0 0
  %1087 = vmatpush2.bf16.msra.mxu0 0
  %1088 = vmatprep.subr.bf16.mxu0 0
  %1089 = vmatpush2.bf16.msra.mxu0 0
  %1090 = vmatprep.mubr.bf16.mxu0 0
  %1091 = vmatmul.mubr.bf16.gmra.mxu0 %v824
  %v1092 = vpop.f32.mrf.mxu0
  %v1093 = vadd.f32 0.0, %v1092
  %v1094 = vpop.f32.mrf.mxu0
  %v1095 = vadd.f32 0.0, %v1094
  %v1096 = vpop.f32.mrf.mxu0
  %v1097 = vpop.f32.mrf.mxu0
  %1098 = vdwg.mxu0
  %v1099 = vadd.f32 %v820, %v1052
  %v1100 = vadd.f32 %v821, %v1054
  %v1101 = vadd.f32 %v822, %v1093
  %v1102 = vadd.f32 %v823, %v1095
  %v1103 = vxor.u32 %v1099, 2147483648
  %v1104 = vxor.u32 %v1100, 2147483648
  %v1105 = vxor.u32 %v1101, 2147483648
  %v1106 = vmul.f32 %v1103, 1.442695
  %v1107 = vpow.pop %v1106
  %v1108 = vmul.f32 %v1104, 1.442695
  %v1109 = vpow.pop %v1108
  %v1110 = vmul.f32 %v1105, 1.442695
  %v1111 = vpow.pop %v1110
  %v1112 = vadd.f32 %v1107, 1.0
  %v1113 = vadd.f32 %v1109, 1.0
  %v1114 = vadd.f32 %v1111, 1.0
  %v1115 = vrcp.pop %v1112
  %v1116 = vmul.f32 1.0, %v1115
  %v1117 = vrcp.pop %v1113
  %v1118 = vmul.f32 1.0, %v1117
  %v1119 = vrcp.pop %v1114
  %v1120 = vmul.f32 1.0, %v1119
  %v1121 = vtanh.pop %v1102
  %v1122 = vmul.f32 %v1118, %v816
  %v1123 = vmul.f32 %v1116, %v1121
  %v1124 = vadd.f32 %v1122, %v1123
  %v1125 = vtanh.pop %v1124
  %v1126 = vmul.f32 %v1120, %v1125
  %1127 = vst [vmem:[#allocation3 + $0x8] sm:$0xff] %v1126
  %v1128 = vld [vmem:[#allocation2 + $0x40] sm:$0xff]
  %v1129 = vld [vmem:[#allocation2 + $0x48] sm:$0xff]
  %v1130 = vld [vmem:[#allocation2 + $0x50] sm:$0xff]
  %v1131 = vld [vmem:[#allocation2 + $0x58] sm:$0xff]
  %v1132 = vpack.c.bf16 %v1126, %v1126
  %v1133 = vld [vmem:[%s6] sm:$0xff]
  %v1134 = vld [vmem:[%s6 + $0x8] sm:$0xff]
  %v1135 = vld [vmem:[%s6 + $0x10] sm:$0xff]
  %v1136 = vld [vmem:[%s6 + $0x18] sm:$0xff]
  %v1137 = vld [vmem:[%s6 + $0x20] sm:$0xff]
  %v1138 = vld [vmem:[%s6 + $0x28] sm:$0xff]
  %v1139 = vld [vmem:[%s6 + $0x30] sm:$0xff]
  %v1140 = vld [vmem:[%s6 + $0x38] sm:$0xff]
  %v1141 = vld [vmem:[%s6 + $0x40] sm:$0xff]
  %v1142 = vld [vmem:[%s6 + $0x48] sm:$0xff]
  %v1143 = vld [vmem:[%s6 + $0x50] sm:$0xff]
  %v1144 = vld [vmem:[%s6 + $0x58] sm:$0xff]
  %v1145 = vld [vmem:[%s6 + $0x60] sm:$0xff]
  %v1146 = vld [vmem:[%s6 + $0x68] sm:$0xff]
  %v1147 = vld [vmem:[%s6 + $0x70] sm:$0xff]
  %v1148 = vld [vmem:[%s6 + $0x78] sm:$0xff]
  %v1149 = vld [vmem:[%s6 + $0x80] sm:$0xff]
  %v1150 = vld [vmem:[%s6 + $0x88] sm:$0xff]
  %v1151 = vld [vmem:[%s6 + $0x90] sm:$0xff]
  %v1152 = vld [vmem:[%s6 + $0x98] sm:$0xff]
  %v1153 = vld [vmem:[%s6 + $0xa0] sm:$0xff]
  %v1154 = vld [vmem:[%s6 + $0xa8] sm:$0xff]
  %v1155 = vld [vmem:[%s6 + $0xb0] sm:$0xff]
  %v1156 = vld [vmem:[%s6 + $0xb8] sm:$0xff]
  %v1157 = vld [vmem:[%s6 + $0xc0] sm:$0xff]
  %v1158 = vld [vmem:[%s6 + $0xc8] sm:$0xff]
  %v1159 = vld [vmem:[%s6 + $0xd0] sm:$0xff]
  %v1160 = vld [vmem:[%s6 + $0xd8] sm:$0xff]
  %v1161 = vld [vmem:[%s6 + $0xe0] sm:$0xff]
  %v1162 = vld [vmem:[%s6 + $0xe8] sm:$0xff]
  %v1163 = vld [vmem:[%s6 + $0xf0] sm:$0xff]
  %v1164 = vld [vmem:[%s6 + $0xf8] sm:$0xff]
  %v1197 = vunpack.c.l.b16 %v1133
  %v1198 = vunpack.c.h.b16 %v1133
  %v1199 = vunpack.c.l.b16 %v1134
  %v1200 = vunpack.c.h.b16 %v1134
  %v1201 = vunpack.c.l.b16 %v1135
  %v1202 = vunpack.c.h.b16 %v1135
  %v1203 = vunpack.c.l.b16 %v1136
  %v1204 = vunpack.c.h.b16 %v1136
  %v1205 = vunpack.c.l.b16 %v1137
  %v1206 = vunpack.c.h.b16 %v1137
  %v1207 = vunpack.c.l.b16 %v1138
  %v1208 = vunpack.c.h.b16 %v1138
  %v1209 = vunpack.c.l.b16 %v1139
  %v1210 = vunpack.c.h.b16 %v1139
  %v1211 = vunpack.c.l.b16 %v1140
  %v1212 = vunpack.c.h.b16 %v1140
  %v1213 = vunpack.c.l.b16 %v1141
  %v1214 = vunpack.c.h.b16 %v1141
  %v1215 = vunpack.c.l.b16 %v1142
  %v1216 = vunpack.c.h.b16 %v1142
  %v1217 = vunpack.c.l.b16 %v1143
  %v1218 = vunpack.c.h.b16 %v1143
  %v1219 = vunpack.c.l.b16 %v1144
  %v1220 = vunpack.c.h.b16 %v1144
  %v1221 = vunpack.c.l.b16 %v1145
  %v1222 = vunpack.c.h.b16 %v1145
  %v1223 = vunpack.c.l.b16 %v1146
  %v1224 = vunpack.c.h.b16 %v1146
  %v1225 = vunpack.c.l.b16 %v1147
  %v1226 = vunpack.c.h.b16 %v1147
  %v1227 = vunpack.c.l.b16 %v1148
  %v1228 = vunpack.c.h.b16 %v1148
  %v1229 = vunpack.c.l.b16 %v1149
  %v1230 = vunpack.c.h.b16 %v1149
  %v1231 = vunpack.c.l.b16 %v1150
  %v1232 = vunpack.c.h.b16 %v1150
  %v1233 = vunpack.c.l.b16 %v1151
  %v1234 = vunpack.c.h.b16 %v1151
  %v1235 = vunpack.c.l.b16 %v1152
  %v1236 = vunpack.c.h.b16 %v1152
  %v1237 = vunpack.c.l.b16 %v1153
  %v1238 = vunpack.c.h.b16 %v1153
  %v1239 = vunpack.c.l.b16 %v1154
  %v1240 = vunpack.c.h.b16 %v1154
  %v1241 = vunpack.c.l.b16 %v1155
  %v1242 = vunpack.c.h.b16 %v1155
  %v1243 = vunpack.c.l.b16 %v1156
  %v1244 = vunpack.c.h.b16 %v1156
  %v1245 = vunpack.c.l.b16 %v1157
  %v1246 = vunpack.c.h.b16 %v1157
  %v1247 = vunpack.c.l.b16 %v1158
  %v1248 = vunpack.c.h.b16 %v1158
  %v1249 = vunpack.c.l.b16 %v1159
  %v1250 = vunpack.c.h.b16 %v1159
  %v1251 = vunpack.c.l.b16 %v1160
  %v1252 = vunpack.c.h.b16 %v1160
  %v1253 = vunpack.c.l.b16 %v1161
  %v1254 = vunpack.c.h.b16 %v1161
  %v1255 = vunpack.c.l.b16 %v1162
  %v1256 = vunpack.c.h.b16 %v1162
  %v1257 = vunpack.c.l.b16 %v1163
  %v1258 = vunpack.c.h.b16 %v1163
  %v1259 = vunpack.c.l.b16 %v1164
  %v1260 = vunpack.c.h.b16 %v1164
  %v1261 = vpack.c.b16 %v1201, %v1197
  %v1262 = vpack.c.b16 %v1202, %v1198
  %v1263 = vpack.c.b16 %v1203, %v1199
  %v1264 = vpack.c.b16 %v1204, %v1200
  %v1265 = vpack.c.b16 %v1209, %v1205
  %v1266 = vpack.c.b16 %v1210, %v1206
  %v1267 = vpack.c.b16 %v1211, %v1207
  %v1268 = vpack.c.b16 %v1212, %v1208
  %v1269 = vpack.c.b16 %v1217, %v1213
  %v1270 = vpack.c.b16 %v1218, %v1214
  %v1271 = vpack.c.b16 %v1219, %v1215
  %v1272 = vpack.c.b16 %v1220, %v1216
  %v1273 = vpack.c.b16 %v1225, %v1221
  %v1274 = vpack.c.b16 %v1226, %v1222
  %v1275 = vpack.c.b16 %v1227, %v1223
  %v1276 = vpack.c.b16 %v1228, %v1224
  %v1277 = vpack.c.b16 %v1233, %v1229
  %v1278 = vpack.c.b16 %v1234, %v1230
  %v1279 = vpack.c.b16 %v1235, %v1231
  %v1280 = vpack.c.b16 %v1236, %v1232
  %v1281 = vpack.c.b16 %v1241, %v1237
  %v1282 = vpack.c.b16 %v1242, %v1238
  %v1283 = vpack.c.b16 %v1243, %v1239
  %v1284 = vpack.c.b16 %v1244, %v1240
  %v1285 = vpack.c.b16 %v1249, %v1245
  %v1286 = vpack.c.b16 %v1250, %v1246
  %v1287 = vpack.c.b16 %v1251, %v1247
  %v1288 = vpack.c.b16 %v1252, %v1248
  %v1289 = vpack.c.b16 %v1257, %v1253
  %v1290 = vpack.c.b16 %v1258, %v1254
  %v1291 = vpack.c.b16 %v1259, %v1255
  %v1292 = vpack.c.b16 %v1260, %v1256
  %1325 = vmatprep.subr.bf16.mxu0 %v1290
  %1326 = vmatpush1.bf16.msra.mxu0 %v1289
  %1327 = vmatprep.subr.bf16.mxu0 %v1286
  %1328 = vmatpush1.bf16.msra.mxu0 %v1285
  %1329 = vmatprep.subr.bf16.mxu0 %v1282
  %1330 = vmatpush1.bf16.msra.mxu0 %v1281
  %1331 = vmatprep.subr.bf16.mxu0 %v1278
  %1332 = vmatpush1.bf16.msra.mxu0 %v1277
  %1333 = vmatprep.subr.bf16.mxu0 %v1274
  %1334 = vmatpush1.bf16.msra.mxu0 %v1273
  %1335 = vmatprep.subr.bf16.mxu0 %v1270
  %1336 = vmatpush1.bf16.msra.mxu0 %v1269
  %1337 = vmatprep.subr.bf16.mxu0 %v1266
  %1338 = vmatpush1.bf16.msra.mxu0 %v1265
  %1339 = vmatprep.subr.bf16.mxu0 %v1262
  %1340 = vmatpush1.bf16.msra.mxu0 %v1261
  %1341 = vmatprep.subr.bf16.mxu0 0
  %1342 = vmatpush2.bf16.msra.mxu0 0
  %1343 = vmatprep.subr.bf16.mxu0 0
  %1344 = vmatpush2.bf16.msra.mxu0 0
  %1345 = vmatprep.subr.bf16.mxu0 0
  %1346 = vmatpush2.bf16.msra.mxu0 0
  %1347 = vmatprep.subr.bf16.mxu0 0
  %1348 = vmatpush2.bf16.msra.mxu0 0
  %1349 = vmatprep.subr.bf16.mxu0 0
  %1350 = vmatpush2.bf16.msra.mxu0 0
  %1351 = vmatprep.subr.bf16.mxu0 0
  %1352 = vmatpush2.bf16.msra.mxu0 0
  %1353 = vmatprep.subr.bf16.mxu0 0
  %1354 = vmatpush2.bf16.msra.mxu0 0
  %1355 = vmatprep.subr.bf16.mxu0 0
  %1356 = vmatpush2.bf16.msra.mxu0 0
  %1357 = vmatprep.mubr.bf16.mxu0 0
  %1358 = vmatmul.mubr.bf16.gmra.mxu0 %v1132
  %v1359 = vpop.f32.mrf.mxu0
  %v1360 = vadd.f32 0.0, %v1359
  %v1361 = vpop.f32.mrf.mxu0
  %v1362 = vadd.f32 0.0, %v1361
  %v1363 = vpop.f32.mrf.mxu0
  %v1364 = vpop.f32.mrf.mxu0
  %1365 = vdwg.mxu0
  %1366 = vmatprep.subr.bf16.mxu0 %v1292
  %1367 = vmatpush1.bf16.msra.mxu0 %v1291
  %1368 = vmatprep.subr.bf16.mxu0 %v1288
  %1369 = vmatpush1.bf16.msra.mxu0 %v1287
  %1370 = vmatprep.subr.bf16.mxu0 %v1284
  %1371 = vmatpush1.bf16.msra.mxu0 %v1283
  %1372 = vmatprep.subr.bf16.mxu0 %v1280
  %1373 = vmatpush1.bf16.msra.mxu0 %v1279
  %1374 = vmatprep.subr.bf16.mxu0 %v1276
  %1375 = vmatpush1.bf16.msra.mxu0 %v1275
  %1376 = vmatprep.subr.bf16.mxu0 %v1272
  %1377 = vmatpush1.bf16.msra.mxu0 %v1271
  %1378 = vmatprep.subr.bf16.mxu0 %v1268
  %1379 = vmatpush1.bf16.msra.mxu0 %v1267
  %1380 = vmatprep.subr.bf16.mxu0 %v1264
  %1381 = vmatpush1.bf16.msra.mxu0 %v1263
  %1382 = vmatprep.subr.bf16.mxu0 0
  %1383 = vmatpush2.bf16.msra.mxu0 0
  %1384 = vmatprep.subr.bf16.mxu0 0
  %1385 = vmatpush2.bf16.msra.mxu0 0
  %1386 = vmatprep.subr.bf16.mxu0 0
  %1387 = vmatpush2.bf16.msra.mxu0 0
  %1388 = vmatprep.subr.bf16.mxu0 0
  %1389 = vmatpush2.bf16.msra.mxu0 0
  %1390 = vmatprep.subr.bf16.mxu0 0
  %1391 = vmatpush2.bf16.msra.mxu0 0
  %1392 = vmatprep.subr.bf16.mxu0 0
  %1393 = vmatpush2.bf16.msra.mxu0 0
  %1394 = vmatprep.subr.bf16.mxu0 0
  %1395 = vmatpush2.bf16.msra.mxu0 0
  %1396 = vmatprep.subr.bf16.mxu0 0
  %1397 = vmatpush2.bf16.msra.mxu0 0
  %1398 = vmatprep.mubr.bf16.mxu0 0
  %1399 = vmatmul.mubr.bf16.gmra.mxu0 %v1132
  %v1400 = vpop.f32.mrf.mxu0
  %v1401 = vadd.f32 0.0, %v1400
  %v1402 = vpop.f32.mrf.mxu0
  %v1403 = vadd.f32 0.0, %v1402
  %v1404 = vpop.f32.mrf.mxu0
  %v1405 = vpop.f32.mrf.mxu0
  %1406 = vdwg.mxu0
  %v1407 = vadd.f32 %v1128, %v1360
  %v1408 = vadd.f32 %v1129, %v1362
  %v1409 = vadd.f32 %v1130, %v1401
  %v1410 = vadd.f32 %v1131, %v1403
  %v1411 = vxor.u32 %v1407, 2147483648
  %v1412 = vxor.u32 %v1408, 2147483648
  %v1413 = vxor.u32 %v1409, 2147483648
  %v1414 = vmul.f32 %v1411, 1.442695
  %v1415 = vpow.pop %v1414
  %v1416 = vmul.f32 %v1412, 1.442695
  %v1417 = vpow.pop %v1416
  %v1418 = vmul.f32 %v1413, 1.442695
  %v1419 = vpow.pop %v1418
  %v1420 = vadd.f32 %v1415, 1.0
  %v1421 = vadd.f32 %v1417, 1.0
  %v1422 = vadd.f32 %v1419, 1.0
  %v1423 = vrcp.pop %v1420
  %v1424 = vmul.f32 1.0, %v1423
  %v1425 = vrcp.pop %v1421
  %v1426 = vmul.f32 1.0, %v1425
  %v1427 = vrcp.pop %v1422
  %v1428 = vmul.f32 1.0, %v1427
  %v1429 = vtanh.pop %v1410
  %v1430 = vmul.f32 %v1426, %v1124
  %v1431 = vmul.f32 %v1424, %v1429
  %v1432 = vadd.f32 %v1430, %v1431
  %v1433 = vtanh.pop %v1432
  %v1434 = vmul.f32 %v1428, %v1433
  %1435 = vst [vmem:[#allocation3 + $0x10] sm:$0xff] %v1434
  %v1436 = vld [vmem:[#allocation2 + $0x60] sm:$0xff]
  %v1437 = vld [vmem:[#allocation2 + $0x68] sm:$0xff]
  %v1438 = vld [vmem:[#allocation2 + $0x70] sm:$0xff]
  %v1439 = vld [vmem:[#allocation2 + $0x78] sm:$0xff]
  %v1440 = vpack.c.bf16 %v1434, %v1434
  %v1441 = vld [vmem:[%s6] sm:$0xff]
  %v1442 = vld [vmem:[%s6 + $0x8] sm:$0xff]
  %v1443 = vld [vmem:[%s6 + $0x10] sm:$0xff]
  %v1444 = vld [vmem:[%s6 + $0x18] sm:$0xff]
  %v1445 = vld [vmem:[%s6 + $0x20] sm:$0xff]
  %v1446 = vld [vmem:[%s6 + $0x28] sm:$0xff]
  %v1447 = vld [vmem:[%s6 + $0x30] sm:$0xff]
  %v1448 = vld [vmem:[%s6 + $0x38] sm:$0xff]
  %v1449 = vld [vmem:[%s6 + $0x40] sm:$0xff]
  %v1450 = vld [vmem:[%s6 + $0x48] sm:$0xff]
  %v1451 = vld [vmem:[%s6 + $0x50] sm:$0xff]
  %v1452 = vld [vmem:[%s6 + $0x58] sm:$0xff]
  %v1453 = vld [vmem:[%s6 + $0x60] sm:$0xff]
  %v1454 = vld [vmem:[%s6 + $0x68] sm:$0xff]
  %v1455 = vld [vmem:[%s6 + $0x70] sm:$0xff]
  %v1456 = vld [vmem:[%s6 + $0x78] sm:$0xff]
  %v1457 = vld [vmem:[%s6 + $0x80] sm:$0xff]
  %v1458 = vld [vmem:[%s6 + $0x88] sm:$0xff]
  %v1459 = vld [vmem:[%s6 + $0x90] sm:$0xff]
  %v1460 = vld [vmem:[%s6 + $0x98] sm:$0xff]
  %v1461 = vld [vmem:[%s6 + $0xa0] sm:$0xff]
  %v1462 = vld [vmem:[%s6 + $0xa8] sm:$0xff]
  %v1463 = vld [vmem:[%s6 + $0xb0] sm:$0xff]
  %v1464 = vld [vmem:[%s6 + $0xb8] sm:$0xff]
  %v1465 = vld [vmem:[%s6 + $0xc0] sm:$0xff]
  %v1466 = vld [vmem:[%s6 + $0xc8] sm:$0xff]
  %v1467 = vld [vmem:[%s6 + $0xd0] sm:$0xff]
  %v1468 = vld [vmem:[%s6 + $0xd8] sm:$0xff]
  %v1469 = vld [vmem:[%s6 + $0xe0] sm:$0xff]
  %v1470 = vld [vmem:[%s6 + $0xe8] sm:$0xff]
  %v1471 = vld [vmem:[%s6 + $0xf0] sm:$0xff]
  %v1472 = vld [vmem:[%s6 + $0xf8] sm:$0xff]
  %v1505 = vunpack.c.l.b16 %v1441
  %v1506 = vunpack.c.h.b16 %v1441
  %v1507 = vunpack.c.l.b16 %v1442
  %v1508 = vunpack.c.h.b16 %v1442
  %v1509 = vunpack.c.l.b16 %v1443
  %v1510 = vunpack.c.h.b16 %v1443
  %v1511 = vunpack.c.l.b16 %v1444
  %v1512 = vunpack.c.h.b16 %v1444
  %v1513 = vunpack.c.l.b16 %v1445
  %v1514 = vunpack.c.h.b16 %v1445
  %v1515 = vunpack.c.l.b16 %v1446
  %v1516 = vunpack.c.h.b16 %v1446
  %v1517 = vunpack.c.l.b16 %v1447
  %v1518 = vunpack.c.h.b16 %v1447
  %v1519 = vunpack.c.l.b16 %v1448
  %v1520 = vunpack.c.h.b16 %v1448
  %v1521 = vunpack.c.l.b16 %v1449
  %v1522 = vunpack.c.h.b16 %v1449
  %v1523 = vunpack.c.l.b16 %v1450
  %v1524 = vunpack.c.h.b16 %v1450
  %v1525 = vunpack.c.l.b16 %v1451
  %v1526 = vunpack.c.h.b16 %v1451
  %v1527 = vunpack.c.l.b16 %v1452
  %v1528 = vunpack.c.h.b16 %v1452
  %v1529 = vunpack.c.l.b16 %v1453
  %v1530 = vunpack.c.h.b16 %v1453
  %v1531 = vunpack.c.l.b16 %v1454
  %v1532 = vunpack.c.h.b16 %v1454
  %v1533 = vunpack.c.l.b16 %v1455
  %v1534 = vunpack.c.h.b16 %v1455
  %v1535 = vunpack.c.l.b16 %v1456
  %v1536 = vunpack.c.h.b16 %v1456
  %v1537 = vunpack.c.l.b16 %v1457
  %v1538 = vunpack.c.h.b16 %v1457
  %v1539 = vunpack.c.l.b16 %v1458
  %v1540 = vunpack.c.h.b16 %v1458
  %v1541 = vunpack.c.l.b16 %v1459
  %v1542 = vunpack.c.h.b16 %v1459
  %v1543 = vunpack.c.l.b16 %v1460
  %v1544 = vunpack.c.h.b16 %v1460
  %v1545 = vunpack.c.l.b16 %v1461
  %v1546 = vunpack.c.h.b16 %v1461
  %v1547 = vunpack.c.l.b16 %v1462
  %v1548 = vunpack.c.h.b16 %v1462
  %v1549 = vunpack.c.l.b16 %v1463
  %v1550 = vunpack.c.h.b16 %v1463
  %v1551 = vunpack.c.l.b16 %v1464
  %v1552 = vunpack.c.h.b16 %v1464
  %v1553 = vunpack.c.l.b16 %v1465
  %v1554 = vunpack.c.h.b16 %v1465
  %v1555 = vunpack.c.l.b16 %v1466
  %v1556 = vunpack.c.h.b16 %v1466
  %v1557 = vunpack.c.l.b16 %v1467
  %v1558 = vunpack.c.h.b16 %v1467
  %v1559 = vunpack.c.l.b16 %v1468
  %v1560 = vunpack.c.h.b16 %v1468
  %v1561 = vunpack.c.l.b16 %v1469
  %v1562 = vunpack.c.h.b16 %v1469
  %v1563 = vunpack.c.l.b16 %v1470
  %v1564 = vunpack.c.h.b16 %v1470
  %v1565 = vunpack.c.l.b16 %v1471
  %v1566 = vunpack.c.h.b16 %v1471
  %v1567 = vunpack.c.l.b16 %v1472
  %v1568 = vunpack.c.h.b16 %v1472
  %v1569 = vpack.c.b16 %v1509, %v1505
  %v1570 = vpack.c.b16 %v1510, %v1506
  %v1571 = vpack.c.b16 %v1511, %v1507
  %v1572 = vpack.c.b16 %v1512, %v1508
  %v1573 = vpack.c.b16 %v1517, %v1513
  %v1574 = vpack.c.b16 %v1518, %v1514
  %v1575 = vpack.c.b16 %v1519, %v1515
  %v1576 = vpack.c.b16 %v1520, %v1516
  %v1577 = vpack.c.b16 %v1525, %v1521
  %v1578 = vpack.c.b16 %v1526, %v1522
  %v1579 = vpack.c.b16 %v1527, %v1523
  %v1580 = vpack.c.b16 %v1528, %v1524
  %v1581 = vpack.c.b16 %v1533, %v1529
  %v1582 = vpack.c.b16 %v1534, %v1530
  %v1583 = vpack.c.b16 %v1535, %v1531
  %v1584 = vpack.c.b16 %v1536, %v1532
  %v1585 = vpack.c.b16 %v1541, %v1537
  %v1586 = vpack.c.b16 %v1542, %v1538
  %v1587 = vpack.c.b16 %v1543, %v1539
  %v1588 = vpack.c.b16 %v1544, %v1540
  %v1589 = vpack.c.b16 %v1549, %v1545
  %v1590 = vpack.c.b16 %v1550, %v1546
  %v1591 = vpack.c.b16 %v1551, %v1547
  %v1592 = vpack.c.b16 %v1552, %v1548
  %v1593 = vpack.c.b16 %v1557, %v1553
  %v1594 = vpack.c.b16 %v1558, %v1554
  %v1595 = vpack.c.b16 %v1559, %v1555
  %v1596 = vpack.c.b16 %v1560, %v1556
  %v1597 = vpack.c.b16 %v1565, %v1561
  %v1598 = vpack.c.b16 %v1566, %v1562
  %v1599 = vpack.c.b16 %v1567, %v1563
  %v1600 = vpack.c.b16 %v1568, %v1564
  %1633 = vmatprep.subr.bf16.mxu0 %v1598
  %1634 = vmatpush1.bf16.msra.mxu0 %v1597
  %1635 = vmatprep.subr.bf16.mxu0 %v1594
  %1636 = vmatpush1.bf16.msra.mxu0 %v1593
  %1637 = vmatprep.subr.bf16.mxu0 %v1590
  %1638 = vmatpush1.bf16.msra.mxu0 %v1589
  %1639 = vmatprep.subr.bf16.mxu0 %v1586
  %1640 = vmatpush1.bf16.msra.mxu0 %v1585
  %1641 = vmatprep.subr.bf16.mxu0 %v1582
  %1642 = vmatpush1.bf16.msra.mxu0 %v1581
  %1643 = vmatprep.subr.bf16.mxu0 %v1578
  %1644 = vmatpush1.bf16.msra.mxu0 %v1577
  %1645 = vmatprep.subr.bf16.mxu0 %v1574
  %1646 = vmatpush1.bf16.msra.mxu0 %v1573
  %1647 = vmatprep.subr.bf16.mxu0 %v1570
  %1648 = vmatpush1.bf16.msra.mxu0 %v1569
  %1649 = vmatprep.subr.bf16.mxu0 0
  %1650 = vmatpush2.bf16.msra.mxu0 0
  %1651 = vmatprep.subr.bf16.mxu0 0
  %1652 = vmatpush2.bf16.msra.mxu0 0
  %1653 = vmatprep.subr.bf16.mxu0 0
  %1654 = vmatpush2.bf16.msra.mxu0 0
  %1655 = vmatprep.subr.bf16.mxu0 0
  %1656 = vmatpush2.bf16.msra.mxu0 0
  %1657 = vmatprep.subr.bf16.mxu0 0
  %1658 = vmatpush2.bf16.msra.mxu0 0
  %1659 = vmatprep.subr.bf16.mxu0 0
  %1660 = vmatpush2.bf16.msra.mxu0 0
  %1661 = vmatprep.subr.bf16.mxu0 0
  %1662 = vmatpush2.bf16.msra.mxu0 0
  %1663 = vmatprep.subr.bf16.mxu0 0
  %1664 = vmatpush2.bf16.msra.mxu0 0
  %1665 = vmatprep.mubr.bf16.mxu0 0
  %1666 = vmatmul.mubr.bf16.gmra.mxu0 %v1440
  %v1667 = vpop.f32.mrf.mxu0
  %v1668 = vadd.f32 0.0, %v1667
  %v1669 = vpop.f32.mrf.mxu0
  %v1670 = vadd.f32 0.0, %v1669
  %v1671 = vpop.f32.mrf.mxu0
  %v1672 = vpop.f32.mrf.mxu0
  %1673 = vdwg.mxu0
  %1674 = vmatprep.subr.bf16.mxu0 %v1600
  %1675 = vmatpush1.bf16.msra.mxu0 %v1599
  %1676 = vmatprep.subr.bf16.mxu0 %v1596
  %1677 = vmatpush1.bf16.msra.mxu0 %v1595
  %1678 = vmatprep.subr.bf16.mxu0 %v1592
  %1679 = vmatpush1.bf16.msra.mxu0 %v1591
  %1680 = vmatprep.subr.bf16.mxu0 %v1588
  %1681 = vmatpush1.bf16.msra.mxu0 %v1587
  %1682 = vmatprep.subr.bf16.mxu0 %v1584
  %1683 = vmatpush1.bf16.msra.mxu0 %v1583
  %1684 = vmatprep.subr.bf16.mxu0 %v1580
  %1685 = vmatpush1.bf16.msra.mxu0 %v1579
  %1686 = vmatprep.subr.bf16.mxu0 %v1576
  %1687 = vmatpush1.bf16.msra.mxu0 %v1575
  %1688 = vmatprep.subr.bf16.mxu0 %v1572
  %1689 = vmatpush1.bf16.msra.mxu0 %v1571
  %1690 = vmatprep.subr.bf16.mxu0 0
  %1691 = vmatpush2.bf16.msra.mxu0 0
  %1692 = vmatprep.subr.bf16.mxu0 0
  %1693 = vmatpush2.bf16.msra.mxu0 0
  %1694 = vmatprep.subr.bf16.mxu0 0
  %1695 = vmatpush2.bf16.msra.mxu0 0
  %1696 = vmatprep.subr.bf16.mxu0 0
  %1697 = vmatpush2.bf16.msra.mxu0 0
  %1698 = vmatprep.subr.bf16.mxu0 0
  %1699 = vmatpush2.bf16.msra.mxu0 0
  %1700 = vmatprep.subr.bf16.mxu0 0
  %1701 = vmatpush2.bf16.msra.mxu0 0
  %1702 = vmatprep.subr.bf16.mxu0 0
  %1703 = vmatpush2.bf16.msra.mxu0 0
  %1704 = vmatprep.subr.bf16.mxu0 0
  %1705 = vmatpush2.bf16.msra.mxu0 0
  %1706 = vmatprep.mubr.bf16.mxu0 0
  %1707 = vmatmul.mubr.bf16.gmra.mxu0 %v1440
  %v1708 = vpop.f32.mrf.mxu0
  %v1709 = vadd.f32 0.0, %v1708
  %v1710 = vpop.f32.mrf.mxu0
  %v1711 = vadd.f32 0.0, %v1710
  %v1712 = vpop.f32.mrf.mxu0
  %v1713 = vpop.f32.mrf.mxu0
  %1714 = vdwg.mxu0
  %v1715 = vadd.f32 %v1436, %v1668
  %v1716 = vadd.f32 %v1437, %v1670
  %v1717 = vadd.f32 %v1438, %v1709
  %v1718 = vadd.f32 %v1439, %v1711
  %v1719 = vxor.u32 %v1715, 2147483648
  %v1720 = vxor.u32 %v1716, 2147483648
  %v1721 = vxor.u32 %v1717, 2147483648
  %v1722 = vmul.f32 %v1719, 1.442695
  %v1723 = vpow.pop %v1722
  %v1724 = vmul.f32 %v1720, 1.442695
  %v1725 = vpow.pop %v1724
  %v1726 = vmul.f32 %v1721, 1.442695
  %v1727 = vpow.pop %v1726
  %v1728 = vadd.f32 %v1723, 1.0
  %v1729 = vadd.f32 %v1725, 1.0
  %v1730 = vadd.f32 %v1727, 1.0
  %v1731 = vrcp.pop %v1728
  %v1732 = vmul.f32 1.0, %v1731
  %v1733 = vrcp.pop %v1729
  %v1734 = vmul.f32 1.0, %v1733
  %v1735 = vrcp.pop %v1730
  %v1736 = vmul.f32 1.0, %v1735
  %v1737 = vtanh.pop %v1718
  %v1738 = vmul.f32 %v1734, %v1432
  %v1739 = vmul.f32 %v1732, %v1737
  %v1740 = vadd.f32 %v1738, %v1739
  %v1741 = vtanh.pop %v1740
  %v1742 = vmul.f32 %v1736, %v1741
  %1743 = vst [vmem:[#allocation3 + $0x18] sm:$0xff] %v1742
  %v1744 = vld [vmem:[#allocation2 + $0x80] sm:$0xff]
  %v1745 = vld [vmem:[#allocation2 + $0x88] sm:$0xff]
  %v1746 = vld [vmem:[#allocation2 + $0x90] sm:$0xff]
  %v1747 = vld [vmem:[#allocation2 + $0x98] sm:$0xff]
  %v1748 = vpack.c.bf16 %v1742, %v1742
  %v1749 = vld [vmem:[%s6] sm:$0xff]
  %v1750 = vld [vmem:[%s6 + $0x8] sm:$0xff]
  %v1751 = vld [vmem:[%s6 + $0x10] sm:$0xff]
  %v1752 = vld [vmem:[%s6 + $0x18] sm:$0xff]
  %v1753 = vld [vmem:[%s6 + $0x20] sm:$0xff]
  %v1754 = vld [vmem:[%s6 + $0x28] sm:$0xff]
  %v1755 = vld [vmem:[%s6 + $0x30] sm:$0xff]
  %v1756 = vld [vmem:[%s6 + $0x38] sm:$0xff]
  %v1757 = vld [vmem:[%s6 + $0x40] sm:$0xff]
  %v1758 = vld [vmem:[%s6 + $0x48] sm:$0xff]
  %v1759 = vld [vmem:[%s6 + $0x50] sm:$0xff]
  %v1760 = vld [vmem:[%s6 + $0x58] sm:$0xff]
  %v1761 = vld [vmem:[%s6 + $0x60] sm:$0xff]
  %v1762 = vld [vmem:[%s6 + $0x68] sm:$0xff]
  %v1763 = vld [vmem:[%s6 + $0x70] sm:$0xff]
  %v1764 = vld [vmem:[%s6 + $0x78] sm:$0xff]
  %v1765 = vld [vmem:[%s6 + $0x80] sm:$0xff]
  %v1766 = vld [vmem:[%s6 + $0x88] sm:$0xff]
  %v1767 = vld [vmem:[%s6 + $0x90] sm:$0xff]
  %v1768 = vld [vmem:[%s6 + $0x98] sm:$0xff]
  %v1769 = vld [vmem:[%s6 + $0xa0] sm:$0xff]
  %v1770 = vld [vmem:[%s6 + $0xa8] sm:$0xff]
  %v1771 = vld [vmem:[%s6 + $0xb0] sm:$0xff]
  %v1772 = vld [vmem:[%s6 + $0xb8] sm:$0xff]
  %v1773 = vld [vmem:[%s6 + $0xc0] sm:$0xff]
  %v1774 = vld [vmem:[%s6 + $0xc8] sm:$0xff]
  %v1775 = vld [vmem:[%s6 + $0xd0] sm:$0xff]
  %v1776 = vld [vmem:[%s6 + $0xd8] sm:$0xff]
  %v1777 = vld [vmem:[%s6 + $0xe0] sm:$0xff]
  %v1778 = vld [vmem:[%s6 + $0xe8] sm:$0xff]
  %v1779 = vld [vmem:[%s6 + $0xf0] sm:$0xff]
  %v1780 = vld [vmem:[%s6 + $0xf8] sm:$0xff]
  %v1813 = vunpack.c.l.b16 %v1749
  %v1814 = vunpack.c.h.b16 %v1749
  %v1815 = vunpack.c.l.b16 %v1750
  %v1816 = vunpack.c.h.b16 %v1750
  %v1817 = vunpack.c.l.b16 %v1751
  %v1818 = vunpack.c.h.b16 %v1751
  %v1819 = vunpack.c.l.b16 %v1752
  %v1820 = vunpack.c.h.b16 %v1752
  %v1821 = vunpack.c.l.b16 %v1753
  %v1822 = vunpack.c.h.b16 %v1753
  %v1823 = vunpack.c.l.b16 %v1754
  %v1824 = vunpack.c.h.b16 %v1754
  %v1825 = vunpack.c.l.b16 %v1755
  %v1826 = vunpack.c.h.b16 %v1755
  %v1827 = vunpack.c.l.b16 %v1756
  %v1828 = vunpack.c.h.b16 %v1756
  %v1829 = vunpack.c.l.b16 %v1757
  %v1830 = vunpack.c.h.b16 %v1757
  %v1831 = vunpack.c.l.b16 %v1758
  %v1832 = vunpack.c.h.b16 %v1758
  %v1833 = vunpack.c.l.b16 %v1759
  %v1834 = vunpack.c.h.b16 %v1759
  %v1835 = vunpack.c.l.b16 %v1760
  %v1836 = vunpack.c.h.b16 %v1760
  %v1837 = vunpack.c.l.b16 %v1761
  %v1838 = vunpack.c.h.b16 %v1761
  %v1839 = vunpack.c.l.b16 %v1762
  %v1840 = vunpack.c.h.b16 %v1762
  %v1841 = vunpack.c.l.b16 %v1763
  %v1842 = vunpack.c.h.b16 %v1763
  %v1843 = vunpack.c.l.b16 %v1764
  %v1844 = vunpack.c.h.b16 %v1764
  %v1845 = vunpack.c.l.b16 %v1765
  %v1846 = vunpack.c.h.b16 %v1765
  %v1847 = vunpack.c.l.b16 %v1766
  %v1848 = vunpack.c.h.b16 %v1766
  %v1849 = vunpack.c.l.b16 %v1767
  %v1850 = vunpack.c.h.b16 %v1767
  %v1851 = vunpack.c.l.b16 %v1768
  %v1852 = vunpack.c.h.b16 %v1768
  %v1853 = vunpack.c.l.b16 %v1769
  %v1854 = vunpack.c.h.b16 %v1769
  %v1855 = vunpack.c.l.b16 %v1770
  %v1856 = vunpack.c.h.b16 %v1770
  %v1857 = vunpack.c.l.b16 %v1771
  %v1858 = vunpack.c.h.b16 %v1771
  %v1859 = vunpack.c.l.b16 %v1772
  %v1860 = vunpack.c.h.b16 %v1772
  %v1861 = vunpack.c.l.b16 %v1773
  %v1862 = vunpack.c.h.b16 %v1773
  %v1863 = vunpack.c.l.b16 %v1774
  %v1864 = vunpack.c.h.b16 %v1774
  %v1865 = vunpack.c.l.b16 %v1775
  %v1866 = vunpack.c.h.b16 %v1775
  %v1867 = vunpack.c.l.b16 %v1776
  %v1868 = vunpack.c.h.b16 %v1776
  %v1869 = vunpack.c.l.b16 %v1777
  %v1870 = vunpack.c.h.b16 %v1777
  %v1871 = vunpack.c.l.b16 %v1778
  %v1872 = vunpack.c.h.b16 %v1778
  %v1873 = vunpack.c.l.b16 %v1779
  %v1874 = vunpack.c.h.b16 %v1779
  %v1875 = vunpack.c.l.b16 %v1780
  %v1876 = vunpack.c.h.b16 %v1780
  %v1877 = vpack.c.b16 %v1817, %v1813
  %v1878 = vpack.c.b16 %v1818, %v1814
  %v1879 = vpack.c.b16 %v1819, %v1815
  %v1880 = vpack.c.b16 %v1820, %v1816
  %v1881 = vpack.c.b16 %v1825, %v1821
  %v1882 = vpack.c.b16 %v1826, %v1822
  %v1883 = vpack.c.b16 %v1827, %v1823
  %v1884 = vpack.c.b16 %v1828, %v1824
  %v1885 = vpack.c.b16 %v1833, %v1829
  %v1886 = vpack.c.b16 %v1834, %v1830
  %v1887 = vpack.c.b16 %v1835, %v1831
  %v1888 = vpack.c.b16 %v1836, %v1832
  %v1889 = vpack.c.b16 %v1841, %v1837
  %v1890 = vpack.c.b16 %v1842, %v1838
  %v1891 = vpack.c.b16 %v1843, %v1839
  %v1892 = vpack.c.b16 %v1844, %v1840
  %v1893 = vpack.c.b16 %v1849, %v1845
  %v1894 = vpack.c.b16 %v1850, %v1846
  %v1895 = vpack.c.b16 %v1851, %v1847
  %v1896 = vpack.c.b16 %v1852, %v1848
  %v1897 = vpack.c.b16 %v1857, %v1853
  %v1898 = vpack.c.b16 %v1858, %v1854
  %v1899 = vpack.c.b16 %v1859, %v1855
  %v1900 = vpack.c.b16 %v1860, %v1856
  %v1901 = vpack.c.b16 %v1865, %v1861
  %v1902 = vpack.c.b16 %v1866, %v1862
  %v1903 = vpack.c.b16 %v1867, %v1863
  %v1904 = vpack.c.b16 %v1868, %v1864
  %v1905 = vpack.c.b16 %v1873, %v1869
  %v1906 = vpack.c.b16 %v1874, %v1870
  %v1907 = vpack.c.b16 %v1875, %v1871
  %v1908 = vpack.c.b16 %v1876, %v1872
  %1941 = vmatprep.subr.bf16.mxu0 %v1906
  %1942 = vmatpush1.bf16.msra.mxu0 %v1905
  %1943 = vmatprep.subr.bf16.mxu0 %v1902
  %1944 = vmatpush1.bf16.msra.mxu0 %v1901
  %1945 = vmatprep.subr.bf16.mxu0 %v1898
  %1946 = vmatpush1.bf16.msra.mxu0 %v1897
  %1947 = vmatprep.subr.bf16.mxu0 %v1894
  %1948 = vmatpush1.bf16.msra.mxu0 %v1893
  %1949 = vmatprep.subr.bf16.mxu0 %v1890
  %1950 = vmatpush1.bf16.msra.mxu0 %v1889
  %1951 = vmatprep.subr.bf16.mxu0 %v1886
  %1952 = vmatpush1.bf16.msra.mxu0 %v1885
  %1953 = vmatprep.subr.bf16.mxu0 %v1882
  %1954 = vmatpush1.bf16.msra.mxu0 %v1881
  %1955 = vmatprep.subr.bf16.mxu0 %v1878
  %1956 = vmatpush1.bf16.msra.mxu0 %v1877
  %1957 = vmatprep.subr.bf16.mxu0 0
  %1958 = vmatpush2.bf16.msra.mxu0 0
  %1959 = vmatprep.subr.bf16.mxu0 0
  %1960 = vmatpush2.bf16.msra.mxu0 0
  %1961 = vmatprep.subr.bf16.mxu0 0
  %1962 = vmatpush2.bf16.msra.mxu0 0
  %1963 = vmatprep.subr.bf16.mxu0 0
  %1964 = vmatpush2.bf16.msra.mxu0 0
  %1965 = vmatprep.subr.bf16.mxu0 0
  %1966 = vmatpush2.bf16.msra.mxu0 0
  %1967 = vmatprep.subr.bf16.mxu0 0
  %1968 = vmatpush2.bf16.msra.mxu0 0
  %1969 = vmatprep.subr.bf16.mxu0 0
  %1970 = vmatpush2.bf16.msra.mxu0 0
  %1971 = vmatprep.subr.bf16.mxu0 0
  %1972 = vmatpush2.bf16.msra.mxu0 0
  %1973 = vmatprep.mubr.bf16.mxu0 0
  %1974 = vmatmul.mubr.bf16.gmra.mxu0 %v1748
  %v1975 = vpop.f32.mrf.mxu0
  %v1976 = vadd.f32 0.0, %v1975
  %v1977 = vpop.f32.mrf.mxu0
  %v1978 = vadd.f32 0.0, %v1977
  %v1979 = vpop.f32.mrf.mxu0
  %v1980 = vpop.f32.mrf.mxu0
  %1981 = vdwg.mxu0
  %1982 = vmatprep.subr.bf16.mxu0 %v1908
  %1983 = vmatpush1.bf16.msra.mxu0 %v1907
  %1984 = vmatprep.subr.bf16.mxu0 %v1904
  %1985 = vmatpush1.bf16.msra.mxu0 %v1903
  %1986 = vmatprep.subr.bf16.mxu0 %v1900
  %1987 = vmatpush1.bf16.msra.mxu0 %v1899
  %1988 = vmatprep.subr.bf16.mxu0 %v1896
  %1989 = vmatpush1.bf16.msra.mxu0 %v1895
  %1990 = vmatprep.subr.bf16.mxu0 %v1892
  %1991 = vmatpush1.bf16.msra.mxu0 %v1891
  %1992 = vmatprep.subr.bf16.mxu0 %v1888
  %1993 = vmatpush1.bf16.msra.mxu0 %v1887
  %1994 = vmatprep.subr.bf16.mxu0 %v1884
  %1995 = vmatpush1.bf16.msra.mxu0 %v1883
  %1996 = vmatprep.subr.bf16.mxu0 %v1880
  %1997 = vmatpush1.bf16.msra.mxu0 %v1879
  %1998 = vmatprep.subr.bf16.mxu0 0
  %1999 = vmatpush2.bf16.msra.mxu0 0
  %2000 = vmatprep.subr.bf16.mxu0 0
  %2001 = vmatpush2.bf16.msra.mxu0 0
  %2002 = vmatprep.subr.bf16.mxu0 0
  %2003 = vmatpush2.bf16.msra.mxu0 0
  %2004 = vmatprep.subr.bf16.mxu0 0
  %2005 = vmatpush2.bf16.msra.mxu0 0
  %2006 = vmatprep.subr.bf16.mxu0 0
  %2007 = vmatpush2.bf16.msra.mxu0 0
  %2008 = vmatprep.subr.bf16.mxu0 0
  %2009 = vmatpush2.bf16.msra.mxu0 0
  %2010 = vmatprep.subr.bf16.mxu0 0
  %2011 = vmatpush2.bf16.msra.mxu0 0
  %2012 = vmatprep.subr.bf16.mxu0 0
  %2013 = vmatpush2.bf16.msra.mxu0 0
  %2014 = vmatprep.mubr.bf16.mxu0 0
  %2015 = vmatmul.mubr.bf16.gmra.mxu0 %v1748
  %v2016 = vpop.f32.mrf.mxu0
  %v2017 = vadd.f32 0.0, %v2016
  %v2018 = vpop.f32.mrf.mxu0
  %v2019 = vadd.f32 0.0, %v2018
  %v2020 = vpop.f32.mrf.mxu0
  %v2021 = vpop.f32.mrf.mxu0
  %2022 = vdwg.mxu0
  %v2023 = vadd.f32 %v1744, %v1976
  %v2024 = vadd.f32 %v1745, %v1978
  %v2025 = vadd.f32 %v1746, %v2017
  %v2026 = vadd.f32 %v1747, %v2019
  %v2027 = vxor.u32 %v2023, 2147483648
  %v2028 = vxor.u32 %v2024, 2147483648
  %v2029 = vxor.u32 %v2025, 2147483648
  %v2030 = vmul.f32 %v2027, 1.442695
  %v2031 = vpow.pop %v2030
  %v2032 = vmul.f32 %v2028, 1.442695
  %v2033 = vpow.pop %v2032
  %v2034 = vmul.f32 %v2029, 1.442695
  %v2035 = vpow.pop %v2034
  %v2036 = vadd.f32 %v2031, 1.0
  %v2037 = vadd.f32 %v2033, 1.0
  %v2038 = vadd.f32 %v2035, 1.0
  %v2039 = vrcp.pop %v2036
  %v2040 = vmul.f32 1.0, %v2039
  %v2041 = vrcp.pop %v2037
  %v2042 = vmul.f32 1.0, %v2041
  %v2043 = vrcp.pop %v2038
  %v2044 = vmul.f32 1.0, %v2043
  %v2045 = vtanh.pop %v2026
  %v2046 = vmul.f32 %v2042, %v1740
  %v2047 = vmul.f32 %v2040, %v2045
  %v2048 = vadd.f32 %v2046, %v2047
  %v2049 = vtanh.pop %v2048
  %v2050 = vmul.f32 %v2044, %v2049
  %2051 = vst [vmem:[#allocation3 + $0x20] sm:$0xff] %v2050
  %v2052 = vld [vmem:[#allocation2 + $0xa0] sm:$0xff]
  %v2053 = vld [vmem:[#allocation2 + $0xa8] sm:$0xff]
  %v2054 = vld [vmem:[#allocation2 + $0xb0] sm:$0xff]
  %v2055 = vld [vmem:[#allocation2 + $0xb8] sm:$0xff]
  %v2056 = vpack.c.bf16 %v2050, %v2050
  %v2057 = vld [vmem:[%s6] sm:$0xff]
  %v2058 = vld [vmem:[%s6 + $0x8] sm:$0xff]
  %v2059 = vld [vmem:[%s6 + $0x10] sm:$0xff]
  %v2060 = vld [vmem:[%s6 + $0x18] sm:$0xff]
  %v2061 = vld [vmem:[%s6 + $0x20] sm:$0xff]
  %v2062 = vld [vmem:[%s6 + $0x28] sm:$0xff]
  %v2063 = vld [vmem:[%s6 + $0x30] sm:$0xff]
  %v2064 = vld [vmem:[%s6 + $0x38] sm:$0xff]
  %v2065 = vld [vmem:[%s6 + $0x40] sm:$0xff]
  %v2066 = vld [vmem:[%s6 + $0x48] sm:$0xff]
  %v2067 = vld [vmem:[%s6 + $0x50] sm:$0xff]
  %v2068 = vld [vmem:[%s6 + $0x58] sm:$0xff]
  %v2069 = vld [vmem:[%s6 + $0x60] sm:$0xff]
  %v2070 = vld [vmem:[%s6 + $0x68] sm:$0xff]
  %v2071 = vld [vmem:[%s6 + $0x70] sm:$0xff]
  %v2072 = vld [vmem:[%s6 + $0x78] sm:$0xff]
  %v2073 = vld [vmem:[%s6 + $0x80] sm:$0xff]
  %v2074 = vld [vmem:[%s6 + $0x88] sm:$0xff]
  %v2075 = vld [vmem:[%s6 + $0x90] sm:$0xff]
  %v2076 = vld [vmem:[%s6 + $0x98] sm:$0xff]
  %v2077 = vld [vmem:[%s6 + $0xa0] sm:$0xff]
  %v2078 = vld [vmem:[%s6 + $0xa8] sm:$0xff]
  %v2079 = vld [vmem:[%s6 + $0xb0] sm:$0xff]
  %v2080 = vld [vmem:[%s6 + $0xb8] sm:$0xff]
  %v2081 = vld [vmem:[%s6 + $0xc0] sm:$0xff]
  %v2082 = vld [vmem:[%s6 + $0xc8] sm:$0xff]
  %v2083 = vld [vmem:[%s6 + $0xd0] sm:$0xff]
  %v2084 = vld [vmem:[%s6 + $0xd8] sm:$0xff]
  %v2085 = vld [vmem:[%s6 + $0xe0] sm:$0xff]
  %v2086 = vld [vmem:[%s6 + $0xe8] sm:$0xff]
  %v2087 = vld [vmem:[%s6 + $0xf0] sm:$0xff]
  %v2088 = vld [vmem:[%s6 + $0xf8] sm:$0xff]
  %v2121 = vunpack.c.l.b16 %v2057
  %v2122 = vunpack.c.h.b16 %v2057
  %v2123 = vunpack.c.l.b16 %v2058
  %v2124 = vunpack.c.h.b16 %v2058
  %v2125 = vunpack.c.l.b16 %v2059
  %v2126 = vunpack.c.h.b16 %v2059
  %v2127 = vunpack.c.l.b16 %v2060
  %v2128 = vunpack.c.h.b16 %v2060
  %v2129 = vunpack.c.l.b16 %v2061
  %v2130 = vunpack.c.h.b16 %v2061
  %v2131 = vunpack.c.l.b16 %v2062
  %v2132 = vunpack.c.h.b16 %v2062
  %v2133 = vunpack.c.l.b16 %v2063
  %v2134 = vunpack.c.h.b16 %v2063
  %v2135 = vunpack.c.l.b16 %v2064
  %v2136 = vunpack.c.h.b16 %v2064
  %v2137 = vunpack.c.l.b16 %v2065
  %v2138 = vunpack.c.h.b16 %v2065
  %v2139 = vunpack.c.l.b16 %v2066
  %v2140 = vunpack.c.h.b16 %v2066
  %v2141 = vunpack.c.l.b16 %v2067
  %v2142 = vunpack.c.h.b16 %v2067
  %v2143 = vunpack.c.l.b16 %v2068
  %v2144 = vunpack.c.h.b16 %v2068
  %v2145 = vunpack.c.l.b16 %v2069
  %v2146 = vunpack.c.h.b16 %v2069
  %v2147 = vunpack.c.l.b16 %v2070
  %v2148 = vunpack.c.h.b16 %v2070
  %v2149 = vunpack.c.l.b16 %v2071
  %v2150 = vunpack.c.h.b16 %v2071
  %v2151 = vunpack.c.l.b16 %v2072
  %v2152 = vunpack.c.h.b16 %v2072
  %v2153 = vunpack.c.l.b16 %v2073
  %v2154 = vunpack.c.h.b16 %v2073
  %v2155 = vunpack.c.l.b16 %v2074
  %v2156 = vunpack.c.h.b16 %v2074
  %v2157 = vunpack.c.l.b16 %v2075
  %v2158 = vunpack.c.h.b16 %v2075
  %v2159 = vunpack.c.l.b16 %v2076
  %v2160 = vunpack.c.h.b16 %v2076
  %v2161 = vunpack.c.l.b16 %v2077
  %v2162 = vunpack.c.h.b16 %v2077
  %v2163 = vunpack.c.l.b16 %v2078
  %v2164 = vunpack.c.h.b16 %v2078
  %v2165 = vunpack.c.l.b16 %v2079
  %v2166 = vunpack.c.h.b16 %v2079
  %v2167 = vunpack.c.l.b16 %v2080
  %v2168 = vunpack.c.h.b16 %v2080
  %v2169 = vunpack.c.l.b16 %v2081
  %v2170 = vunpack.c.h.b16 %v2081
  %v2171 = vunpack.c.l.b16 %v2082
  %v2172 = vunpack.c.h.b16 %v2082
  %v2173 = vunpack.c.l.b16 %v2083
  %v2174 = vunpack.c.h.b16 %v2083
  %v2175 = vunpack.c.l.b16 %v2084
  %v2176 = vunpack.c.h.b16 %v2084
  %v2177 = vunpack.c.l.b16 %v2085
  %v2178 = vunpack.c.h.b16 %v2085
  %v2179 = vunpack.c.l.b16 %v2086
  %v2180 = vunpack.c.h.b16 %v2086
  %v2181 = vunpack.c.l.b16 %v2087
  %v2182 = vunpack.c.h.b16 %v2087
  %v2183 = vunpack.c.l.b16 %v2088
  %v2184 = vunpack.c.h.b16 %v2088
  %v2185 = vpack.c.b16 %v2125, %v2121
  %v2186 = vpack.c.b16 %v2126, %v2122
  %v2187 = vpack.c.b16 %v2127, %v2123
  %v2188 = vpack.c.b16 %v2128, %v2124
  %v2189 = vpack.c.b16 %v2133, %v2129
  %v2190 = vpack.c.b16 %v2134, %v2130
  %v2191 = vpack.c.b16 %v2135, %v2131
  %v2192 = vpack.c.b16 %v2136, %v2132
  %v2193 = vpack.c.b16 %v2141, %v2137
  %v2194 = vpack.c.b16 %v2142, %v2138
  %v2195 = vpack.c.b16 %v2143, %v2139
  %v2196 = vpack.c.b16 %v2144, %v2140
  %v2197 = vpack.c.b16 %v2149, %v2145
  %v2198 = vpack.c.b16 %v2150, %v2146
  %v2199 = vpack.c.b16 %v2151, %v2147
  %v2200 = vpack.c.b16 %v2152, %v2148
  %v2201 = vpack.c.b16 %v2157, %v2153
  %v2202 = vpack.c.b16 %v2158, %v2154
  %v2203 = vpack.c.b16 %v2159, %v2155
  %v2204 = vpack.c.b16 %v2160, %v2156
  %v2205 = vpack.c.b16 %v2165, %v2161
  %v2206 = vpack.c.b16 %v2166, %v2162
  %v2207 = vpack.c.b16 %v2167, %v2163
  %v2208 = vpack.c.b16 %v2168, %v2164
  %v2209 = vpack.c.b16 %v2173, %v2169
  %v2210 = vpack.c.b16 %v2174, %v2170
  %v2211 = vpack.c.b16 %v2175, %v2171
  %v2212 = vpack.c.b16 %v2176, %v2172
  %v2213 = vpack.c.b16 %v2181, %v2177
  %v2214 = vpack.c.b16 %v2182, %v2178
  %v2215 = vpack.c.b16 %v2183, %v2179
  %v2216 = vpack.c.b16 %v2184, %v2180
  %2249 = vmatprep.subr.bf16.mxu0 %v2214
  %2250 = vmatpush1.bf16.msra.mxu0 %v2213
  %2251 = vmatprep.subr.bf16.mxu0 %v2210
  %2252 = vmatpush1.bf16.msra.mxu0 %v2209
  %2253 = vmatprep.subr.bf16.mxu0 %v2206
  %2254 = vmatpush1.bf16.msra.mxu0 %v2205
  %2255 = vmatprep.subr.bf16.mxu0 %v2202
  %2256 = vmatpush1.bf16.msra.mxu0 %v2201
  %2257 = vmatprep.subr.bf16.mxu0 %v2198
  %2258 = vmatpush1.bf16.msra.mxu0 %v2197
  %2259 = vmatprep.subr.bf16.mxu0 %v2194
  %2260 = vmatpush1.bf16.msra.mxu0 %v2193
  %2261 = vmatprep.subr.bf16.mxu0 %v2190
  %2262 = vmatpush1.bf16.msra.mxu0 %v2189
  %2263 = vmatprep.subr.bf16.mxu0 %v2186
  %2264 = vmatpush1.bf16.msra.mxu0 %v2185
  %2265 = vmatprep.subr.bf16.mxu0 0
  %2266 = vmatpush2.bf16.msra.mxu0 0
  %2267 = vmatprep.subr.bf16.mxu0 0
  %2268 = vmatpush2.bf16.msra.mxu0 0
  %2269 = vmatprep.subr.bf16.mxu0 0
  %2270 = vmatpush2.bf16.msra.mxu0 0
  %2271 = vmatprep.subr.bf16.mxu0 0
  %2272 = vmatpush2.bf16.msra.mxu0 0
  %2273 = vmatprep.subr.bf16.mxu0 0
  %2274 = vmatpush2.bf16.msra.mxu0 0
  %2275 = vmatprep.subr.bf16.mxu0 0
  %2276 = vmatpush2.bf16.msra.mxu0 0
  %2277 = vmatprep.subr.bf16.mxu0 0
  %2278 = vmatpush2.bf16.msra.mxu0 0
  %2279 = vmatprep.subr.bf16.mxu0 0
  %2280 = vmatpush2.bf16.msra.mxu0 0
  %2281 = vmatprep.mubr.bf16.mxu0 0
  %2282 = vmatmul.mubr.bf16.gmra.mxu0 %v2056
  %v2283 = vpop.f32.mrf.mxu0
  %v2284 = vadd.f32 0.0, %v2283
  %v2285 = vpop.f32.mrf.mxu0
  %v2286 = vadd.f32 0.0, %v2285
  %v2287 = vpop.f32.mrf.mxu0
  %v2288 = vpop.f32.mrf.mxu0
  %2289 = vdwg.mxu0
  %2290 = vmatprep.subr.bf16.mxu0 %v2216
  %2291 = vmatpush1.bf16.msra.mxu0 %v2215
  %2292 = vmatprep.subr.bf16.mxu0 %v2212
  %2293 = vmatpush1.bf16.msra.mxu0 %v2211
  %2294 = vmatprep.subr.bf16.mxu0 %v2208
  %2295 = vmatpush1.bf16.msra.mxu0 %v2207
  %2296 = vmatprep.subr.bf16.mxu0 %v2204
  %2297 = vmatpush1.bf16.msra.mxu0 %v2203
  %2298 = vmatprep.subr.bf16.mxu0 %v2200
  %2299 = vmatpush1.bf16.msra.mxu0 %v2199
  %2300 = vmatprep.subr.bf16.mxu0 %v2196
  %2301 = vmatpush1.bf16.msra.mxu0 %v2195
  %2302 = vmatprep.subr.bf16.mxu0 %v2192
  %2303 = vmatpush1.bf16.msra.mxu0 %v2191
  %2304 = vmatprep.subr.bf16.mxu0 %v2188
  %2305 = vmatpush1.bf16.msra.mxu0 %v2187
  %2306 = vmatprep.subr.bf16.mxu0 0
  %2307 = vmatpush2.bf16.msra.mxu0 0
  %2308 = vmatprep.subr.bf16.mxu0 0
  %2309 = vmatpush2.bf16.msra.mxu0 0
  %2310 = vmatprep.subr.bf16.mxu0 0
  %2311 = vmatpush2.bf16.msra.mxu0 0
  %2312 = vmatprep.subr.bf16.mxu0 0
  %2313 = vmatpush2.bf16.msra.mxu0 0
  %2314 = vmatprep.subr.bf16.mxu0 0
  %2315 = vmatpush2.bf16.msra.mxu0 0
  %2316 = vmatprep.subr.bf16.mxu0 0
  %2317 = vmatpush2.bf16.msra.mxu0 0
  %2318 = vmatprep.subr.bf16.mxu0 0
  %2319 = vmatpush2.bf16.msra.mxu0 0
  %2320 = vmatprep.subr.bf16.mxu0 0
  %2321 = vmatpush2.bf16.msra.mxu0 0
  %2322 = vmatprep.mubr.bf16.mxu0 0
  %2323 = vmatmul.mubr.bf16.gmra.mxu0 %v2056
  %v2324 = vpop.f32.mrf.mxu0
  %v2325 = vadd.f32 0.0, %v2324
  %v2326 = vpop.f32.mrf.mxu0
  %v2327 = vadd.f32 0.0, %v2326
  %v2328 = vpop.f32.mrf.mxu0
  %v2329 = vpop.f32.mrf.mxu0
  %2330 = vdwg.mxu0
  %v2331 = vadd.f32 %v2052, %v2284
  %v2332 = vadd.f32 %v2053, %v2286
  %v2333 = vadd.f32 %v2054, %v2325
  %v2334 = vadd.f32 %v2055, %v2327
  %v2335 = vxor.u32 %v2331, 2147483648
  %v2336 = vxor.u32 %v2332, 2147483648
  %v2337 = vxor.u32 %v2333, 2147483648
  %v2338 = vmul.f32 %v2335, 1.442695
  %v2339 = vpow.pop %v2338
  %v2340 = vmul.f32 %v2336, 1.442695
  %v2341 = vpow.pop %v2340
  %v2342 = vmul.f32 %v2337, 1.442695
  %v2343 = vpow.pop %v2342
  %v2344 = vadd.f32 %v2339, 1.0
  %v2345 = vadd.f32 %v2341, 1.0
  %v2346 = vadd.f32 %v2343, 1.0
  %v2347 = vrcp.pop %v2344
  %v2348 = vmul.f32 1.0, %v2347
  %v2349 = vrcp.pop %v2345
  %v2350 = vmul.f32 1.0, %v2349
  %v2351 = vrcp.pop %v2346
  %v2352 = vmul.f32 1.0, %v2351
  %v2353 = vtanh.pop %v2334
  %v2354 = vmul.f32 %v2350, %v2048
  %v2355 = vmul.f32 %v2348, %v2353
  %v2356 = vadd.f32 %v2354, %v2355
  %v2357 = vtanh.pop %v2356
  %v2358 = vmul.f32 %v2352, %v2357
  %2359 = vst [vmem:[#allocation3 + $0x28] sm:$0xff] %v2358
  %v2360 = vld [vmem:[#allocation2 + $0xc0] sm:$0xff]
  %v2361 = vld [vmem:[#allocation2 + $0xc8] sm:$0xff]
  %v2362 = vld [vmem:[#allocation2 + $0xd0] sm:$0xff]
  %v2363 = vld [vmem:[#allocation2 + $0xd8] sm:$0xff]
  %v2364 = vpack.c.bf16 %v2358, %v2358
  %v2365 = vld [vmem:[%s6] sm:$0xff]
  %v2366 = vld [vmem:[%s6 + $0x8] sm:$0xff]
  %v2367 = vld [vmem:[%s6 + $0x10] sm:$0xff]
  %v2368 = vld [vmem:[%s6 + $0x18] sm:$0xff]
  %v2369 = vld [vmem:[%s6 + $0x20] sm:$0xff]
  %v2370 = vld [vmem:[%s6 + $0x28] sm:$0xff]
  %v2371 = vld [vmem:[%s6 + $0x30] sm:$0xff]
  %v2372 = vld [vmem:[%s6 + $0x38] sm:$0xff]
  %v2373 = vld [vmem:[%s6 + $0x40] sm:$0xff]
  %v2374 = vld [vmem:[%s6 + $0x48] sm:$0xff]
  %v2375 = vld [vmem:[%s6 + $0x50] sm:$0xff]
  %v2376 = vld [vmem:[%s6 + $0x58] sm:$0xff]
  %v2377 = vld [vmem:[%s6 + $0x60] sm:$0xff]
  %v2378 = vld [vmem:[%s6 + $0x68] sm:$0xff]
  %v2379 = vld [vmem:[%s6 + $0x70] sm:$0xff]
  %v2380 = vld [vmem:[%s6 + $0x78] sm:$0xff]
  %v2381 = vld [vmem:[%s6 + $0x80] sm:$0xff]
  %v2382 = vld [vmem:[%s6 + $0x88] sm:$0xff]
  %v2383 = vld [vmem:[%s6 + $0x90] sm:$0xff]
  %v2384 = vld [vmem:[%s6 + $0x98] sm:$0xff]
  %v2385 = vld [vmem:[%s6 + $0xa0] sm:$0xff]
  %v2386 = vld [vmem:[%s6 + $0xa8] sm:$0xff]
  %v2387 = vld [vmem:[%s6 + $0xb0] sm:$0xff]
  %v2388 = vld [vmem:[%s6 + $0xb8] sm:$0xff]
  %v2389 = vld [vmem:[%s6 + $0xc0] sm:$0xff]
  %v2390 = vld [vmem:[%s6 + $0xc8] sm:$0xff]
  %v2391 = vld [vmem:[%s6 + $0xd0] sm:$0xff]
  %v2392 = vld [vmem:[%s6 + $0xd8] sm:$0xff]
  %v2393 = vld [vmem:[%s6 + $0xe0] sm:$0xff]
  %v2394 = vld [vmem:[%s6 + $0xe8] sm:$0xff]
  %v2395 = vld [vmem:[%s6 + $0xf0] sm:$0xff]
  %v2396 = vld [vmem:[%s6 + $0xf8] sm:$0xff]
  %v2429 = vunpack.c.l.b16 %v2365
  %v2430 = vunpack.c.h.b16 %v2365
  %v2431 = vunpack.c.l.b16 %v2366
  %v2432 = vunpack.c.h.b16 %v2366
  %v2433 = vunpack.c.l.b16 %v2367
  %v2434 = vunpack.c.h.b16 %v2367
  %v2435 = vunpack.c.l.b16 %v2368
  %v2436 = vunpack.c.h.b16 %v2368
  %v2437 = vunpack.c.l.b16 %v2369
  %v2438 = vunpack.c.h.b16 %v2369
  %v2439 = vunpack.c.l.b16 %v2370
  %v2440 = vunpack.c.h.b16 %v2370
  %v2441 = vunpack.c.l.b16 %v2371
  %v2442 = vunpack.c.h.b16 %v2371
  %v2443 = vunpack.c.l.b16 %v2372
  %v2444 = vunpack.c.h.b16 %v2372
  %v2445 = vunpack.c.l.b16 %v2373
  %v2446 = vunpack.c.h.b16 %v2373
  %v2447 = vunpack.c.l.b16 %v2374
  %v2448 = vunpack.c.h.b16 %v2374
  %v2449 = vunpack.c.l.b16 %v2375
  %v2450 = vunpack.c.h.b16 %v2375
  %v2451 = vunpack.c.l.b16 %v2376
  %v2452 = vunpack.c.h.b16 %v2376
  %v2453 = vunpack.c.l.b16 %v2377
  %v2454 = vunpack.c.h.b16 %v2377
  %v2455 = vunpack.c.l.b16 %v2378
  %v2456 = vunpack.c.h.b16 %v2378
  %v2457 = vunpack.c.l.b16 %v2379
  %v2458 = vunpack.c.h.b16 %v2379
  %v2459 = vunpack.c.l.b16 %v2380
  %v2460 = vunpack.c.h.b16 %v2380
  %v2461 = vunpack.c.l.b16 %v2381
  %v2462 = vunpack.c.h.b16 %v2381
  %v2463 = vunpack.c.l.b16 %v2382
  %v2464 = vunpack.c.h.b16 %v2382
  %v2465 = vunpack.c.l.b16 %v2383
  %v2466 = vunpack.c.h.b16 %v2383
  %v2467 = vunpack.c.l.b16 %v2384
  %v2468 = vunpack.c.h.b16 %v2384
  %v2469 = vunpack.c.l.b16 %v2385
  %v2470 = vunpack.c.h.b16 %v2385
  %v2471 = vunpack.c.l.b16 %v2386
  %v2472 = vunpack.c.h.b16 %v2386
  %v2473 = vunpack.c.l.b16 %v2387
  %v2474 = vunpack.c.h.b16 %v2387
  %v2475 = vunpack.c.l.b16 %v2388
  %v2476 = vunpack.c.h.b16 %v2388
  %v2477 = vunpack.c.l.b16 %v2389
  %v2478 = vunpack.c.h.b16 %v2389
  %v2479 = vunpack.c.l.b16 %v2390
  %v2480 = vunpack.c.h.b16 %v2390
  %v2481 = vunpack.c.l.b16 %v2391
  %v2482 = vunpack.c.h.b16 %v2391
  %v2483 = vunpack.c.l.b16 %v2392
  %v2484 = vunpack.c.h.b16 %v2392
  %v2485 = vunpack.c.l.b16 %v2393
  %v2486 = vunpack.c.h.b16 %v2393
  %v2487 = vunpack.c.l.b16 %v2394
  %v2488 = vunpack.c.h.b16 %v2394
  %v2489 = vunpack.c.l.b16 %v2395
  %v2490 = vunpack.c.h.b16 %v2395
  %v2491 = vunpack.c.l.b16 %v2396
  %v2492 = vunpack.c.h.b16 %v2396
  %v2493 = vpack.c.b16 %v2433, %v2429
  %v2494 = vpack.c.b16 %v2434, %v2430
  %v2495 = vpack.c.b16 %v2435, %v2431
  %v2496 = vpack.c.b16 %v2436, %v2432
  %v2497 = vpack.c.b16 %v2441, %v2437
  %v2498 = vpack.c.b16 %v2442, %v2438
  %v2499 = vpack.c.b16 %v2443, %v2439
  %v2500 = vpack.c.b16 %v2444, %v2440
  %v2501 = vpack.c.b16 %v2449, %v2445
  %v2502 = vpack.c.b16 %v2450, %v2446
  %v2503 = vpack.c.b16 %v2451, %v2447
  %v2504 = vpack.c.b16 %v2452, %v2448
  %v2505 = vpack.c.b16 %v2457, %v2453
  %v2506 = vpack.c.b16 %v2458, %v2454
  %v2507 = vpack.c.b16 %v2459, %v2455
  %v2508 = vpack.c.b16 %v2460, %v2456
  %v2509 = vpack.c.b16 %v2465, %v2461
  %v2510 = vpack.c.b16 %v2466, %v2462
  %v2511 = vpack.c.b16 %v2467, %v2463
  %v2512 = vpack.c.b16 %v2468, %v2464
  %v2513 = vpack.c.b16 %v2473, %v2469
  %v2514 = vpack.c.b16 %v2474, %v2470
  %v2515 = vpack.c.b16 %v2475, %v2471
  %v2516 = vpack.c.b16 %v2476, %v2472
  %v2517 = vpack.c.b16 %v2481, %v2477
  %v2518 = vpack.c.b16 %v2482, %v2478
  %v2519 = vpack.c.b16 %v2483, %v2479
  %v2520 = vpack.c.b16 %v2484, %v2480
  %v2521 = vpack.c.b16 %v2489, %v2485
  %v2522 = vpack.c.b16 %v2490, %v2486
  %v2523 = vpack.c.b16 %v2491, %v2487
  %v2524 = vpack.c.b16 %v2492, %v2488
  %2557 = vmatprep.subr.bf16.mxu0 %v2522
  %2558 = vmatpush1.bf16.msra.mxu0 %v2521
  %2559 = vmatprep.subr.bf16.mxu0 %v2518
  %2560 = vmatpush1.bf16.msra.mxu0 %v2517
  %2561 = vmatprep.subr.bf16.mxu0 %v2514
  %2562 = vmatpush1.bf16.msra.mxu0 %v2513
  %2563 = vmatprep.subr.bf16.mxu0 %v2510
  %2564 = vmatpush1.bf16.msra.mxu0 %v2509
  %2565 = vmatprep.subr.bf16.mxu0 %v2506
  %2566 = vmatpush1.bf16.msra.mxu0 %v2505
  %2567 = vmatprep.subr.bf16.mxu0 %v2502
  %2568 = vmatpush1.bf16.msra.mxu0 %v2501
  %2569 = vmatprep.subr.bf16.mxu0 %v2498
  %2570 = vmatpush1.bf16.msra.mxu0 %v2497
  %2571 = vmatprep.subr.bf16.mxu0 %v2494
  %2572 = vmatpush1.bf16.msra.mxu0 %v2493
  %2573 = vmatprep.subr.bf16.mxu0 0
  %2574 = vmatpush2.bf16.msra.mxu0 0
  %2575 = vmatprep.subr.bf16.mxu0 0
  %2576 = vmatpush2.bf16.msra.mxu0 0
  %2577 = vmatprep.subr.bf16.mxu0 0
  %2578 = vmatpush2.bf16.msra.mxu0 0
  %2579 = vmatprep.subr.bf16.mxu0 0
  %2580 = vmatpush2.bf16.msra.mxu0 0
  %2581 = vmatprep.subr.bf16.mxu0 0
  %2582 = vmatpush2.bf16.msra.mxu0 0
  %2583 = vmatprep.subr.bf16.mxu0 0
  %2584 = vmatpush2.bf16.msra.mxu0 0
  %2585 = vmatprep.subr.bf16.mxu0 0
  %2586 = vmatpush2.bf16.msra.mxu0 0
  %2587 = vmatprep.subr.bf16.mxu0 0
  %2588 = vmatpush2.bf16.msra.mxu0 0
  %2589 = vmatprep.mubr.bf16.mxu0 0
  %2590 = vmatmul.mubr.bf16.gmra.mxu0 %v2364
  %v2591 = vpop.f32.mrf.mxu0
  %v2592 = vadd.f32 0.0, %v2591
  %v2593 = vpop.f32.mrf.mxu0
  %v2594 = vadd.f32 0.0, %v2593
  %v2595 = vpop.f32.mrf.mxu0
  %v2596 = vpop.f32.mrf.mxu0
  %2597 = vdwg.mxu0
  %2598 = vmatprep.subr.bf16.mxu0 %v2524
  %2599 = vmatpush1.bf16.msra.mxu0 %v2523
  %2600 = vmatprep.subr.bf16.mxu0 %v2520
  %2601 = vmatpush1.bf16.msra.mxu0 %v2519
  %2602 = vmatprep.subr.bf16.mxu0 %v2516
  %2603 = vmatpush1.bf16.msra.mxu0 %v2515
  %2604 = vmatprep.subr.bf16.mxu0 %v2512
  %2605 = vmatpush1.bf16.msra.mxu0 %v2511
  %2606 = vmatprep.subr.bf16.mxu0 %v2508
  %2607 = vmatpush1.bf16.msra.mxu0 %v2507
  %2608 = vmatprep.subr.bf16.mxu0 %v2504
  %2609 = vmatpush1.bf16.msra.mxu0 %v2503
  %2610 = vmatprep.subr.bf16.mxu0 %v2500
  %2611 = vmatpush1.bf16.msra.mxu0 %v2499
  %2612 = vmatprep.subr.bf16.mxu0 %v2496
  %2613 = vmatpush1.bf16.msra.mxu0 %v2495
  %2614 = vmatprep.subr.bf16.mxu0 0
  %2615 = vmatpush2.bf16.msra.mxu0 0
  %2616 = vmatprep.subr.bf16.mxu0 0
  %2617 = vmatpush2.bf16.msra.mxu0 0
  %2618 = vmatprep.subr.bf16.mxu0 0
  %2619 = vmatpush2.bf16.msra.mxu0 0
  %2620 = vmatprep.subr.bf16.mxu0 0
  %2621 = vmatpush2.bf16.msra.mxu0 0
  %2622 = vmatprep.subr.bf16.mxu0 0
  %2623 = vmatpush2.bf16.msra.mxu0 0
  %2624 = vmatprep.subr.bf16.mxu0 0
  %2625 = vmatpush2.bf16.msra.mxu0 0
  %2626 = vmatprep.subr.bf16.mxu0 0
  %2627 = vmatpush2.bf16.msra.mxu0 0
  %2628 = vmatprep.subr.bf16.mxu0 0
  %2629 = vmatpush2.bf16.msra.mxu0 0
  %2630 = vmatprep.mubr.bf16.mxu0 0
  %2631 = vmatmul.mubr.bf16.gmra.mxu0 %v2364
  %v2632 = vpop.f32.mrf.mxu0
  %v2633 = vadd.f32 0.0, %v2632
  %v2634 = vpop.f32.mrf.mxu0
  %v2635 = vadd.f32 0.0, %v2634
  %v2636 = vpop.f32.mrf.mxu0
  %v2637 = vpop.f32.mrf.mxu0
  %2638 = vdwg.mxu0
  %v2639 = vadd.f32 %v2360, %v2592
  %v2640 = vadd.f32 %v2361, %v2594
  %v2641 = vadd.f32 %v2362, %v2633
  %v2642 = vadd.f32 %v2363, %v2635
  %v2643 = vxor.u32 %v2639, 2147483648
  %v2644 = vxor.u32 %v2640, 2147483648
  %v2645 = vxor.u32 %v2641, 2147483648
  %v2646 = vmul.f32 %v2643, 1.442695
  %v2647 = vpow.pop %v2646
  %v2648 = vmul.f32 %v2644, 1.442695
  %v2649 = vpow.pop %v2648
  %v2650 = vmul.f32 %v2645, 1.442695
  %v2651 = vpow.pop %v2650
  %v2652 = vadd.f32 %v2647, 1.0
  %v2653 = vadd.f32 %v2649, 1.0
  %v2654 = vadd.f32 %v2651, 1.0
  %v2655 = vrcp.pop %v2652
  %v2656 = vmul.f32 1.0, %v2655
  %v2657 = vrcp.pop %v2653
  %v2658 = vmul.f32 1.0, %v2657
  %v2659 = vrcp.pop %v2654
  %v2660 = vmul.f32 1.0, %v2659
  %v2661 = vtanh.pop %v2642
  %v2662 = vmul.f32 %v2658, %v2356
  %v2663 = vmul.f32 %v2656, %v2661
  %v2664 = vadd.f32 %v2662, %v2663
  %v2665 = vtanh.pop %v2664
  %v2666 = vmul.f32 %v2660, %v2665
  %2667 = vst [vmem:[#allocation3 + $0x30] sm:$0xff] %v2666
  %v2668 = vld [vmem:[#allocation2 + $0xe0] sm:$0xff]
  %v2669 = vld [vmem:[#allocation2 + $0xe8] sm:$0xff]
  %v2670 = vld [vmem:[#allocation2 + $0xf0] sm:$0xff]
  %v2671 = vld [vmem:[#allocation2 + $0xf8] sm:$0xff]
  %v2672 = vpack.c.bf16 %v2666, %v2666
  %v2673 = vld [vmem:[%s6] sm:$0xff]
  %v2674 = vld [vmem:[%s6 + $0x8] sm:$0xff]
  %v2675 = vld [vmem:[%s6 + $0x10] sm:$0xff]
  %v2676 = vld [vmem:[%s6 + $0x18] sm:$0xff]
  %v2677 = vld [vmem:[%s6 + $0x20] sm:$0xff]
  %v2678 = vld [vmem:[%s6 + $0x28] sm:$0xff]
  %v2679 = vld [vmem:[%s6 + $0x30] sm:$0xff]
  %v2680 = vld [vmem:[%s6 + $0x38] sm:$0xff]
  %v2681 = vld [vmem:[%s6 + $0x40] sm:$0xff]
  %v2682 = vld [vmem:[%s6 + $0x48] sm:$0xff]
  %v2683 = vld [vmem:[%s6 + $0x50] sm:$0xff]
  %v2684 = vld [vmem:[%s6 + $0x58] sm:$0xff]
  %v2685 = vld [vmem:[%s6 + $0x60] sm:$0xff]
  %v2686 = vld [vmem:[%s6 + $0x68] sm:$0xff]
  %v2687 = vld [vmem:[%s6 + $0x70] sm:$0xff]
  %v2688 = vld [vmem:[%s6 + $0x78] sm:$0xff]
  %v2689 = vld [vmem:[%s6 + $0x80] sm:$0xff]
  %v2690 = vld [vmem:[%s6 + $0x88] sm:$0xff]
  %v2691 = vld [vmem:[%s6 + $0x90] sm:$0xff]
  %v2692 = vld [vmem:[%s6 + $0x98] sm:$0xff]
  %v2693 = vld [vmem:[%s6 + $0xa0] sm:$0xff]
  %v2694 = vld [vmem:[%s6 + $0xa8] sm:$0xff]
  %v2695 = vld [vmem:[%s6 + $0xb0] sm:$0xff]
  %v2696 = vld [vmem:[%s6 + $0xb8] sm:$0xff]
  %v2697 = vld [vmem:[%s6 + $0xc0] sm:$0xff]
  %v2698 = vld [vmem:[%s6 + $0xc8] sm:$0xff]
  %v2699 = vld [vmem:[%s6 + $0xd0] sm:$0xff]
  %v2700 = vld [vmem:[%s6 + $0xd8] sm:$0xff]
  %v2701 = vld [vmem:[%s6 + $0xe0] sm:$0xff]
  %v2702 = vld [vmem:[%s6 + $0xe8] sm:$0xff]
  %v2703 = vld [vmem:[%s6 + $0xf0] sm:$0xff]
  %v2704 = vld [vmem:[%s6 + $0xf8] sm:$0xff]
  %v2737 = vunpack.c.l.b16 %v2673
  %v2738 = vunpack.c.h.b16 %v2673
  %v2739 = vunpack.c.l.b16 %v2674
  %v2740 = vunpack.c.h.b16 %v2674
  %v2741 = vunpack.c.l.b16 %v2675
  %v2742 = vunpack.c.h.b16 %v2675
  %v2743 = vunpack.c.l.b16 %v2676
  %v2744 = vunpack.c.h.b16 %v2676
  %v2745 = vunpack.c.l.b16 %v2677
  %v2746 = vunpack.c.h.b16 %v2677
  %v2747 = vunpack.c.l.b16 %v2678
  %v2748 = vunpack.c.h.b16 %v2678
  %v2749 = vunpack.c.l.b16 %v2679
  %v2750 = vunpack.c.h.b16 %v2679
  %v2751 = vunpack.c.l.b16 %v2680
  %v2752 = vunpack.c.h.b16 %v2680
  %v2753 = vunpack.c.l.b16 %v2681
  %v2754 = vunpack.c.h.b16 %v2681
  %v2755 = vunpack.c.l.b16 %v2682
  %v2756 = vunpack.c.h.b16 %v2682
  %v2757 = vunpack.c.l.b16 %v2683
  %v2758 = vunpack.c.h.b16 %v2683
  %v2759 = vunpack.c.l.b16 %v2684
  %v2760 = vunpack.c.h.b16 %v2684
  %v2761 = vunpack.c.l.b16 %v2685
  %v2762 = vunpack.c.h.b16 %v2685
  %v2763 = vunpack.c.l.b16 %v2686
  %v2764 = vunpack.c.h.b16 %v2686
  %v2765 = vunpack.c.l.b16 %v2687
  %v2766 = vunpack.c.h.b16 %v2687
  %v2767 = vunpack.c.l.b16 %v2688
  %v2768 = vunpack.c.h.b16 %v2688
  %v2769 = vunpack.c.l.b16 %v2689
  %v2770 = vunpack.c.h.b16 %v2689
  %v2771 = vunpack.c.l.b16 %v2690
  %v2772 = vunpack.c.h.b16 %v2690
  %v2773 = vunpack.c.l.b16 %v2691
  %v2774 = vunpack.c.h.b16 %v2691
  %v2775 = vunpack.c.l.b16 %v2692
  %v2776 = vunpack.c.h.b16 %v2692
  %v2777 = vunpack.c.l.b16 %v2693
  %v2778 = vunpack.c.h.b16 %v2693
  %v2779 = vunpack.c.l.b16 %v2694
  %v2780 = vunpack.c.h.b16 %v2694
  %v2781 = vunpack.c.l.b16 %v2695
  %v2782 = vunpack.c.h.b16 %v2695
  %v2783 = vunpack.c.l.b16 %v2696
  %v2784 = vunpack.c.h.b16 %v2696
  %v2785 = vunpack.c.l.b16 %v2697
  %v2786 = vunpack.c.h.b16 %v2697
  %v2787 = vunpack.c.l.b16 %v2698
  %v2788 = vunpack.c.h.b16 %v2698
  %v2789 = vunpack.c.l.b16 %v2699
  %v2790 = vunpack.c.h.b16 %v2699
  %v2791 = vunpack.c.l.b16 %v2700
  %v2792 = vunpack.c.h.b16 %v2700
  %v2793 = vunpack.c.l.b16 %v2701
  %v2794 = vunpack.c.h.b16 %v2701
  %v2795 = vunpack.c.l.b16 %v2702
  %v2796 = vunpack.c.h.b16 %v2702
  %v2797 = vunpack.c.l.b16 %v2703
  %v2798 = vunpack.c.h.b16 %v2703
  %v2799 = vunpack.c.l.b16 %v2704
  %v2800 = vunpack.c.h.b16 %v2704
  %v2801 = vpack.c.b16 %v2741, %v2737
  %v2802 = vpack.c.b16 %v2742, %v2738
  %v2803 = vpack.c.b16 %v2743, %v2739
  %v2804 = vpack.c.b16 %v2744, %v2740
  %v2805 = vpack.c.b16 %v2749, %v2745
  %v2806 = vpack.c.b16 %v2750, %v2746
  %v2807 = vpack.c.b16 %v2751, %v2747
  %v2808 = vpack.c.b16 %v2752, %v2748
  %v2809 = vpack.c.b16 %v2757, %v2753
  %v2810 = vpack.c.b16 %v2758, %v2754
  %v2811 = vpack.c.b16 %v2759, %v2755
  %v2812 = vpack.c.b16 %v2760, %v2756
  %v2813 = vpack.c.b16 %v2765, %v2761
  %v2814 = vpack.c.b16 %v2766, %v2762
  %v2815 = vpack.c.b16 %v2767, %v2763
  %v2816 = vpack.c.b16 %v2768, %v2764
  %v2817 = vpack.c.b16 %v2773, %v2769
  %v2818 = vpack.c.b16 %v2774, %v2770
  %v2819 = vpack.c.b16 %v2775, %v2771
  %v2820 = vpack.c.b16 %v2776, %v2772
  %v2821 = vpack.c.b16 %v2781, %v2777
  %v2822 = vpack.c.b16 %v2782, %v2778
  %v2823 = vpack.c.b16 %v2783, %v2779
  %v2824 = vpack.c.b16 %v2784, %v2780
  %v2825 = vpack.c.b16 %v2789, %v2785
  %v2826 = vpack.c.b16 %v2790, %v2786
  %v2827 = vpack.c.b16 %v2791, %v2787
  %v2828 = vpack.c.b16 %v2792, %v2788
  %v2829 = vpack.c.b16 %v2797, %v2793
  %v2830 = vpack.c.b16 %v2798, %v2794
  %v2831 = vpack.c.b16 %v2799, %v2795
  %v2832 = vpack.c.b16 %v2800, %v2796
  %2865 = vmatprep.subr.bf16.mxu0 %v2830
  %2866 = vmatpush1.bf16.msra.mxu0 %v2829
  %2867 = vmatprep.subr.bf16.mxu0 %v2826
  %2868 = vmatpush1.bf16.msra.mxu0 %v2825
  %2869 = vmatprep.subr.bf16.mxu0 %v2822
  %2870 = vmatpush1.bf16.msra.mxu0 %v2821
  %2871 = vmatprep.subr.bf16.mxu0 %v2818
  %2872 = vmatpush1.bf16.msra.mxu0 %v2817
  %2873 = vmatprep.subr.bf16.mxu0 %v2814
  %2874 = vmatpush1.bf16.msra.mxu0 %v2813
  %2875 = vmatprep.subr.bf16.mxu0 %v2810
  %2876 = vmatpush1.bf16.msra.mxu0 %v2809
  %2877 = vmatprep.subr.bf16.mxu0 %v2806
  %2878 = vmatpush1.bf16.msra.mxu0 %v2805
  %2879 = vmatprep.subr.bf16.mxu0 %v2802
  %2880 = vmatpush1.bf16.msra.mxu0 %v2801
  %2881 = vmatprep.subr.bf16.mxu0 0
  %2882 = vmatpush2.bf16.msra.mxu0 0
  %2883 = vmatprep.subr.bf16.mxu0 0
  %2884 = vmatpush2.bf16.msra.mxu0 0
  %2885 = vmatprep.subr.bf16.mxu0 0
  %2886 = vmatpush2.bf16.msra.mxu0 0
  %2887 = vmatprep.subr.bf16.mxu0 0
  %2888 = vmatpush2.bf16.msra.mxu0 0
  %2889 = vmatprep.subr.bf16.mxu0 0
  %2890 = vmatpush2.bf16.msra.mxu0 0
  %2891 = vmatprep.subr.bf16.mxu0 0
  %2892 = vmatpush2.bf16.msra.mxu0 0
  %2893 = vmatprep.subr.bf16.mxu0 0
  %2894 = vmatpush2.bf16.msra.mxu0 0
  %2895 = vmatprep.subr.bf16.mxu0 0
  %2896 = vmatpush2.bf16.msra.mxu0 0
  %2897 = vmatprep.mubr.bf16.mxu0 0
  %2898 = vmatmul.mubr.bf16.gmra.mxu0 %v2672
  %v2899 = vpop.f32.mrf.mxu0
  %v2900 = vadd.f32 0.0, %v2899
  %v2901 = vpop.f32.mrf.mxu0
  %v2902 = vadd.f32 0.0, %v2901
  %v2903 = vpop.f32.mrf.mxu0
  %v2904 = vpop.f32.mrf.mxu0
  %2905 = vdwg.mxu0
  %2906 = vmatprep.subr.bf16.mxu0 %v2832
  %2907 = vmatpush1.bf16.msra.mxu0 %v2831
  %2908 = vmatprep.subr.bf16.mxu0 %v2828
  %2909 = vmatpush1.bf16.msra.mxu0 %v2827
  %2910 = vmatprep.subr.bf16.mxu0 %v2824
  %2911 = vmatpush1.bf16.msra.mxu0 %v2823
  %2912 = vmatprep.subr.bf16.mxu0 %v2820
  %2913 = vmatpush1.bf16.msra.mxu0 %v2819
  %2914 = vmatprep.subr.bf16.mxu0 %v2816
  %2915 = vmatpush1.bf16.msra.mxu0 %v2815
  %2916 = vmatprep.subr.bf16.mxu0 %v2812
  %2917 = vmatpush1.bf16.msra.mxu0 %v2811
  %2918 = vmatprep.subr.bf16.mxu0 %v2808
  %2919 = vmatpush1.bf16.msra.mxu0 %v2807
  %2920 = vmatprep.subr.bf16.mxu0 %v2804
  %2921 = vmatpush1.bf16.msra.mxu0 %v2803
  %2922 = vmatprep.subr.bf16.mxu0 0
  %2923 = vmatpush2.bf16.msra.mxu0 0
  %2924 = vmatprep.subr.bf16.mxu0 0
  %2925 = vmatpush2.bf16.msra.mxu0 0
  %2926 = vmatprep.subr.bf16.mxu0 0
  %2927 = vmatpush2.bf16.msra.mxu0 0
  %2928 = vmatprep.subr.bf16.mxu0 0
  %2929 = vmatpush2.bf16.msra.mxu0 0
  %2930 = vmatprep.subr.bf16.mxu0 0
  %2931 = vmatpush2.bf16.msra.mxu0 0
  %2932 = vmatprep.subr.bf16.mxu0 0
  %2933 = vmatpush2.bf16.msra.mxu0 0
  %2934 = vmatprep.subr.bf16.mxu0 0
  %2935 = vmatpush2.bf16.msra.mxu0 0
  %2936 = vmatprep.subr.bf16.mxu0 0
  %2937 = vmatpush2.bf16.msra.mxu0 0
  %2938 = vmatprep.mubr.bf16.mxu0 0
  %2939 = vmatmul.mubr.bf16.gmra.mxu0 %v2672
  %v2940 = vpop.f32.mrf.mxu0
  %v2941 = vadd.f32 0.0, %v2940
  %v2942 = vpop.f32.mrf.mxu0
  %v2943 = vadd.f32 0.0, %v2942
  %v2944 = vpop.f32.mrf.mxu0
  %v2945 = vpop.f32.mrf.mxu0
  %2946 = vdwg.mxu0
  %v2947 = vadd.f32 %v2668, %v2900
  %v2948 = vadd.f32 %v2669, %v2902
  %v2949 = vadd.f32 %v2670, %v2941
  %v2950 = vadd.f32 %v2671, %v2943
  %v2951 = vxor.u32 %v2947, 2147483648
  %v2952 = vxor.u32 %v2948, 2147483648
  %v2953 = vxor.u32 %v2949, 2147483648
  %v2954 = vmul.f32 %v2951, 1.442695
  %v2955 = vpow.pop %v2954
  %v2956 = vmul.f32 %v2952, 1.442695
  %v2957 = vpow.pop %v2956
  %v2958 = vmul.f32 %v2953, 1.442695
  %v2959 = vpow.pop %v2958
  %v2960 = vadd.f32 %v2955, 1.0
  %v2961 = vadd.f32 %v2957, 1.0
  %v2962 = vadd.f32 %v2959, 1.0
  %v2963 = vrcp.pop %v2960
  %v2964 = vmul.f32 1.0, %v2963
  %v2965 = vrcp.pop %v2961
  %v2966 = vmul.f32 1.0, %v2965
  %v2967 = vrcp.pop %v2962
  %v2968 = vmul.f32 1.0, %v2967
  %v2969 = vtanh.pop %v2950
  %v2970 = vmul.f32 %v2966, %v2664
  %v2971 = vmul.f32 %v2964, %v2969
  %v2972 = vadd.f32 %v2970, %v2971
  %v2973 = vtanh.pop %v2972
  %v2974 = vmul.f32 %v2968, %v2973
  %2975 = vst [vmem:[#allocation3 + $0x38] sm:$0xff] %v2974
  %2976 = vst [vmem:[%s11] sm:$0xff] %v2974
  %2977 = vst [vmem:[%s12] sm:$0xff] %v2972
  %v2978 = vld [vmem:[#allocation3] sm:$0xff]
  %v2979 = vld [vmem:[#allocation3 + $0x8] sm:$0xff]
  %v2980 = vld [vmem:[#allocation3 + $0x10] sm:$0xff]
  %v2981 = vld [vmem:[#allocation3 + $0x18] sm:$0xff]
  %v2982 = vld [vmem:[#allocation3 + $0x20] sm:$0xff]
  %v2983 = vld [vmem:[#allocation3 + $0x28] sm:$0xff]
  %v2984 = vld [vmem:[#allocation3 + $0x30] sm:$0xff]
  %v2985 = vld [vmem:[#allocation3 + $0x38] sm:$0xff]
  %v2986 = vld [vmem:[%s8] sm:$0xff]
  %v2987 = vld [vmem:[%s8 + $0x8] sm:$0xff]
  %v2988 = vld [vmem:[%s8 + $0x10] sm:$0xff]
  %v2989 = vld [vmem:[%s8 + $0x18] sm:$0xff]
  %v2990 = vld [vmem:[%s8 + $0x20] sm:$0xff]
  %v2991 = vld [vmem:[%s8 + $0x28] sm:$0xff]
  %v2992 = vld [vmem:[%s8 + $0x30] sm:$0xff]
  %v2993 = vld [vmem:[%s8 + $0x38] sm:$0xff]
  %v2994 = vld [vmem:[%s8 + $0x40] sm:$0xff]
  %v2995 = vld [vmem:[%s8 + $0x48] sm:$0xff]
  %v2996 = vld [vmem:[%s8 + $0x50] sm:$0xff]
  %v2997 = vld [vmem:[%s8 + $0x58] sm:$0xff]
  %v2998 = vld [vmem:[%s8 + $0x60] sm:$0xff]
  %v2999 = vld [vmem:[%s8 + $0x68] sm:$0xff]
  %v3000 = vld [vmem:[%s8 + $0x70] sm:$0xff]
  %v3001 = vld [vmem:[%s8 + $0x78] sm:$0xff]
  %v3002 = vld [vmem:[%s9] sm:$0x1]
  %v3004 = vlaneseq
  %v3005 = vshrl.u32 %v3004, 7
  %v3006 = vsub.s32 0, %v3005
  %v3007 = vrot.slane %v3002, %v3006
  %3009 = vmatprep.subr.mxu0 0.0
  %3010 = vmatpush1.msra.mxu0 %v3001
  %3011 = vmatprep.subr.mxu0 0.0
  %3012 = vmatpush1.msra.mxu0 %v3000
  %3013 = vmatprep.subr.mxu0 0.0
  %3014 = vmatpush1.msra.mxu0 %v2999
  %3015 = vmatprep.subr.mxu0 0.0
  %3016 = vmatpush1.msra.mxu0 %v2998
  %3017 = vmatprep.subr.mxu0 0.0
  %3018 = vmatpush1.msra.mxu0 %v2997
  %3019 = vmatprep.subr.mxu0 0.0
  %3020 = vmatpush1.msra.mxu0 %v2996
  %3021 = vmatprep.subr.mxu0 0.0
  %3022 = vmatpush1.msra.mxu0 %v2995
  %3023 = vmatprep.subr.mxu0 0.0
  %3024 = vmatpush1.msra.mxu0 %v2994
  %3025 = vmatprep.subr.mxu0 0.0
  %3026 = vmatpush1.msra.mxu0 %v2993
  %3027 = vmatprep.subr.mxu0 0.0
  %3028 = vmatpush1.msra.mxu0 %v2992
  %3029 = vmatprep.subr.mxu0 0.0
  %3030 = vmatpush1.msra.mxu0 %v2991
  %3031 = vmatprep.subr.mxu0 0.0
  %3032 = vmatpush1.msra.mxu0 %v2990
  %3033 = vmatprep.subr.mxu0 0.0
  %3034 = vmatpush1.msra.mxu0 %v2989
  %3035 = vmatprep.subr.mxu0 0.0
  %3036 = vmatpush1.msra.mxu0 %v2988
  %3037 = vmatprep.subr.mxu0 0.0
  %3038 = vmatpush1.msra.mxu0 %v2987
  %3039 = vmatprep.subr.mxu0 0.0
  %3040 = vmatpush1.msra.mxu0 %v2986
  %3041 = vmatprep.subr.mxu0 0.0
  %3042 = vmatpush2.msra.mxu0 0.0
  %3043 = vmatprep.subr.mxu0 0.0
  %3044 = vmatpush2.msra.mxu0 0.0
  %3045 = vmatprep.subr.mxu0 0.0
  %3046 = vmatpush2.msra.mxu0 0.0
  %3047 = vmatprep.subr.mxu0 0.0
  %3048 = vmatpush2.msra.mxu0 0.0
  %3049 = vmatprep.subr.mxu0 0.0
  %3050 = vmatpush2.msra.mxu0 0.0
  %3051 = vmatprep.subr.mxu0 0.0
  %3052 = vmatpush2.msra.mxu0 0.0
  %3053 = vmatprep.subr.mxu0 0.0
  %3054 = vmatpush2.msra.mxu0 0.0
  %3055 = vmatprep.subr.mxu0 0.0
  %3056 = vmatpush2.msra.mxu0 0.0
  %3057 = vmatprep.subr.mxu0 0.0
  %3058 = vmatpush2.msra.mxu0 0.0
  %3059 = vmatprep.subr.mxu0 0.0
  %3060 = vmatpush2.msra.mxu0 0.0
  %3061 = vmatprep.subr.mxu0 0.0
  %3062 = vmatpush2.msra.mxu0 0.0
  %3063 = vmatprep.subr.mxu0 0.0
  %3064 = vmatpush2.msra.mxu0 0.0
  %3065 = vmatprep.subr.mxu0 0.0
  %3066 = vmatpush2.msra.mxu0 0.0
  %3067 = vmatprep.subr.mxu0 0.0
  %3068 = vmatpush2.msra.mxu0 0.0
  %3069 = vmatprep.subr.mxu0 0.0
  %3070 = vmatpush2.msra.mxu0 0.0
  %3071 = vmatprep.subr.mxu0 0.0
  %3072 = vmatpush2.msra.mxu0 0.0
  %3073 = vmatprep.mubr.f32.mxu0 0.0
  %3074 = vmatmul.mubr.f32.gmra.mxu0 %v2978
  %v3075 = vpop.f32.mrf.mxu0
  %v3076 = vadd.f32 %v3007, %v3075
  %v3077 = vpop.f32.mrf.mxu0
  %3078 = vmatprep.mubr.f32.mxu0 0.0
  %3079 = vmatmul.mubr.f32.gmra.mxu0 %v2979
  %v3080 = vpop.f32.mrf.mxu0
  %v3081 = vadd.f32 %v3007, %v3080
  %v3082 = vpop.f32.mrf.mxu0
  %3083 = vmatprep.mubr.f32.mxu0 0.0
  %3084 = vmatmul.mubr.f32.gmra.mxu0 %v2980
  %v3085 = vpop.f32.mrf.mxu0
  %v3086 = vadd.f32 %v3007, %v3085
  %v3087 = vpop.f32.mrf.mxu0
  %3088 = vmatprep.mubr.f32.mxu0 0.0
  %3089 = vmatmul.mubr.f32.gmra.mxu0 %v2981
  %v3090 = vpop.f32.mrf.mxu0
  %v3091 = vadd.f32 %v3007, %v3090
  %v3092 = vpop.f32.mrf.mxu0
  %3093 = vmatprep.mubr.f32.mxu0 0.0
  %3094 = vmatmul.mubr.f32.gmra.mxu0 %v2982
  %v3095 = vpop.f32.mrf.mxu0
  %v3096 = vadd.f32 %v3007, %v3095
  %v3097 = vpop.f32.mrf.mxu0
  %3098 = vmatprep.mubr.f32.mxu0 0.0
  %3099 = vmatmul.mubr.f32.gmra.mxu0 %v2983
  %v3100 = vpop.f32.mrf.mxu0
  %v3101 = vadd.f32 %v3007, %v3100
  %v3102 = vpop.f32.mrf.mxu0
  %3103 = vmatprep.mubr.f32.mxu0 0.0
  %3104 = vmatmul.mubr.f32.gmra.mxu0 %v2984
  %v3105 = vpop.f32.mrf.mxu0
  %v3106 = vadd.f32 %v3007, %v3105
  %v3107 = vpop.f32.mrf.mxu0
  %3108 = vmatprep.mubr.f32.mxu0 0.0
  %3109 = vmatmul.mubr.f32.gmra.mxu0 %v2985
  %v3110 = vpop.f32.mrf.mxu0
  %v3111 = vadd.f32 %v3007, %v3110
  %v3112 = vpop.f32.mrf.mxu0
  %3113 = vdwg.mxu0
  %3122 = vrot.lane.b32.xlu0 %v3076, 127
  %v3123 = vpop.permute.xlu0 %3122
  %3124 = vrot.lane.b32.xlu0 %v3081, 127
  %v3125 = vpop.permute.xlu0 %3124
  %3126 = vrot.lane.b32.xlu0 %v3086, 127
  %v3127 = vpop.permute.xlu0 %3126
  %3128 = vrot.lane.b32.xlu0 %v3091, 127
  %v3129 = vpop.permute.xlu0 %3128
  %3130 = vrot.lane.b32.xlu0 %v3096, 127
  %v3131 = vpop.permute.xlu0 %3130
  %3132 = vrot.lane.b32.xlu0 %v3101, 127
  %v3133 = vpop.permute.xlu0 %3132
  %3134 = vrot.lane.b32.xlu0 %v3106, 127
  %v3135 = vpop.permute.xlu0 %3134
  %3136 = vrot.lane.b32.xlu0 %v3111, 127
  %v3137 = vpop.permute.xlu0 %3136
  %v3146 = vsub.f32 %v3076, %v3123
  %v3147 = vsub.f32 %v3081, %v3125
  %v3148 = vsub.f32 %v3086, %v3127
  %v3149 = vsub.f32 %v3091, %v3129
  %v3150 = vsub.f32 %v3096, %v3131
  %v3151 = vsub.f32 %v3101, %v3133
  %v3152 = vsub.f32 %v3106, %v3135
  %v3153 = vsub.f32 %v3111, %v3137
  %v3154 = vxor.u32 %v3146, 2147483648
  %v3155 = vxor.u32 %v3147, 2147483648
  %v3156 = vxor.u32 %v3148, 2147483648
  %v3157 = vxor.u32 %v3149, 2147483648
  %v3158 = vxor.u32 %v3150, 2147483648
  %v3159 = vxor.u32 %v3151, 2147483648
  %v3160 = vxor.u32 %v3152, 2147483648
  %v3161 = vxor.u32 %v3153, 2147483648
  %v3162 = vmul.f32 %v3154, 1.442695
  %v3163 = vpow.pop %v3162
  %v3164 = vmul.f32 %v3155, 1.442695
  %v3165 = vpow.pop %v3164
  %v3166 = vmul.f32 %v3156, 1.442695
  %v3167 = vpow.pop %v3166
  %v3168 = vmul.f32 %v3157, 1.442695
  %v3169 = vpow.pop %v3168
  %v3170 = vmul.f32 %v3158, 1.442695
  %v3171 = vpow.pop %v3170
  %v3172 = vmul.f32 %v3159, 1.442695
  %v3173 = vpow.pop %v3172
  %v3174 = vmul.f32 %v3160, 1.442695
  %v3175 = vpow.pop %v3174
  %v3176 = vmul.f32 %v3161, 1.442695
  %v3177 = vpow.pop %v3176
  %v3178 = vadd.f32 %v3163, 1.0
  %v3179 = vadd.f32 %v3165, 1.0
  %v3180 = vadd.f32 %v3167, 1.0
  %v3181 = vadd.f32 %v3169, 1.0
  %v3182 = vadd.f32 %v3171, 1.0
  %v3183 = vadd.f32 %v3173, 1.0
  %v3184 = vadd.f32 %v3175, 1.0
  %v3185 = vadd.f32 %v3177, 1.0
  %v3186 = vrcp.pop %v3178
  %v3187 = vmul.f32 1.0, %v3186
  %v3188 = vrcp.pop %v3179
  %v3189 = vmul.f32 1.0, %v3188
  %v3190 = vrcp.pop %v3180
  %v3191 = vmul.f32 1.0, %v3190
  %v3192 = vrcp.pop %v3181
  %v3193 = vmul.f32 1.0, %v3192
  %v3194 = vrcp.pop %v3182
  %v3195 = vmul.f32 1.0, %v3194
  %v3196 = vrcp.pop %v3183
  %v3197 = vmul.f32 1.0, %v3196
  %v3198 = vrcp.pop %v3184
  %v3199 = vmul.f32 1.0, %v3198
  %v3200 = vrcp.pop %v3185
  %v3201 = vmul.f32 1.0, %v3200
  %v3202 = vsub.f32 0.0, %v3146
  %v3203 = vsub.f32 0.0, %v3147
  %v3204 = vsub.f32 0.0, %v3148
  %v3205 = vsub.f32 0.0, %v3149
  %v3206 = vsub.f32 0.0, %v3150
  %v3207 = vsub.f32 0.0, %v3151
  %v3208 = vsub.f32 0.0, %v3152
  %v3209 = vsub.f32 0.0, %v3153
  %v3210 = vxor.u32 %v3202, 2147483648
  %v3211 = vxor.u32 %v3203, 2147483648
  %v3212 = vxor.u32 %v3204, 2147483648
  %v3213 = vxor.u32 %v3205, 2147483648
  %v3214 = vxor.u32 %v3206, 2147483648
  %v3215 = vxor.u32 %v3207, 2147483648
  %v3216 = vxor.u32 %v3208, 2147483648
  %v3217 = vxor.u32 %v3209, 2147483648
  %v3218 = vmul.f32 %v3210, 1.442695
  %v3219 = vpow.pop %v3218
  %v3220 = vmul.f32 %v3211, 1.442695
  %v3221 = vpow.pop %v3220
  %v3222 = vmul.f32 %v3212, 1.442695
  %v3223 = vpow.pop %v3222
  %v3224 = vmul.f32 %v3213, 1.442695
  %v3225 = vpow.pop %v3224
  %v3226 = vmul.f32 %v3214, 1.442695
  %v3227 = vpow.pop %v3226
  %v3228 = vmul.f32 %v3215, 1.442695
  %v3229 = vpow.pop %v3228
  %v3230 = vmul.f32 %v3216, 1.442695
  %v3231 = vpow.pop %v3230
  %v3232 = vmul.f32 %v3217, 1.442695
  %v3233 = vpow.pop %v3232
  %v3234 = vadd.f32 %v3219, 1.0
  %v3235 = vadd.f32 %v3221, 1.0
  %v3236 = vadd.f32 %v3223, 1.0
  %v3237 = vadd.f32 %v3225, 1.0
  %v3238 = vadd.f32 %v3227, 1.0
  %v3239 = vadd.f32 %v3229, 1.0
  %v3240 = vadd.f32 %v3231, 1.0
  %v3241 = vadd.f32 %v3233, 1.0
  %v3242 = vrcp.pop %v3234
  %v3243 = vmul.f32 1.0, %v3242
  %v3244 = vrcp.pop %v3235
  %v3245 = vmul.f32 1.0, %v3244
  %v3246 = vrcp.pop %v3236
  %v3247 = vmul.f32 1.0, %v3246
  %v3248 = vrcp.pop %v3237
  %v3249 = vmul.f32 1.0, %v3248
  %v3250 = vrcp.pop %v3238
  %v3251 = vmul.f32 1.0, %v3250
  %v3252 = vrcp.pop %v3239
  %v3253 = vmul.f32 1.0, %v3252
  %v3254 = vrcp.pop %v3240
  %v3255 = vmul.f32 1.0, %v3254
  %v3256 = vrcp.pop %v3241
  %v3257 = vmul.f32 1.0, %v3256
  %3266 = vrot.lane.b32.xlu0 %v3243, 1
  %v3267 = vpop.permute.xlu0 %3266
  %3268 = vrot.lane.b32.xlu0 %v3245, 1
  %v3269 = vpop.permute.xlu0 %3268
  %3270 = vrot.lane.b32.xlu0 %v3247, 1
  %v3271 = vpop.permute.xlu0 %3270
  %3272 = vrot.lane.b32.xlu0 %v3249, 1
  %v3273 = vpop.permute.xlu0 %3272
  %3274 = vrot.lane.b32.xlu0 %v3251, 1
  %v3275 = vpop.permute.xlu0 %3274
  %3276 = vrot.lane.b32.xlu0 %v3253, 1
  %v3277 = vpop.permute.xlu0 %3276
  %3278 = vrot.lane.b32.xlu0 %v3255, 1
  %v3279 = vpop.permute.xlu0 %3278
  %3280 = vrot.lane.b32.xlu0 %v3257, 1
  %v3281 = vpop.permute.xlu0 %3280
  %vm3290 = vcmask 7168
  %v3291 = vsel %vm3290, %v3187, %v3267
  %v3292 = vsel %vm3290, %v3189, %v3269
  %v3293 = vsel %vm3290, %v3191, %v3271
  %v3294 = vsel %vm3290, %v3193, %v3273
  %v3295 = vsel %vm3290, %v3195, %v3275
  %v3296 = vsel %vm3290, %v3197, %v3277
  %v3297 = vsel %vm3290, %v3199, %v3279
  %v3298 = vsel %vm3290, %v3201, %v3281
  %vm3299 = vcmask 15360
  %v3300 = vsel %vm3299, %v3291, %v3076
  %v3301 = vsel %vm3299, %v3292, %v3081
  %v3302 = vsel %vm3299, %v3293, %v3086
  %v3303 = vsel %vm3299, %v3294, %v3091
  %v3304 = vsel %vm3299, %v3295, %v3096
  %v3305 = vsel %vm3299, %v3296, %v3101
  %v3306 = vsel %vm3299, %v3297, %v3106
  %v3307 = vsel %vm3299, %v3298, %v3111
  %vm3308 = vcmask 23552
  %3309 = vst.msk [vmem:[%s10] sm:$0xff] %vm3308, %v3300
  %3310 = vst.msk [vmem:[%s10 + $0x8] sm:$0xff] %vm3308, %v3301
  %3311 = vst.msk [vmem:[%s10 + $0x10] sm:$0xff] %vm3308, %v3302
  %3312 = vst.msk [vmem:[%s10 + $0x18] sm:$0xff] %vm3308, %v3303
  %3313 = vst.msk [vmem:[%s10 + $0x20] sm:$0xff] %vm3308, %v3304
  %3314 = vst.msk [vmem:[%s10 + $0x28] sm:$0xff] %vm3308, %v3305
  %3315 = vst.msk [vmem:[%s10 + $0x30] sm:$0xff] %vm3308, %v3306
  %3316 = vst.msk [vmem:[%s10 + $0x38] sm:$0xff] %vm3308, %v3307
  // Predicated region
  $region42: #{ppolstm_forward.1} parent=0 // pred_check
    _
  $region43: #{ppolstm_forward.1} parent=0 // pred_check_branch
    %3318 = sbr.rel (0) target = $region45
  $region44: #{ppolstm_forward.1} parent=0 // pred_region
    _
  $region45: #{ppolstm_forward.1} parent=0 // pred_fallthru
    _
  // Predicated region
  $region46: #{ppolstm_forward.1} parent=0 // pred_check
    _
  $region47: #{ppolstm_forward.1} parent=0 // pred_check_branch
    %3320 = sbr.rel (0) target = $region49
  $region48: #{ppolstm_forward.1} parent=0 // pred_region
    _
  $region49: #{ppolstm_forward.1} parent=0 // pred_fallthru
    _
  // Predicated region
  $region50: #{ppolstm_forward.1} parent=0 // pred_check
    _
  $region51: #{ppolstm_forward.1} parent=0 // pred_check_branch
    %3322 = sbr.rel (0) target = $region53
  $region52: #{ppolstm_forward.1} parent=0 // pred_region
    _
  $region53: #{ppolstm_forward.1} parent=0 // pred_fallthru
    _
  // Predicated region
  $region54: #{ppolstm_forward.1} parent=0 // pred_check
    _
  $region55: #{ppolstm_forward.1} parent=0 // pred_check_branch
    %3324 = sbr.rel (0) target = $region57
  $region56: #{ppolstm_forward.1} parent=0 // pred_region
    _
  $region57: #{ppolstm_forward.1} parent=0 // pred_fallthru
    _
  // Predicated region
  $region58: #{ppolstm_forward.1} parent=0 // pred_check
    _
  $region59: #{ppolstm_forward.1} parent=0 // pred_check_branch
    %3326 = sbr.rel (0) target = $region61
  $region60: #{ppolstm_forward.1} parent=0 // pred_region
    _
  $region61: #{ppolstm_forward.1} parent=0 // pred_fallthru
    _
  // Predicated region
  $region62: #{ppolstm_forward.1} parent=0 // pred_check
    _
  $region63: #{ppolstm_forward.1} parent=0 // pred_check_branch
    %3328 = sbr.rel (0) target = $region65
  $region64: #{ppolstm_forward.1} parent=0 // pred_region
    _
  $region65: #{ppolstm_forward.1} parent=0 // pred_fallthru
    _

</llo_original>
